<compile_context>
chip_gen: v5e
topology: v5e:2x2
jax: 0.10.0
libtpu: 0.0.40
codegen_flags: <defaults>
</compile_context>

<pallas_src>
import math
import functools

import jax
import jax.numpy as jnp
from jax.experimental import pallas as pl
from jax.experimental.pallas import tpu as pltpu


# ----------------------------------------------------------------------------
# Generation-aware knobs
# ----------------------------------------------------------------------------
def _vmem_budget_bytes():
    cap = 128 * 1024 * 1024
    try:
        cap = int(pltpu.get_tpu_info().vmem_capacity_bytes)
    except Exception:
        pass
    return (cap * 3) // 4          # ~48 MiB on v7x, ~96 MiB on v5e/v6e


def _num_tensorcores_per_chip():
    try:
        kind = jax.devices()[0].device_kind.lower()
        if ("v7" in kind) or ("7x" in kind):
            return 2
    except Exception:
        pass
    return 1


def _select_act_dtype():
    """bf16 bias/ReLU on v6e/v7x (bf16 VPU), f32 elsewhere (v5e has no bf16 VPU)."""
    try:
        kind = jax.devices()[0].device_kind.lower()
        if ("v6" in kind) or ("v7" in kind) or ("7x" in kind):
            return jnp.bfloat16
    except Exception:
        pass
    return jnp.float32


def _round_up(x, m):
    return ((x + m - 1) // m) * m


def _cdiv(a, b):
    return (a + b - 1) // b


def _step_vmem_bytes(tile, s):
    """Conservative per-grid-step VMEM estimate (double-buffered ins/outs + live f32 mids)."""
    in_dbuf = 2 * (tile * s * 128 * 2      # gproj bf16
                   + tile * s * 3 * 4      # gxyz  f32
                   + tile * 3 * 4)         # new_xyz f32
    live = 3 * tile * s * 128 * 4          # live f32 intermediates (conservative)
    out_dbuf = 2 * 3 * tile * 128 * 4      # 3 lane-dense f32 outputs
    fixed = 2 * 1024 * 1024                # weights (double-buffered) + headroom
    return in_dbuf + live + out_dbuf + fixed


def _choose_tile_bp(bp, s, vmem_budget, two_cores, max_tile=512):
    """Largest multiple-of-8 tile that fits the VMEM budget; pad BP up to tile*steps."""
    cap = min(max_tile, _round_up(bp, 8))
    if two_cores and bp > 8:
        cap = min(cap, _round_up(_cdiv(bp, 2), 8))   # leave work for both TensorCores
    tile = 8
    t = 16
    while t <= cap:
        if _step_vmem_bytes(t, s) <= vmem_budget:
            tile = t
        t += 8
    steps = _cdiv(bp, tile)
    if two_cores:
        if steps < 2:
            steps = 2
        elif steps % 2:
            steps += 1
    return tile, steps


def _pad_rows(a, n):
    if n == 0:
        return a
    return jnp.pad(a, [(0, n)] + [(0, 0)] * (a.ndim - 1))


# ----------------------------------------------------------------------------
# Fused Pallas kernel: SharedMLP (layer1 xyz-term + layers 2/3) + max-pool
#                      + proposal head + box decode
# ----------------------------------------------------------------------------
def fused_proposal_kernel(gproj_ref, gxyz_ref, nxyz_ref,
                          w1x, b1, w2, b2, w3, b3,
                          hw1, hb1, hw2, hb2, hw3, hb3,
                          feat_ref, scores_ref, dec_ref,
                          *, nh, act_dtype, mm_dtype):
    T, S, _ = gproj_ref.shape
    f32 = jnp.float32

    # ---- SA layer 1: seed features were pre-projected through sa_w1_feat in the wrapper
    # (linear layer commutes with the gather), so only the tiny xyz term + bias + ReLU remain.
    gx = gxyz_ref[...].astype(act_dtype)                              # (T, S, 3)
    wx = w1x[...].astype(act_dtype)                                   # (3, 128)
    xyz_term = (gx[..., 0:1] * wx[0:1, :].reshape(1, 1, -1)
                + gx[..., 1:2] * wx[1:2, :].reshape(1, 1, -1)
                + gx[..., 2:3] * wx[2:3, :].reshape(1, 1, -1))        # (T, S, 128) VPU-only
    h = (gproj_ref[...].astype(act_dtype) + xyz_term
         + b1[...].astype(act_dtype).reshape(1, 1, -1))
    # S is padded to a multiple of 8 by the wrapper -> these reshapes are layout-free.
    h = jnp.maximum(h, 0.0).astype(mm_dtype).reshape(T * S, 128)

    def _layer(x, w_ref, b_ref):
        acc = jnp.dot(x, w_ref[...], preferred_element_type=f32)      # MXU, f32 accumulate
        acc = acc.astype(act_dtype) + b_ref[...].astype(act_dtype)    # bias+ReLU in act_dtype
        return jnp.maximum(acc, 0.0).astype(mm_dtype)

    # ---- SA layers 2 & 3 (1x1 conv == matmul, BN folded) + max-pool over nsample ----
    h = _layer(h, w2, b2)
    h = _layer(h, w3, b3)
    feat = jnp.max(h.reshape(T, S, 128), axis=1).astype(f32)          # (T, 128)
    feat_ref[...] = feat

    # ---- proposal head (last layer zero-padded to N=128 -> lane-dense, MXU-aligned) ----
    h2 = _layer(feat.astype(mm_dtype), hw1, hb1)
    h2 = _layer(h2, hw2, hb2)
    scores = jnp.dot(h2, hw3[...], preferred_element_type=f32) + hb3[...]   # (T, 128) f32
    scores_ref[...] = scores

    # ---- decode_pred_box / decode_scores epilogue (f32 VPU/EUP) ----
    obj = scores[:, 0:2]
    rois = scores[:, 2:8]
    hs = scores[:, 8:8 + nh]
    hr = scores[:, 8 + nh:8 + 2 * nh]

    # argmax over heading bins (first-max, like torch.argmax) + residual gather
    mx = jnp.max(hs, axis=-1, keepdims=True)
    iota = jax.lax.broadcasted_iota(jnp.int32, hs.shape, 1)
    cls = jnp.min(jnp.where(hs >= mx, iota, nh), axis=-1, keepdims=True)    # (T, 1)
    res = jnp.sum(jnp.where(iota == cls, hr, 0.0), axis=-1, keepdims=True)  # (T, 1)

    # TODO(synk): raw residual added (no pi/nh scaling) and this rotz sign convention mirror the
    # repo's decode_pred_box / rotz_batch_pytorch as written; verify against box_util variant.
    heading = cls.astype(f32) * (2.0 * math.pi / nh) + res                  # (T, 1)
    size = rois[:, 0:3] + rois[:, 3:6]                                      # (T, 3)
    vote = (rois[:, 0:3] - rois[:, 3:6]) * 0.5                              # (T, 3)

    c = jnp.cos(heading)
    s = jnp.sin(heading)
    vx, vy, vz = vote[:, 0:1], vote[:, 1:2], vote[:, 2:3]
    rx = vx * c + vy * s                    # row-vector @ rotz(heading)
    ry = -vx * s + vy * c
    center = nxyz_ref[...] - jnp.concatenate([rx, ry, vz], axis=-1)         # (T, 3)
    mask = (obj[:, 1:2] > obj[:, 0:1]).astype(f32)                          # (T, 1)

    # lane-dense decode slab: [heading | size | center | mask | 0-pad] -> 128 lanes
    dec_ref[...] = jnp.concatenate(
        [heading, size, center, mask, jnp.zeros((T, 128 - 8), f32)], axis=-1)


# ----------------------------------------------------------------------------
# pallas_call wrapper
# ----------------------------------------------------------------------------
def _full_spec(arr):
    zeros = (0,) * arr.ndim
    return pl.BlockSpec(arr.shape, lambda i, _z=zeros: _z)


def fused_proposal_forward(gproj_flat, gxyz_flat, new_xyz_flat, params, *,
                           num_heading_bin, num_class, mm_dtype=jnp.bfloat16):
    BP, S, _ = gproj_flat.shape
    nh = num_heading_bin
    out_dim = 2 + 6 + 2 * nh + num_class
    assert out_dim <= 128, "head output must fit in 128 lanes"
    f32 = jnp.float32

    act_dtype = _select_act_dtype()
    vmem_budget = _vmem_budget_bytes()
    two_cores = _num_tensorcores_per_chip() >= 2
    tile, steps = _choose_tile_bp(BP, S, vmem_budget, two_cores)
    BP_pad = tile * steps
    pad = BP_pad - BP

    # padded rows are zeros: they flow through the MLP/decode harmlessly and are sliced off.
    gproj_p = _pad_rows(gproj_flat.astype(mm_dtype), pad)          # (BP_pad, S, 128) bf16
    gxyz_p = _pad_rows(gxyz_flat.astype(f32), pad)                 # (BP_pad, S, 3)   f32 (tiny)
    nxyz_p = _pad_rows(new_xyz_flat.astype(f32), pad)              # (BP_pad, 3)      f32

    # pad the last head layer to N=128 (zero columns) -> lane-dense scores output.
    hw3p = jnp.zeros((128, 128), f32).at[:, :out_dim].set(params["head_w3"]).astype(mm_dtype)
    hb3p = jnp.zeros((1, 128), f32).at[:, :out_dim].set(params["head_b3"])

    # TODO(synk): pipeline_mode=pl.Buffered(1) on these grid-invariant weight streams would reclaim
    # a little VMEM on v7x; left default for lowering safety.
    weights = [
        params["sa_w1_xyz"].astype(f32), params["sa_b1"].astype(f32),
        params["sa_w2"].astype(mm_dtype), params["sa_b2"].astype(f32),
        params["sa_w3"].astype(mm_dtype), params["sa_b3"].astype(f32),
        params["head_w1"].astype(mm_dtype), params["head_b1"].astype(f32),
        params["head_w2"].astype(mm_dtype), params["head_b2"].astype(f32),
        hw3p, hb3p,
    ]

    kernel = functools.partial(fused_proposal_kernel, nh=nh,
                               act_dtype=act_dtype, mm_dtype=mm_dtype)

    def _bytes(a):
        return int(a.size) * jnp.dtype(a.dtype).itemsize

    flops = (2 * BP_pad * S * 128 * 128 * 2          # SA layers 2,3
             + 2 * BP_pad * 128 * 128 * 3)           # head layers (last one padded to 128)
    bytes_accessed = (_bytes(gproj_p) + _bytes(gxyz_p) + _bytes(nxyz_p)
                      + sum(_bytes(w) for w in weights)
                      + 3 * BP_pad * 128 * 4)

    feat, scores, dec = pl.pallas_call(
        kernel,
        out_shape=(jax.ShapeDtypeStruct((BP_pad, 128), f32),
                   jax.ShapeDtypeStruct((BP_pad, 128), f32),
                   jax.ShapeDtypeStruct((BP_pad, 128), f32)),
        grid=(steps,),
        in_specs=[pl.BlockSpec((tile, S, 128), lambda i: (i, 0, 0)),
                  pl.BlockSpec((tile, S, 3), lambda i: (i, 0, 0)),
                  pl.BlockSpec((tile, 3), lambda i: (i, 0))]
                 + [_full_spec(w) for w in weights],
        out_specs=(pl.BlockSpec((tile, 128), lambda i: (i, 0)),
                   pl.BlockSpec((tile, 128), lambda i: (i, 0)),
                   pl.BlockSpec((tile, 128), lambda i: (i, 0))),
        compiler_params=pltpu.CompilerParams(
            dimension_semantics=("parallel",),
            vmem_limit_bytes=int(vmem_budget)),
        cost_estimate=pl.CostEstimate(flops=int(flops),
                                      transcendentals=int(2 * BP_pad),
                                      bytes_accessed=int(bytes_accessed)),
    )(gproj_p, gxyz_p, nxyz_p, *weights)

    return feat[:BP], scores[:BP], dec[:BP], out_dim


# ----------------------------------------------------------------------------
# Plain-JAX glue: FPS, ball query, grouping, corner boxes
# ----------------------------------------------------------------------------
def _fps(points, npoint):
    K = points.shape[0]

    def body(i, carry):
        dists, inds = carry
        last = points[inds[i - 1]]
        d = jnp.sum((points - last) ** 2, axis=-1)
        dists = jnp.minimum(dists, d)
        inds = inds.at[i].set(jnp.argmax(dists).astype(jnp.int32))
        return dists, inds

    dists0 = jnp.full((K,), 1e10, jnp.float32)
    inds0 = jnp.zeros((npoint,), jnp.int32)
    _, inds = jax.lax.fori_loop(1, npoint, body, (dists0, inds0))
    return inds


def _ball_query(xyz_b, new_xyz_b, seed_idx_b, *, radius, nsample):
    K = xyz_b.shape[0]
    d2 = jnp.sum((new_xyz_b[:, None, :] - xyz_b[None, :, :]) ** 2, axis=-1)   # (P, K)
    in_ball = d2 < radius * radius
    key = jnp.where(in_ball, jnp.arange(K, dtype=jnp.int32)[None, :], K)
    # TODO(synk): O(K log K) sort per proposal; replace with masked top-nsample selection at real K.
    sorted_key = jnp.sort(key, axis=-1)[:, :nsample]
    first = sorted_key[:, :1]
    first = jnp.where(first >= K, seed_idx_b[:, None].astype(jnp.int32), first)
    return jnp.where(sorted_key >= K, first, sorted_key).astype(jnp.int32)


# TODO(synk): exact corner convention depends on the repo's box_util variant; this is the
# z-up / rot-z version (original code runs it in CPU numpy, not on-device).
def get_3d_box_batch_jax(box_size, heading, center):
    c = jnp.cos(heading)[..., None]
    s = jnp.sin(heading)[..., None]
    l = box_size[..., 0] / 2.0
    w = box_size[..., 1] / 2.0
    h = box_size[..., 2] / 2.0
    sx = jnp.stack([l, l, -l, -l, l, l, -l, -l], axis=-1)
    sy = jnp.stack([w, -w, -w, w, w, -w, -w, w], axis=-1)
    sz = jnp.stack([h, h, h, h, -h, -h, -h, -h], axis=-1)
    cx = c * sx - s * sy + center[..., 0:1]
    cy = s * sx + c * sy + center[..., 1:2]
    cz = sz + center[..., 2:3]
    return jnp.stack([cx, cy, cz], axis=-1)                   # (B, P, 8, 3)


# ----------------------------------------------------------------------------
# Parameters (deterministic, BN folded into per-channel scale/bias)
# ----------------------------------------------------------------------------
def init_params(key, cin, num_heading_bin, num_class):
    ks = jax.random.split(key, 13)

    def w(k, shape, scale=0.1):
        return jax.random.normal(k, shape, jnp.float32) * scale

    out_dim = 2 + 6 + 2 * num_heading_bin + num_class   # objectness + rois + heading cls/res + sem cls
    return dict(
        sa_w1_xyz=w(ks[0], (3, 128)),                    # layer-1 weight split: xyz part
        sa_w1_feat=w(ks[1], (cin, 128)),                 # layer-1 weight split: seed-feature part
        sa_b1=w(ks[2], (1, 128), 0.01),
        sa_w2=w(ks[3], (128, 128)), sa_b2=w(ks[4], (1, 128), 0.01),
        sa_w3=w(ks[5], (128, 128)), sa_b3=w(ks[6], (1, 128), 0.01),
        head_w1=w(ks[7], (128, 128)), head_b1=w(ks[8], (1, 128), 0.01),
        head_w2=w(ks[9], (128, 128)), head_b2=w(ks[10], (1, 128), 0.01),
        head_w3=w(ks[11], (128, out_dim)), head_b3=w(ks[12], (1, out_dim), 0.01),
    )


# ----------------------------------------------------------------------------
# ProposalModule.forward (non-USE_GT path)
# ----------------------------------------------------------------------------
def proposal_module_forward(xyz, features, params, *, num_proposal, nsample, radius,
                            num_heading_bin, num_class, mm_dtype=jnp.bfloat16):
    B, K, _ = xyz.shape
    P = num_proposal
    feats_kc = jnp.transpose(features, (0, 2, 1))                             # (B, K, C)

    # project seed features through the (BN-folded) first SharedMLP weight ONCE per seed
    # point; the linear projection commutes with the gather, so this is exact and makes the
    # gathered stream 128-channel bf16 instead of (3+C)-channel f32.
    fproj = jnp.dot(feats_kc.astype(mm_dtype), params["sa_w1_feat"].astype(mm_dtype),
                    preferred_element_type=jnp.float32).astype(mm_dtype)      # (B, K, 128) bf16

    # ---- vote_aggregation sampling/grouping (plain-JAX glue) ----
    # TODO(synk): FPS / ball-query are data-dependent; moving the neighbour gather fully into the
    # Pallas kernel needs a sublane dynamic-gather (or per-row DMA) and is left in glue for safety.
    fps_inds = jax.vmap(lambda p: _fps(p, P))(xyz)                            # (B, P)
    new_xyz = jax.vmap(lambda p, i: p[i])(xyz, fps_inds)                      # (B, P, 3)
    bq = functools.partial(_ball_query, radius=radius, nsample=nsample)
    group_idx = jax.vmap(bq)(xyz, new_xyz, fps_inds)                          # (B, P, S)

    def _gather(xyz_b, fproj_b, idx_b, nx_b):
        gxyz = (xyz_b[idx_b] - nx_b[:, None, :]) * (1.0 / radius)            # normalize_xyz=True
        return gxyz, fproj_b[idx_b]                                           # bf16 at birth

    gxyz, gproj = jax.vmap(_gather)(xyz, fproj, group_idx, new_xyz)           # (B,P,S,3) f32 / (B,P,S,128) bf16

    # pad nsample to a multiple of 8 by repeating sample 0 (max-pool invariant, so exact)
    S = nsample
    if S % 8:
        padS = 8 - S % 8
        gxyz = jnp.concatenate([gxyz, jnp.repeat(gxyz[:, :, :1], padS, axis=2)], axis=2)
        gproj = jnp.concatenate([gproj, jnp.repeat(gproj[:, :, :1], padS, axis=2)], axis=2)
        S += padS

    # flatten batch into the proposal axis so the MXU sees large M per push
    BP = B * P
    gproj_flat = gproj.reshape(BP, S, 128)
    gxyz_flat = gxyz.reshape(BP, S, 3)
    new_xyz_flat = new_xyz.reshape(BP, 3)

    # ---- fused SharedMLP + max-pool + proposal head + box decode (single Pallas call) ----
    feat, scores_pad, dec, out_dim = fused_proposal_forward(
        gproj_flat, gxyz_flat, new_xyz_flat, params,
        num_heading_bin=num_heading_bin, num_class=num_class, mm_dtype=mm_dtype)

    nh = num_heading_bin
    agg_features = feat.reshape(B, P, 128)
    scores = scores_pad.reshape(B, P, 128)[..., :out_dim]
    dec = dec.reshape(B, P, 128)

    objectness_scores = scores[..., 0:2]
    rois = scores[..., 2:8]
    heading_scores = scores[..., 8:8 + nh]
    heading_residuals = scores[..., 8 + nh:8 + 2 * nh]
    sem_cls_scores = scores[..., 8 + 2 * nh:out_dim]

    pred_heading = dec[..., 0]
    pred_size = dec[..., 1:4]
    pred_center = dec[..., 4:7]
    pred_bbox_mask = dec[..., 7].astype(jnp.int32)

    pred_bbox_corner = get_3d_box_batch_jax(pred_size, pred_heading, pred_center)

    data_dict = {
        "aggregated_vote_xyz": new_xyz,
        "aggregated_vote_features": agg_features,
        "aggregated_vote_inds": fps_inds,
        "objectness_scores": objectness_scores,
        "rois": rois,
        "heading_scores": heading_scores,
        "heading_residuals": heading_residuals,
        "sem_cls_scores": sem_cls_scores,
        "pred_heading": pred_heading,
        "pred_size": pred_size,
        "pred_center": pred_center,
        "pred_bbox_corner": pred_bbox_corner,
        "pred_bbox_feature": agg_features,
        "pred_bbox_mask": pred_bbox_mask,
    }
    return data_dict


# ----------------------------------------------------------------------------
if __name__ == "__main__":
    B, K, C = 2, 64, 32                 # batch, seed points, seed_feat_dim (small)
    num_proposal, nsample, radius = 16, 16, 0.3
    num_heading_bin, num_class = 4, 6
    # mean_size_arr / num_size_cluster unused in this forward path (matches the non-GT branch)

    key = jax.random.PRNGKey(0)
    k_xyz, k_feat, k_par = jax.random.split(key, 3)
    xyz = jax.random.uniform(k_xyz, (B, K, 3), jnp.float32)          # (B, K, 3)
    features = jax.random.normal(k_feat, (B, C, K), jnp.float32)     # torch layout (B, C, K)

    params = init_params(k_par, C, num_heading_bin, num_class)

    fwd = jax.jit(functools.partial(
        proposal_module_forward,
        num_proposal=num_proposal, nsample=nsample, radius=radius,
        num_heading_bin=num_heading_bin, num_class=num_class))

    data_dict = fwd(xyz, features, params)
    jax.block_until_ready(data_dict)
    print("KERNEL_OK")
</pallas_src>

<mosaic_0001>
module attributes {stable_mosaic.version = 11 : i64} {
  func.func @fused_proposal_kernel(%arg0: i32, %arg1: memref<32x16x128xbf16, #tpu.memory_space<vmem>>, %arg2: memref<32x16x3xf32, #tpu.memory_space<vmem>>, %arg3: memref<32x3xf32, #tpu.memory_space<vmem>>, %arg4: memref<3x128xf32, #tpu.memory_space<vmem>>, %arg5: memref<1x128xf32, #tpu.memory_space<vmem>>, %arg6: memref<128x128xbf16, #tpu.memory_space<vmem>>, %arg7: memref<1x128xf32, #tpu.memory_space<vmem>>, %arg8: memref<128x128xbf16, #tpu.memory_space<vmem>>, %arg9: memref<1x128xf32, #tpu.memory_space<vmem>>, %arg10: memref<128x128xbf16, #tpu.memory_space<vmem>>, %arg11: memref<1x128xf32, #tpu.memory_space<vmem>>, %arg12: memref<128x128xbf16, #tpu.memory_space<vmem>>, %arg13: memref<1x128xf32, #tpu.memory_space<vmem>>, %arg14: memref<128x128xbf16, #tpu.memory_space<vmem>>, %arg15: memref<1x128xf32, #tpu.memory_space<vmem>>, %arg16: memref<32x128xf32, #tpu.memory_space<vmem>>, %arg17: memref<32x128xf32, #tpu.memory_space<vmem>>, %arg18: memref<32x128xf32, #tpu.memory_space<vmem>>) attributes {dimension_semantics = [#tpu.dimension_semantics<parallel>], iteration_bounds = array<i64: 1>, scalar_prefetch = 0 : i64, scratch_operands = 0 : i64, tpu.core_type = #tpu.core_type<tc>, window_params = [{transform_indices = @transform_0, window_bounds = array<i64: 32, 16, 128>}, {transform_indices = @transform_1, window_bounds = array<i64: 32, 16, 3>}, {transform_indices = @transform_2, window_bounds = array<i64: 32, 3>}, {pipeline_mode = #tpu.pipeline_mode<synchronous>, transform_indices = @transform_3, window_bounds = array<i64: 3, 128>}, {pipeline_mode = #tpu.pipeline_mode<synchronous>, transform_indices = @transform_4, window_bounds = array<i64: 1, 128>}, {pipeline_mode = #tpu.pipeline_mode<synchronous>, transform_indices = @transform_5, window_bounds = array<i64: 128, 128>}, {pipeline_mode = #tpu.pipeline_mode<synchronous>, transform_indices = @transform_6, window_bounds = array<i64: 1, 128>}, {pipeline_mode = #tpu.pipeline_mode<synchronous>, transform_indices = @transform_7, window_bounds = array<i64: 128, 128>}, {pipeline_mode = #tpu.pipeline_mode<synchronous>, transform_indices = @transform_8, window_bounds = array<i64: 1, 128>}, {pipeline_mode = #tpu.pipeline_mode<synchronous>, transform_indices = @transform_9, window_bounds = array<i64: 128, 128>}, {pipeline_mode = #tpu.pipeline_mode<synchronous>, transform_indices = @transform_10, window_bounds = array<i64: 1, 128>}, {pipeline_mode = #tpu.pipeline_mode<synchronous>, transform_indices = @transform_11, window_bounds = array<i64: 128, 128>}, {pipeline_mode = #tpu.pipeline_mode<synchronous>, transform_indices = @transform_12, window_bounds = array<i64: 1, 128>}, {pipeline_mode = #tpu.pipeline_mode<synchronous>, transform_indices = @transform_13, window_bounds = array<i64: 128, 128>}, {pipeline_mode = #tpu.pipeline_mode<synchronous>, transform_indices = @transform_14, window_bounds = array<i64: 1, 128>}, {transform_indices = @transform_15, window_bounds = array<i64: 32, 128>}, {transform_indices = @transform_16, window_bounds = array<i64: 32, 128>}, {transform_indices = @transform_17, window_bounds = array<i64: 32, 128>}]} {
    %c0 = arith.constant 0 : index
    %c0_0 = arith.constant 0 : index
    %c0_1 = arith.constant 0 : index
    %0 = vector.load %arg2[%c0, %c0_0, %c0_1] : memref<32x16x3xf32, #tpu.memory_space<vmem>>, vector<32x16x3xf32>
    %c0_2 = arith.constant 0 : index
    %c0_3 = arith.constant 0 : index
    %1 = vector.load %arg4[%c0_2, %c0_3] : memref<3x128xf32, #tpu.memory_space<vmem>>, vector<3x128xf32>
    %2 = vector.extract_strided_slice %0 {offsets = [0, 0, 0], sizes = [32, 16, 1], strides = [1, 1, 1]} : vector<32x16x3xf32> to vector<32x16x1xf32>
    %3 = vector.extract_strided_slice %1 {offsets = [0, 0], sizes = [1, 128], strides = [1, 1]} : vector<3x128xf32> to vector<1x128xf32>
    %4 = vector.shape_cast %3 : vector<1x128xf32> to vector<1x1x128xf32>
    %5 = vector.broadcast %2 : vector<32x16x1xf32> to vector<32x16x128xf32>
    %6 = vector.broadcast %4 : vector<1x1x128xf32> to vector<32x16x128xf32>
    %7 = arith.mulf %5, %6 : vector<32x16x128xf32>
    %8 = vector.extract_strided_slice %0 {offsets = [0, 0, 1], sizes = [32, 16, 1], strides = [1, 1, 1]} : vector<32x16x3xf32> to vector<32x16x1xf32>
    %9 = vector.extract_strided_slice %1 {offsets = [1, 0], sizes = [1, 128], strides = [1, 1]} : vector<3x128xf32> to vector<1x128xf32>
    %10 = vector.shape_cast %9 : vector<1x128xf32> to vector<1x1x128xf32>
    %11 = vector.broadcast %8 : vector<32x16x1xf32> to vector<32x16x128xf32>
    %12 = vector.broadcast %10 : vector<1x1x128xf32> to vector<32x16x128xf32>
    %13 = arith.mulf %11, %12 : vector<32x16x128xf32>
    %14 = arith.addf %7, %13 : vector<32x16x128xf32>
    %15 = vector.extract_strided_slice %0 {offsets = [0, 0, 2], sizes = [32, 16, 1], strides = [1, 1, 1]} : vector<32x16x3xf32> to vector<32x16x1xf32>
    %16 = vector.extract_strided_slice %1 {offsets = [2, 0], sizes = [1, 128], strides = [1, 1]} : vector<3x128xf32> to vector<1x128xf32>
    %17 = vector.shape_cast %16 : vector<1x128xf32> to vector<1x1x128xf32>
    %18 = vector.broadcast %15 : vector<32x16x1xf32> to vector<32x16x128xf32>
    %19 = vector.broadcast %17 : vector<1x1x128xf32> to vector<32x16x128xf32>
    %20 = arith.mulf %18, %19 : vector<32x16x128xf32>
    %21 = arith.addf %14, %20 : vector<32x16x128xf32>
    %c0_4 = arith.constant 0 : index
    %c0_5 = arith.constant 0 : index
    %c0_6 = arith.constant 0 : index
    %22 = vector.load %arg1[%c0_4, %c0_5, %c0_6] : memref<32x16x128xbf16, #tpu.memory_space<vmem>>, vector<32x16x128xbf16>
    %23 = arith.extf %22 : vector<32x16x128xbf16> to vector<32x16x128xf32>
    %24 = arith.addf %23, %21 : vector<32x16x128xf32>
    %c0_7 = arith.constant 0 : index
    %c0_8 = arith.constant 0 : index
    %25 = vector.load %arg5[%c0_7, %c0_8] : memref<1x128xf32, #tpu.memory_space<vmem>>, vector<1x128xf32>
    %26 = vector.shape_cast %25 : vector<1x128xf32> to vector<1x1x128xf32>
    %27 = vector.broadcast %26 : vector<1x1x128xf32> to vector<32x16x128xf32>
    %28 = arith.addf %24, %27 : vector<32x16x128xf32>
    %cst = arith.constant 0.000000e+00 : f32
    %29 = vector.broadcast %cst : f32 to vector<32x16x128xf32>
    %30 = arith.maximumf %28, %29 : vector<32x16x128xf32>
    %31 = arith.truncf %30 : vector<32x16x128xf32> to vector<32x16x128xbf16>
    %32 = vector.shape_cast %31 : vector<32x16x128xbf16> to vector<512x128xbf16>
    %c0_9 = arith.constant 0 : index
    %c0_10 = arith.constant 0 : index
    %33 = vector.load %arg6[%c0_9, %c0_10] : memref<128x128xbf16, #tpu.memory_space<vmem>>, vector<128x128xbf16>
    %cst_11 = arith.constant dense<0.000000e+00> : vector<512x128xf32>
    %34 = tpu.matmul %32, %33, %cst_11 {dimension_numbers = #tpu.dot_dimension_numbers<[1], [0], [0], [1], [0, 0, 1, 1], [], []>} : vector<512x128xbf16>, vector<128x128xbf16>, vector<512x128xf32> -> vector<512x128xf32>
    %c0_12 = arith.constant 0 : index
    %c0_13 = arith.constant 0 : index
    %35 = vector.load %arg7[%c0_12, %c0_13] : memref<1x128xf32, #tpu.memory_space<vmem>>, vector<1x128xf32>
    %36 = vector.broadcast %35 : vector<1x128xf32> to vector<512x128xf32>
    %37 = arith.addf %34, %36 : vector<512x128xf32>
    %cst_14 = arith.constant 0.000000e+00 : f32
    %38 = vector.broadcast %cst_14 : f32 to vector<512x128xf32>
    %39 = arith.maximumf %37, %38 : vector<512x128xf32>
    %40 = arith.truncf %39 : vector<512x128xf32> to vector<512x128xbf16>
    %c0_15 = arith.constant 0 : index
    %c0_16 = arith.constant 0 : index
    %41 = vector.load %arg8[%c0_15, %c0_16] : memref<128x128xbf16, #tpu.memory_space<vmem>>, vector<128x128xbf16>
    %cst_17 = arith.constant dense<0.000000e+00> : vector<512x128xf32>
    %42 = tpu.matmul %40, %41, %cst_17 {dimension_numbers = #tpu.dot_dimension_numbers<[1], [0], [0], [1], [0, 0, 1, 1], [], []>} : vector<512x128xbf16>, vector<128x128xbf16>, vector<512x128xf32> -> vector<512x128xf32>
    %c0_18 = arith.constant 0 : index
    %c0_19 = arith.constant 0 : index
    %43 = vector.load %arg9[%c0_18, %c0_19] : memref<1x128xf32, #tpu.memory_space<vmem>>, vector<1x128xf32>
    %44 = vector.broadcast %43 : vector<1x128xf32> to vector<512x128xf32>
    %45 = arith.addf %42, %44 : vector<512x128xf32>
    %cst_20 = arith.constant 0.000000e+00 : f32
    %46 = vector.broadcast %cst_20 : f32 to vector<512x128xf32>
    %47 = arith.maximumf %45, %46 : vector<512x128xf32>
    %48 = arith.truncf %47 : vector<512x128xf32> to vector<512x128xbf16>
    %49 = vector.shape_cast %48 : vector<512x128xbf16> to vector<32x16x128xbf16>
    %cst_21 = arith.constant dense<0xFF80> : vector<32x128xbf16>
    %50 = vector.multi_reduction <maximumf>, %49, %cst_21 [1] : vector<32x16x128xbf16> to vector<32x128xbf16>
    %51 = arith.extf %50 : vector<32x128xbf16> to vector<32x128xf32>
    %c0_22 = arith.constant 0 : index
    %c0_23 = arith.constant 0 : index
    %52 = vector.load %arg16[%c0_22, %c0_23] : memref<32x128xf32, #tpu.memory_space<vmem>>, vector<32x128xf32>
    tpu.vector_store %arg16[%c0_22, %c0_23], %51 {strides = array<i32>} : memref<32x128xf32, #tpu.memory_space<vmem>>, vector<32x128xf32>,
    %53 = arith.truncf %51 : vector<32x128xf32> to vector<32x128xbf16>
    %c0_24 = arith.constant 0 : index
    %c0_25 = arith.constant 0 : index
    %54 = vector.load %arg10[%c0_24, %c0_25] : memref<128x128xbf16, #tpu.memory_space<vmem>>, vector<128x128xbf16>
    %cst_26 = arith.constant dense<0.000000e+00> : vector<32x128xf32>
    %55 = tpu.matmul %53, %54, %cst_26 {dimension_numbers = #tpu.dot_dimension_numbers<[1], [0], [0], [1], [0, 0, 1, 1], [], []>} : vector<32x128xbf16>, vector<128x128xbf16>, vector<32x128xf32> -> vector<32x128xf32>
    %c0_27 = arith.constant 0 : index
    %c0_28 = arith.constant 0 : index
    %56 = vector.load %arg11[%c0_27, %c0_28] : memref<1x128xf32, #tpu.memory_space<vmem>>, vector<1x128xf32>
    %57 = vector.broadcast %56 : vector<1x128xf32> to vector<32x128xf32>
    %58 = arith.addf %55, %57 : vector<32x128xf32>
    %cst_29 = arith.constant 0.000000e+00 : f32
    %59 = vector.broadcast %cst_29 : f32 to vector<32x128xf32>
    %60 = arith.maximumf %58, %59 : vector<32x128xf32>
    %61 = arith.truncf %60 : vector<32x128xf32> to vector<32x128xbf16>
    %c0_30 = arith.constant 0 : index
    %c0_31 = arith.constant 0 : index
    %62 = vector.load %arg12[%c0_30, %c0_31] : memref<128x128xbf16, #tpu.memory_space<vmem>>, vector<128x128xbf16>
    %cst_32 = arith.constant dense<0.000000e+00> : vector<32x128xf32>
    %63 = tpu.matmul %61, %62, %cst_32 {dimension_numbers = #tpu.dot_dimension_numbers<[1], [0], [0], [1], [0, 0, 1, 1], [], []>} : vector<32x128xbf16>, vector<128x128xbf16>, vector<32x128xf32> -> vector<32x128xf32>
    %c0_33 = arith.constant 0 : index
    %c0_34 = arith.constant 0 : index
    %64 = vector.load %arg13[%c0_33, %c0_34] : memref<1x128xf32, #tpu.memory_space<vmem>>, vector<1x128xf32>
    %65 = vector.broadcast %64 : vector<1x128xf32> to vector<32x128xf32>
    %66 = arith.addf %63, %65 : vector<32x128xf32>
    %cst_35 = arith.constant 0.000000e+00 : f32
    %67 = vector.broadcast %cst_35 : f32 to vector<32x128xf32>
    %68 = arith.maximumf %66, %67 : vector<32x128xf32>
    %69 = arith.truncf %68 : vector<32x128xf32> to vector<32x128xbf16>
    %c0_36 = arith.constant 0 : index
    %c0_37 = arith.constant 0 : index
    %70 = vector.load %arg14[%c0_36, %c0_37] : memref<128x128xbf16, #tpu.memory_space<vmem>>, vector<128x128xbf16>
    %cst_38 = arith.constant dense<0.000000e+00> : vector<32x128xf32>
    %71 = tpu.matmul %69, %70, %cst_38 {dimension_numbers = #tpu.dot_dimension_numbers<[1], [0], [0], [1], [0, 0, 1, 1], [], []>} : vector<32x128xbf16>, vector<128x128xbf16>, vector<32x128xf32> -> vector<32x128xf32>
    %c0_39 = arith.constant 0 : index
    %c0_40 = arith.constant 0 : index
    %72 = vector.load %arg15[%c0_39, %c0_40] : memref<1x128xf32, #tpu.memory_space<vmem>>, vector<1x128xf32>
    %73 = vector.broadcast %72 : vector<1x128xf32> to vector<32x128xf32>
    %74 = arith.addf %71, %73 : vector<32x128xf32>
    %c0_41 = arith.constant 0 : index
    %c0_42 = arith.constant 0 : index
    %75 = vector.load %arg17[%c0_41, %c0_42] : memref<32x128xf32, #tpu.memory_space<vmem>>, vector<32x128xf32>
    tpu.vector_store %arg17[%c0_41, %c0_42], %74 {strides = array<i32>} : memref<32x128xf32, #tpu.memory_space<vmem>>, vector<32x128xf32>,
    %76 = vector.extract_strided_slice %74 {offsets = [0, 0], sizes = [32, 2], strides = [1, 1]} : vector<32x128xf32> to vector<32x2xf32>
    %77 = vector.extract_strided_slice %74 {offsets = [0, 2], sizes = [32, 6], strides = [1, 1]} : vector<32x128xf32> to vector<32x6xf32>
    %78 = vector.extract_strided_slice %74 {offsets = [0, 8], sizes = [32, 4], strides = [1, 1]} : vector<32x128xf32> to vector<32x4xf32>
    %79 = vector.extract_strided_slice %74 {offsets = [0, 12], sizes = [32, 4], strides = [1, 1]} : vector<32x128xf32> to vector<32x4xf32>
    %cst_43 = arith.constant dense<0xFF800000> : vector<32xf32>
    %80 = vector.multi_reduction <maximumf>, %78, %cst_43 [1] : vector<32x4xf32> to vector<32xf32>
    %81 = vector.shape_cast %80 : vector<32xf32> to vector<32x1xf32>
    %82 = tpu.iota {dimensions = array<i32: 1>} : vector<32x4xi32>
    %83 = vector.broadcast %81 : vector<32x1xf32> to vector<32x4xf32>
    %84 = arith.cmpf oge, %78, %83 : vector<32x4xf32>
    %c4_i32 = arith.constant 4 : i32
    %85 = vector.broadcast %c4_i32 : i32 to vector<32x4xi32>
    %86 = arith.select %84, %82, %85 : vector<32x4xi1>, vector<32x4xi32>
    %cst_44 = arith.constant dense<2147483647> : vector<32xi32>
    %87 = vector.multi_reduction <minsi>, %86, %cst_44 [1] : vector<32x4xi32> to vector<32xi32>
    %88 = vector.shape_cast %87 : vector<32xi32> to vector<32x1xi32>
    %89 = vector.broadcast %88 : vector<32x1xi32> to vector<32x4xi32>
    %90 = arith.cmpi eq, %82, %89 : vector<32x4xi32>
    %cst_45 = arith.constant 0.000000e+00 : f32
    %91 = vector.broadcast %cst_45 : f32 to vector<32x4xf32>
    %92 = arith.select %90, %79, %91 : vector<32x4xi1>, vector<32x4xf32>
    %cst_46 = arith.constant dense<0.000000e+00> : vector<32xf32>
    %93 = vector.multi_reduction <add>, %92, %cst_46 [1] : vector<32x4xf32> to vector<32xf32>
    %94 = vector.shape_cast %93 : vector<32xf32> to vector<32x1xf32>
    %95 = arith.sitofp %88 : vector<32x1xi32> to vector<32x1xf32>
    %cst_47 = arith.constant 1.57079637 : f32
    %96 = vector.broadcast %cst_47 : f32 to vector<32x1xf32>
    %97 = arith.mulf %95, %96 : vector<32x1xf32>
    %98 = arith.addf %97, %94 : vector<32x1xf32>
    %99 = vector.extract_strided_slice %77 {offsets = [0, 0], sizes = [32, 3], strides = [1, 1]} : vector<32x6xf32> to vector<32x3xf32>
    %100 = vector.extract_strided_slice %77 {offsets = [0, 3], sizes = [32, 3], strides = [1, 1]} : vector<32x6xf32> to vector<32x3xf32>
    %101 = arith.addf %99, %100 : vector<32x3xf32>
    %102 = vector.extract_strided_slice %77 {offsets = [0, 0], sizes = [32, 3], strides = [1, 1]} : vector<32x6xf32> to vector<32x3xf32>
    %103 = vector.extract_strided_slice %77 {offsets = [0, 3], sizes = [32, 3], strides = [1, 1]} : vector<32x6xf32> to vector<32x3xf32>
    %104 = arith.subf %102, %103 : vector<32x3xf32>
    %cst_48 = arith.constant 5.000000e-01 : f32
    %105 = vector.broadcast %cst_48 : f32 to vector<32x3xf32>
    %106 = arith.mulf %104, %105 : vector<32x3xf32>
    %107 = math.cos %98 : vector<32x1xf32>
    %108 = math.sin %98 : vector<32x1xf32>
    %109 = vector.extract_strided_slice %106 {offsets = [0, 0], sizes = [32, 1], strides = [1, 1]} : vector<32x3xf32> to vector<32x1xf32>
    %110 = vector.extract_strided_slice %106 {offsets = [0, 1], sizes = [32, 1], strides = [1, 1]} : vector<32x3xf32> to vector<32x1xf32>
    %111 = vector.extract_strided_slice %106 {offsets = [0, 2], sizes = [32, 1], strides = [1, 1]} : vector<32x3xf32> to vector<32x1xf32>
    %112 = arith.mulf %109, %107 : vector<32x1xf32>
    %113 = arith.mulf %110, %108 : vector<32x1xf32>
    %114 = arith.addf %112, %113 : vector<32x1xf32>
    %cst_49 = arith.constant 0.000000e+00 : f32
    %115 = vector.broadcast %cst_49 : f32 to vector<32x1xf32>
    %116 = arith.subf %115, %109 : vector<32x1xf32>
    %117 = arith.mulf %116, %108 : vector<32x1xf32>
    %118 = arith.mulf %110, %107 : vector<32x1xf32>
    %119 = arith.addf %117, %118 : vector<32x1xf32>
    %c0_50 = arith.constant 0 : index
    %c0_51 = arith.constant 0 : index
    %120 = vector.load %arg3[%c0_50, %c0_51] : memref<32x3xf32, #tpu.memory_space<vmem>>, vector<32x3xf32>
    %121 = tpu.concatenate %114, %119, %111 in 1 : vector<32x1xf32>, vector<32x1xf32>, vector<32x1xf32> -> vector<32x3xf32>
    %122 = arith.subf %120, %121 : vector<32x3xf32>
    %123 = vector.extract_strided_slice %76 {offsets = [0, 1], sizes = [32, 1], strides = [1, 1]} : vector<32x2xf32> to vector<32x1xf32>
    %124 = vector.extract_strided_slice %76 {offsets = [0, 0], sizes = [32, 1], strides = [1, 1]} : vector<32x2xf32> to vector<32x1xf32>
    %125 = arith.cmpf ogt, %123, %124 : vector<32x1xf32>
    %126 = arith.extui %125 : vector<32x1xi1> to vector<32x1xi32>
    %127 = arith.sitofp %126 : vector<32x1xi32> to vector<32x1xf32>
    %cst_52 = arith.constant 0.000000e+00 : f32
    %128 = vector.broadcast %cst_52 : f32 to vector<32x120xf32>
    %129 = tpu.concatenate %98, %101, %122, %127, %128 in 1 : vector<32x1xf32>, vector<32x3xf32>, vector<32x3xf32>, vector<32x1xf32>, vector<32x120xf32> -> vector<32x128xf32>
    %c0_53 = arith.constant 0 : index
    %c0_54 = arith.constant 0 : index
    %130 = vector.load %arg18[%c0_53, %c0_54] : memref<32x128xf32, #tpu.memory_space<vmem>>, vector<32x128xf32>
    tpu.vector_store %arg18[%c0_53, %c0_54], %129 {strides = array<i32>} : memref<32x128xf32, #tpu.memory_space<vmem>>, vector<32x128xf32>,
    return
  }
  func.func @transform_0(%arg0: i32) -> (i32, i32, i32) {
    %c0_i32 = arith.constant 0 : i32
    %c0_i32_0 = arith.constant 0 : i32
    %c0_i32_1 = arith.constant 0 : i32
    return %arg0, %c0_i32, %c0_i32_0 : i32, i32, i32
  }
  func.func @transform_1(%arg0: i32) -> (i32, i32, i32) {
    %c0_i32 = arith.constant 0 : i32
    %c0_i32_0 = arith.constant 0 : i32
    %c0_i32_1 = arith.constant 0 : i32
    return %arg0, %c0_i32, %c0_i32_0 : i32, i32, i32
  }
  func.func @transform_2(%arg0: i32) -> (i32, i32) {
    %c0_i32 = arith.constant 0 : i32
    %c0_i32_0 = arith.constant 0 : i32
    return %arg0, %c0_i32 : i32, i32
  }
  func.func @transform_3(%arg0: i32) -> (i32, i32) {
    %c0_i32 = arith.constant 0 : i32
    %c0_i32_0 = arith.constant 0 : i32
    %c0_i32_1 = arith.constant 0 : i32
    return %c0_i32, %c0_i32_0 : i32, i32
  }
  func.func @transform_4(%arg0: i32) -> (i32, i32) {
    %c0_i32 = arith.constant 0 : i32
    %c0_i32_0 = arith.constant 0 : i32
    %c0_i32_1 = arith.constant 0 : i32
    return %c0_i32, %c0_i32_0 : i32, i32
  }
  func.func @transform_5(%arg0: i32) -> (i32, i32) {
    %c0_i32 = arith.constant 0 : i32
    %c0_i32_0 = arith.constant 0 : i32
    %c0_i32_1 = arith.constant 0 : i32
    return %c0_i32, %c0_i32_0 : i32, i32
  }
  func.func @transform_6(%arg0: i32) -> (i32, i32) {
    %c0_i32 = arith.constant 0 : i32
    %c0_i32_0 = arith.constant 0 : i32
    %c0_i32_1 = arith.constant 0 : i32
    return %c0_i32, %c0_i32_0 : i32, i32
  }
  func.func @transform_7(%arg0: i32) -> (i32, i32) {
    %c0_i32 = arith.constant 0 : i32
    %c0_i32_0 = arith.constant 0 : i32
    %c0_i32_1 = arith.constant 0 : i32
    return %c0_i32, %c0_i32_0 : i32, i32
  }
  func.func @transform_8(%arg0: i32) -> (i32, i32) {
    %c0_i32 = arith.constant 0 : i32
    %c0_i32_0 = arith.constant 0 : i32
    %c0_i32_1 = arith.constant 0 : i32
    return %c0_i32, %c0_i32_0 : i32, i32
  }
  func.func @transform_9(%arg0: i32) -> (i32, i32) {
    %c0_i32 = arith.constant 0 : i32
    %c0_i32_0 = arith.constant 0 : i32
    %c0_i32_1 = arith.constant 0 : i32
    return %c0_i32, %c0_i32_0 : i32, i32
  }
  func.func @transform_10(%arg0: i32) -> (i32, i32) {
    %c0_i32 = arith.constant 0 : i32
    %c0_i32_0 = arith.constant 0 : i32
    %c0_i32_1 = arith.constant 0 : i32
    return %c0_i32, %c0_i32_0 : i32, i32
  }
  func.func @transform_11(%arg0: i32) -> (i32, i32) {
    %c0_i32 = arith.constant 0 : i32
    %c0_i32_0 = arith.constant 0 : i32
    %c0_i32_1 = arith.constant 0 : i32
    return %c0_i32, %c0_i32_0 : i32, i32
  }
  func.func @transform_12(%arg0: i32) -> (i32, i32) {
    %c0_i32 = arith.constant 0 : i32
    %c0_i32_0 = arith.constant 0 : i32
    %c0_i32_1 = arith.constant 0 : i32
    return %c0_i32, %c0_i32_0 : i32, i32
  }
  func.func @transform_13(%arg0: i32) -> (i32, i32) {
    %c0_i32 = arith.constant 0 : i32
    %c0_i32_0 = arith.constant 0 : i32
    %c0_i32_1 = arith.constant 0 : i32
    return %c0_i32, %c0_i32_0 : i32, i32
  }
  func.func @transform_14(%arg0: i32) -> (i32, i32) {
    %c0_i32 = arith.constant 0 : i32
    %c0_i32_0 = arith.constant 0 : i32
    %c0_i32_1 = arith.constant 0 : i32
    return %c0_i32, %c0_i32_0 : i32, i32
  }
  func.func @transform_15(%arg0: i32) -> (i32, i32) {
    %c0_i32 = arith.constant 0 : i32
    %c0_i32_0 = arith.constant 0 : i32
    return %arg0, %c0_i32 : i32, i32
  }
  func.func @transform_16(%arg0: i32) -> (i32, i32) {
    %c0_i32 = arith.constant 0 : i32
    %c0_i32_0 = arith.constant 0 : i32
    return %arg0, %c0_i32 : i32, i32
  }
  func.func @transform_17(%arg0: i32) -> (i32, i32) {
    %c0_i32 = arith.constant 0 : i32
    %c0_i32_0 = arith.constant 0 : i32
    return %arg0, %c0_i32 : i32, i32
  }
}

</mosaic_0001>

<llo_original>
// kernel: custom-call.8
$region0: #{custom-call.8}
  %s0 = inlined_call_operand.vmem [shape: f32[2,64], index: 0, kind: output, shape index: {}]

// kernel: proposal_module_forward.1
$region0: #{proposal_module_forward.1}
  #allocation0 [shape = 'u32[]', space=smem, size = 0x4, offset = 0x4, fixed_abs, tag = 'smem constant byte address 0x4 - core index']
  #allocation1 [shape = 'u32[72,128]{1,0:T(1,128)}', space=vmem, size = 0x9000, scoped, tag = 'internal scratch']
  %s0 = inlined_call_operand.vmem [shape: bf16[32,16,128], index: 0, kind: input, shape index: {}]
  %s1 = inlined_call_operand.vmem [shape: f32[32,16,3], index: 1, kind: input, shape index: {}]
  %s2 = inlined_call_operand.vmem [shape: f32[32,3], index: 2, kind: input, shape index: {}]
  %s3 = inlined_call_operand.vmem [shape: f32[3,128], index: 3, kind: input, shape index: {}]
  %s4 = inlined_call_operand.vmem [shape: f32[1,128], index: 4, kind: input, shape index: {}]
  %s5 = inlined_call_operand.vmem [shape: bf16[128,128], index: 5, kind: input, shape index: {}]
  %s6 = inlined_call_operand.vmem [shape: f32[1,128], index: 6, kind: input, shape index: {}]
  %s7 = inlined_call_operand.vmem [shape: bf16[128,128], index: 7, kind: input, shape index: {}]
  %s8 = inlined_call_operand.vmem [shape: f32[1,128], index: 8, kind: input, shape index: {}]
  %s9 = inlined_call_operand.vmem [shape: bf16[128,128], index: 9, kind: input, shape index: {}]
  %s10 = inlined_call_operand.vmem [shape: f32[1,128], index: 10, kind: input, shape index: {}]
  %s11 = inlined_call_operand.vmem [shape: bf16[128,128], index: 11, kind: input, shape index: {}]
  %s12 = inlined_call_operand.vmem [shape: f32[1,128], index: 12, kind: input, shape index: {}]
  %s13 = inlined_call_operand.vmem [shape: bf16[128,128], index: 13, kind: input, shape index: {}]
  %s14 = inlined_call_operand.vmem [shape: f32[1,128], index: 14, kind: input, shape index: {}]
  %s15 = inlined_call_operand.vmem [shape: f32[32,128], index: 15, kind: output, shape index: {0}]
  %s16 = inlined_call_operand.vmem [shape: f32[32,128], index: 16, kind: output, shape index: {1}]
  %s17 = inlined_call_operand.vmem [shape: f32[32,128], index: 17, kind: output, shape index: {2}]
  %18 = xla_tuple %s15, %s16, %s17
  %s19 = sld [smem:[#allocation0]]
  $region86: #{proposal_module_forward.1} parent=0
    _
  %s21 = ssub.s32 1, %s19
  %s22 = scalar_select 0, %s21, %s19
  // Predicated region
  $region2: #{proposal_module_forward.1} parent=0 // pred_check
    _
  $region3: #{proposal_module_forward.1} parent=0 // pred_check_branch
    %24 = sbr.rel (0) target = $region5
  $region4: #{proposal_module_forward.1} parent=0 // pred_region
    _
  $region5: #{proposal_module_forward.1} parent=0 // pred_fallthru
    _
  // Predicated region
  $region6: #{proposal_module_forward.1} parent=0 // pred_check
    _
  $region7: #{proposal_module_forward.1} parent=0 // pred_check_branch
    %26 = sbr.rel (0) target = $region9
  $region8: #{proposal_module_forward.1} parent=0 // pred_region
    _
  $region9: #{proposal_module_forward.1} parent=0 // pred_fallthru
    _
  // Predicated region
  $region10: #{proposal_module_forward.1} parent=0 // pred_check
    _
  $region11: #{proposal_module_forward.1} parent=0 // pred_check_branch
    %28 = sbr.rel (0) target = $region13
  $region12: #{proposal_module_forward.1} parent=0 // pred_region
    _
  $region13: #{proposal_module_forward.1} parent=0 // pred_fallthru
    _
  // Predicated region
  $region14: #{proposal_module_forward.1} parent=0 // pred_check
    _
  $region15: #{proposal_module_forward.1} parent=0 // pred_check_branch
    %30 = sbr.rel (0) target = $region17
  $region16: #{proposal_module_forward.1} parent=0 // pred_region
    _
  $region17: #{proposal_module_forward.1} parent=0 // pred_fallthru
    _
  // Predicated region
  $region18: #{proposal_module_forward.1} parent=0 // pred_check
    _
  $region19: #{proposal_module_forward.1} parent=0 // pred_check_branch
    %32 = sbr.rel (0) target = $region21
  $region20: #{proposal_module_forward.1} parent=0 // pred_region
    _
  $region21: #{proposal_module_forward.1} parent=0 // pred_fallthru
    _
  // Predicated region
  $region22: #{proposal_module_forward.1} parent=0 // pred_check
    _
  $region23: #{proposal_module_forward.1} parent=0 // pred_check_branch
    %34 = sbr.rel (0) target = $region25
  $region24: #{proposal_module_forward.1} parent=0 // pred_region
    _
  $region25: #{proposal_module_forward.1} parent=0 // pred_fallthru
    _
  // Predicated region
  $region26: #{proposal_module_forward.1} parent=0 // pred_check
    _
  $region27: #{proposal_module_forward.1} parent=0 // pred_check_branch
    %36 = sbr.rel (0) target = $region29
  $region28: #{proposal_module_forward.1} parent=0 // pred_region
    _
  $region29: #{proposal_module_forward.1} parent=0 // pred_fallthru
    _
  // Predicated region
  $region30: #{proposal_module_forward.1} parent=0 // pred_check
    _
  $region31: #{proposal_module_forward.1} parent=0 // pred_check_branch
    %38 = sbr.rel (0) target = $region33
  $region32: #{proposal_module_forward.1} parent=0 // pred_region
    _
  $region33: #{proposal_module_forward.1} parent=0 // pred_fallthru
    _
  // Predicated region
  $region34: #{proposal_module_forward.1} parent=0 // pred_check
    _
  $region35: #{proposal_module_forward.1} parent=0 // pred_check_branch
    %40 = sbr.rel (0) target = $region37
  $region36: #{proposal_module_forward.1} parent=0 // pred_region
    _
  $region37: #{proposal_module_forward.1} parent=0 // pred_fallthru
    _
  // Predicated region
  $region38: #{proposal_module_forward.1} parent=0 // pred_check
    _
  $region39: #{proposal_module_forward.1} parent=0 // pred_check_branch
    %42 = sbr.rel (0) target = $region41
  $region40: #{proposal_module_forward.1} parent=0 // pred_region
    _
  $region41: #{proposal_module_forward.1} parent=0 // pred_fallthru
    _
  // Predicated region
  $region42: #{proposal_module_forward.1} parent=0 // pred_check
    _
  $region43: #{proposal_module_forward.1} parent=0 // pred_check_branch
    %44 = sbr.rel (0) target = $region45
  $region44: #{proposal_module_forward.1} parent=0 // pred_region
    _
  $region45: #{proposal_module_forward.1} parent=0 // pred_fallthru
    _
  // Predicated region
  $region46: #{proposal_module_forward.1} parent=0 // pred_check
    _
  $region47: #{proposal_module_forward.1} parent=0 // pred_check_branch
    %46 = sbr.rel (0) target = $region49
  $region48: #{proposal_module_forward.1} parent=0 // pred_region
    _
  $region49: #{proposal_module_forward.1} parent=0 // pred_fallthru
    _
  // Predicated region
  $region50: #{proposal_module_forward.1} parent=0 // pred_check
    _
  $region51: #{proposal_module_forward.1} parent=0 // pred_check_branch
    %48 = sbr.rel (0) target = $region53
  $region52: #{proposal_module_forward.1} parent=0 // pred_region
    _
  $region53: #{proposal_module_forward.1} parent=0 // pred_fallthru
    _
  // Predicated region
  $region54: #{proposal_module_forward.1} parent=0 // pred_check
    _
  $region55: #{proposal_module_forward.1} parent=0 // pred_check_branch
    %50 = sbr.rel (0) target = $region57
  $region56: #{proposal_module_forward.1} parent=0 // pred_region
    _
  $region57: #{proposal_module_forward.1} parent=0 // pred_fallthru
    _
  // Predicated region
  $region58: #{proposal_module_forward.1} parent=0 // pred_check
    _
  $region59: #{proposal_module_forward.1} parent=0 // pred_check_branch
    %52 = sbr.rel (0) target = $region61
  $region60: #{proposal_module_forward.1} parent=0 // pred_region
    _
  $region61: #{proposal_module_forward.1} parent=0 // pred_fallthru
    _
  %v53 = vld [vmem:[%s1] sm:$0xff]
  %v54 = vld [vmem:[%s1 + $0x8] sm:$0xff]
  %v55 = vld [vmem:[%s1 + $0x10] sm:$0xff]
  %v56 = vld [vmem:[%s1 + $0x18] sm:$0xff]
  %v57 = vld [vmem:[%s1 + $0x20] sm:$0xff]
  %v58 = vld [vmem:[%s1 + $0x28] sm:$0xff]
  %v59 = vld [vmem:[%s1 + $0x30] sm:$0xff]
  %v60 = vld [vmem:[%s1 + $0x38] sm:$0xff]
  %v61 = vld [vmem:[%s1 + $0x40] sm:$0xff]
  %v62 = vld [vmem:[%s1 + $0x48] sm:$0xff]
  %v63 = vld [vmem:[%s1 + $0x50] sm:$0xff]
  %v64 = vld [vmem:[%s1 + $0x58] sm:$0xff]
  %v65 = vld [vmem:[%s1 + $0x60] sm:$0xff]
  %v66 = vld [vmem:[%s1 + $0x68] sm:$0xff]
  %v67 = vld [vmem:[%s1 + $0x70] sm:$0xff]
  %v68 = vld [vmem:[%s1 + $0x78] sm:$0xff]
  %v69 = vld [vmem:[%s1 + $0x80] sm:$0xff]
  %v70 = vld [vmem:[%s1 + $0x88] sm:$0xff]
  %v71 = vld [vmem:[%s1 + $0x90] sm:$0xff]
  %v72 = vld [vmem:[%s1 + $0x98] sm:$0xff]
  %v73 = vld [vmem:[%s1 + $0xa0] sm:$0xff]
  %v74 = vld [vmem:[%s1 + $0xa8] sm:$0xff]
  %v75 = vld [vmem:[%s1 + $0xb0] sm:$0xff]
  %v76 = vld [vmem:[%s1 + $0xb8] sm:$0xff]
  %v77 = vld [vmem:[%s1 + $0xc0] sm:$0xff]
  %v78 = vld [vmem:[%s1 + $0xc8] sm:$0xff]
  %v79 = vld [vmem:[%s1 + $0xd0] sm:$0xff]
  %v80 = vld [vmem:[%s1 + $0xd8] sm:$0xff]
  %v81 = vld [vmem:[%s1 + $0xe0] sm:$0xff]
  %v82 = vld [vmem:[%s1 + $0xe8] sm:$0xff]
  %v83 = vld [vmem:[%s1 + $0xf0] sm:$0xff]
  %v84 = vld [vmem:[%s1 + $0xf8] sm:$0xff]
  %v85 = vld [vmem:[%s1 + $0x100] sm:$0xff]
  %v86 = vld [vmem:[%s1 + $0x108] sm:$0xff]
  %v87 = vld [vmem:[%s1 + $0x110] sm:$0xff]
  %v88 = vld [vmem:[%s1 + $0x118] sm:$0xff]
  %v89 = vld [vmem:[%s1 + $0x120] sm:$0xff]
  %v90 = vld [vmem:[%s1 + $0x128] sm:$0xff]
  %v91 = vld [vmem:[%s1 + $0x130] sm:$0xff]
  %v92 = vld [vmem:[%s1 + $0x138] sm:$0xff]
  %v93 = vld [vmem:[%s1 + $0x140] sm:$0xff]
  %v94 = vld [vmem:[%s1 + $0x148] sm:$0xff]
  %v95 = vld [vmem:[%s1 + $0x150] sm:$0xff]
  %v96 = vld [vmem:[%s1 + $0x158] sm:$0xff]
  %v97 = vld [vmem:[%s1 + $0x160] sm:$0xff]
  %v98 = vld [vmem:[%s1 + $0x168] sm:$0xff]
  %v99 = vld [vmem:[%s1 + $0x170] sm:$0xff]
  %v100 = vld [vmem:[%s1 + $0x178] sm:$0xff]
  %v101 = vld [vmem:[%s1 + $0x180] sm:$0xff]
  %v102 = vld [vmem:[%s1 + $0x188] sm:$0xff]
  %v103 = vld [vmem:[%s1 + $0x190] sm:$0xff]
  %v104 = vld [vmem:[%s1 + $0x198] sm:$0xff]
  %v105 = vld [vmem:[%s1 + $0x1a0] sm:$0xff]
  %v106 = vld [vmem:[%s1 + $0x1a8] sm:$0xff]
  %v107 = vld [vmem:[%s1 + $0x1b0] sm:$0xff]
  %v108 = vld [vmem:[%s1 + $0x1b8] sm:$0xff]
  %v109 = vld [vmem:[%s1 + $0x1c0] sm:$0xff]
  %v110 = vld [vmem:[%s1 + $0x1c8] sm:$0xff]
  %v111 = vld [vmem:[%s1 + $0x1d0] sm:$0xff]
  %v112 = vld [vmem:[%s1 + $0x1d8] sm:$0xff]
  %v113 = vld [vmem:[%s1 + $0x1e0] sm:$0xff]
  %v114 = vld [vmem:[%s1 + $0x1e8] sm:$0xff]
  %v115 = vld [vmem:[%s1 + $0x1f0] sm:$0xff]
  %v116 = vld [vmem:[%s1 + $0x1f8] sm:$0xff]
  %v117 = vld [vmem:[%s3] sm:$0x7]
  %119 = vset.pattern.permute.xlu0 0
  %120 = vperm.xlu0 %119, %v53
  %v121 = vpop.permute.xlu0 %120
  %124 = vset.pattern.permute.xlu0 0
  %125 = vperm.xlu0 %124, %v54
  %v126 = vpop.permute.xlu0 %125
  %129 = vset.pattern.permute.xlu0 0
  %130 = vperm.xlu0 %129, %v55
  %v131 = vpop.permute.xlu0 %130
  %134 = vset.pattern.permute.xlu0 0
  %135 = vperm.xlu0 %134, %v56
  %v136 = vpop.permute.xlu0 %135
  %139 = vset.pattern.permute.xlu0 0
  %140 = vperm.xlu0 %139, %v57
  %v141 = vpop.permute.xlu0 %140
  %144 = vset.pattern.permute.xlu0 0
  %145 = vperm.xlu0 %144, %v58
  %v146 = vpop.permute.xlu0 %145
  %149 = vset.pattern.permute.xlu0 0
  %150 = vperm.xlu0 %149, %v59
  %v151 = vpop.permute.xlu0 %150
  %154 = vset.pattern.permute.xlu0 0
  %155 = vperm.xlu0 %154, %v60
  %v156 = vpop.permute.xlu0 %155
  %159 = vset.pattern.permute.xlu0 0
  %160 = vperm.xlu0 %159, %v61
  %v161 = vpop.permute.xlu0 %160
  %164 = vset.pattern.permute.xlu0 0
  %165 = vperm.xlu0 %164, %v62
  %v166 = vpop.permute.xlu0 %165
  %169 = vset.pattern.permute.xlu0 0
  %170 = vperm.xlu0 %169, %v63
  %v171 = vpop.permute.xlu0 %170
  %174 = vset.pattern.permute.xlu0 0
  %175 = vperm.xlu0 %174, %v64
  %v176 = vpop.permute.xlu0 %175
  %179 = vset.pattern.permute.xlu0 0
  %180 = vperm.xlu0 %179, %v65
  %v181 = vpop.permute.xlu0 %180
  %184 = vset.pattern.permute.xlu0 0
  %185 = vperm.xlu0 %184, %v66
  %v186 = vpop.permute.xlu0 %185
  %189 = vset.pattern.permute.xlu0 0
  %190 = vperm.xlu0 %189, %v67
  %v191 = vpop.permute.xlu0 %190
  %194 = vset.pattern.permute.xlu0 0
  %195 = vperm.xlu0 %194, %v68
  %v196 = vpop.permute.xlu0 %195
  %199 = vset.pattern.permute.xlu0 0
  %200 = vperm.xlu0 %199, %v69
  %v201 = vpop.permute.xlu0 %200
  %204 = vset.pattern.permute.xlu0 0
  %205 = vperm.xlu0 %204, %v70
  %v206 = vpop.permute.xlu0 %205
  %209 = vset.pattern.permute.xlu0 0
  %210 = vperm.xlu0 %209, %v71
  %v211 = vpop.permute.xlu0 %210
  %214 = vset.pattern.permute.xlu0 0
  %215 = vperm.xlu0 %214, %v72
  %v216 = vpop.permute.xlu0 %215
  %219 = vset.pattern.permute.xlu0 0
  %220 = vperm.xlu0 %219, %v73
  %v221 = vpop.permute.xlu0 %220
  %224 = vset.pattern.permute.xlu0 0
  %225 = vperm.xlu0 %224, %v74
  %v226 = vpop.permute.xlu0 %225
  %229 = vset.pattern.permute.xlu0 0
  %230 = vperm.xlu0 %229, %v75
  %v231 = vpop.permute.xlu0 %230
  %234 = vset.pattern.permute.xlu0 0
  %235 = vperm.xlu0 %234, %v76
  %v236 = vpop.permute.xlu0 %235
  %239 = vset.pattern.permute.xlu0 0
  %240 = vperm.xlu0 %239, %v77
  %v241 = vpop.permute.xlu0 %240
  %244 = vset.pattern.permute.xlu0 0
  %245 = vperm.xlu0 %244, %v78
  %v246 = vpop.permute.xlu0 %245
  %249 = vset.pattern.permute.xlu0 0
  %250 = vperm.xlu0 %249, %v79
  %v251 = vpop.permute.xlu0 %250
  %254 = vset.pattern.permute.xlu0 0
  %255 = vperm.xlu0 %254, %v80
  %v256 = vpop.permute.xlu0 %255
  %259 = vset.pattern.permute.xlu0 0
  %260 = vperm.xlu0 %259, %v81
  %v261 = vpop.permute.xlu0 %260
  %264 = vset.pattern.permute.xlu0 0
  %265 = vperm.xlu0 %264, %v82
  %v266 = vpop.permute.xlu0 %265
  %269 = vset.pattern.permute.xlu0 0
  %270 = vperm.xlu0 %269, %v83
  %v271 = vpop.permute.xlu0 %270
  %274 = vset.pattern.permute.xlu0 0
  %275 = vperm.xlu0 %274, %v84
  %v276 = vpop.permute.xlu0 %275
  %279 = vset.pattern.permute.xlu0 0
  %280 = vperm.xlu0 %279, %v85
  %v281 = vpop.permute.xlu0 %280
  %284 = vset.pattern.permute.xlu0 0
  %285 = vperm.xlu0 %284, %v86
  %v286 = vpop.permute.xlu0 %285
  %289 = vset.pattern.permute.xlu0 0
  %290 = vperm.xlu0 %289, %v87
  %v291 = vpop.permute.xlu0 %290
  %294 = vset.pattern.permute.xlu0 0
  %295 = vperm.xlu0 %294, %v88
  %v296 = vpop.permute.xlu0 %295
  %299 = vset.pattern.permute.xlu0 0
  %300 = vperm.xlu0 %299, %v89
  %v301 = vpop.permute.xlu0 %300
  %304 = vset.pattern.permute.xlu0 0
  %305 = vperm.xlu0 %304, %v90
  %v306 = vpop.permute.xlu0 %305
  %309 = vset.pattern.permute.xlu0 0
  %310 = vperm.xlu0 %309, %v91
  %v311 = vpop.permute.xlu0 %310
  %314 = vset.pattern.permute.xlu0 0
  %315 = vperm.xlu0 %314, %v92
  %v316 = vpop.permute.xlu0 %315
  %319 = vset.pattern.permute.xlu0 0
  %320 = vperm.xlu0 %319, %v93
  %v321 = vpop.permute.xlu0 %320
  %324 = vset.pattern.permute.xlu0 0
  %325 = vperm.xlu0 %324, %v94
  %v326 = vpop.permute.xlu0 %325
  %329 = vset.pattern.permute.xlu0 0
  %330 = vperm.xlu0 %329, %v95
  %v331 = vpop.permute.xlu0 %330
  %334 = vset.pattern.permute.xlu0 0
  %335 = vperm.xlu0 %334, %v96
  %v336 = vpop.permute.xlu0 %335
  %339 = vset.pattern.permute.xlu0 0
  %340 = vperm.xlu0 %339, %v97
  %v341 = vpop.permute.xlu0 %340
  %344 = vset.pattern.permute.xlu0 0
  %345 = vperm.xlu0 %344, %v98
  %v346 = vpop.permute.xlu0 %345
  %349 = vset.pattern.permute.xlu0 0
  %350 = vperm.xlu0 %349, %v99
  %v351 = vpop.permute.xlu0 %350
  %354 = vset.pattern.permute.xlu0 0
  %355 = vperm.xlu0 %354, %v100
  %v356 = vpop.permute.xlu0 %355
  %359 = vset.pattern.permute.xlu0 0
  %360 = vperm.xlu0 %359, %v101
  %v361 = vpop.permute.xlu0 %360
  %364 = vset.pattern.permute.xlu0 0
  %365 = vperm.xlu0 %364, %v102
  %v366 = vpop.permute.xlu0 %365
  %369 = vset.pattern.permute.xlu0 0
  %370 = vperm.xlu0 %369, %v103
  %v371 = vpop.permute.xlu0 %370
  %374 = vset.pattern.permute.xlu0 0
  %375 = vperm.xlu0 %374, %v104
  %v376 = vpop.permute.xlu0 %375
  %379 = vset.pattern.permute.xlu0 0
  %380 = vperm.xlu0 %379, %v105
  %v381 = vpop.permute.xlu0 %380
  %384 = vset.pattern.permute.xlu0 0
  %385 = vperm.xlu0 %384, %v106
  %v386 = vpop.permute.xlu0 %385
  %389 = vset.pattern.permute.xlu0 0
  %390 = vperm.xlu0 %389, %v107
  %v391 = vpop.permute.xlu0 %390
  %394 = vset.pattern.permute.xlu0 0
  %395 = vperm.xlu0 %394, %v108
  %v396 = vpop.permute.xlu0 %395
  %399 = vset.pattern.permute.xlu0 0
  %400 = vperm.xlu0 %399, %v109
  %v401 = vpop.permute.xlu0 %400
  %404 = vset.pattern.permute.xlu0 0
  %405 = vperm.xlu0 %404, %v110
  %v406 = vpop.permute.xlu0 %405
  %409 = vset.pattern.permute.xlu0 0
  %410 = vperm.xlu0 %409, %v111
  %v411 = vpop.permute.xlu0 %410
  %414 = vset.pattern.permute.xlu0 0
  %415 = vperm.xlu0 %414, %v112
  %v416 = vpop.permute.xlu0 %415
  %419 = vset.pattern.permute.xlu0 0
  %420 = vperm.xlu0 %419, %v113
  %v421 = vpop.permute.xlu0 %420
  %424 = vset.pattern.permute.xlu0 0
  %425 = vperm.xlu0 %424, %v114
  %v426 = vpop.permute.xlu0 %425
  %429 = vset.pattern.permute.xlu0 0
  %430 = vperm.xlu0 %429, %v115
  %v431 = vpop.permute.xlu0 %430
  %434 = vset.pattern.permute.xlu0 0
  %435 = vperm.xlu0 %434, %v116
  %v436 = vpop.permute.xlu0 %435
  %v438 = vperm.slane %v117, 0
  %v439 = vmul.f32 %v121, %v438
  %v440 = vmul.f32 %v126, %v438
  %v441 = vmul.f32 %v131, %v438
  %v442 = vmul.f32 %v136, %v438
  %v443 = vmul.f32 %v141, %v438
  %v444 = vmul.f32 %v146, %v438
  %v445 = vmul.f32 %v151, %v438
  %v446 = vmul.f32 %v156, %v438
  %v447 = vmul.f32 %v161, %v438
  %v448 = vmul.f32 %v166, %v438
  %v449 = vmul.f32 %v171, %v438
  %v450 = vmul.f32 %v176, %v438
  %v451 = vmul.f32 %v181, %v438
  %v452 = vmul.f32 %v186, %v438
  %v453 = vmul.f32 %v191, %v438
  %v454 = vmul.f32 %v196, %v438
  %v455 = vmul.f32 %v201, %v438
  %v456 = vmul.f32 %v206, %v438
  %v457 = vmul.f32 %v211, %v438
  %v458 = vmul.f32 %v216, %v438
  %v459 = vmul.f32 %v221, %v438
  %v460 = vmul.f32 %v226, %v438
  %v461 = vmul.f32 %v231, %v438
  %v462 = vmul.f32 %v236, %v438
  %v463 = vmul.f32 %v241, %v438
  %v464 = vmul.f32 %v246, %v438
  %v465 = vmul.f32 %v251, %v438
  %v466 = vmul.f32 %v256, %v438
  %v467 = vmul.f32 %v261, %v438
  %v468 = vmul.f32 %v266, %v438
  %v469 = vmul.f32 %v271, %v438
  %v470 = vmul.f32 %v276, %v438
  %v471 = vmul.f32 %v281, %v438
  %v472 = vmul.f32 %v286, %v438
  %v473 = vmul.f32 %v291, %v438
  %v474 = vmul.f32 %v296, %v438
  %v475 = vmul.f32 %v301, %v438
  %v476 = vmul.f32 %v306, %v438
  %v477 = vmul.f32 %v311, %v438
  %v478 = vmul.f32 %v316, %v438
  %v479 = vmul.f32 %v321, %v438
  %v480 = vmul.f32 %v326, %v438
  %v481 = vmul.f32 %v331, %v438
  %v482 = vmul.f32 %v336, %v438
  %v483 = vmul.f32 %v341, %v438
  %v484 = vmul.f32 %v346, %v438
  %v485 = vmul.f32 %v351, %v438
  %v486 = vmul.f32 %v356, %v438
  %v487 = vmul.f32 %v361, %v438
  %v488 = vmul.f32 %v366, %v438
  %v489 = vmul.f32 %v371, %v438
  %v490 = vmul.f32 %v376, %v438
  %v491 = vmul.f32 %v381, %v438
  %v492 = vmul.f32 %v386, %v438
  %v493 = vmul.f32 %v391, %v438
  %v494 = vmul.f32 %v396, %v438
  %v495 = vmul.f32 %v401, %v438
  %v496 = vmul.f32 %v406, %v438
  %v497 = vmul.f32 %v411, %v438
  %v498 = vmul.f32 %v416, %v438
  %v499 = vmul.f32 %v421, %v438
  %v500 = vmul.f32 %v426, %v438
  %v501 = vmul.f32 %v431, %v438
  %v502 = vmul.f32 %v436, %v438
  %503 = vset.pattern.permute.xlu0 1
  %504 = vperm.xlu0 %503, %v53
  %v505 = vpop.permute.xlu0 %504
  %507 = vset.pattern.permute.xlu0 1
  %508 = vperm.xlu0 %507, %v54
  %v509 = vpop.permute.xlu0 %508
  %511 = vset.pattern.permute.xlu0 1
  %512 = vperm.xlu0 %511, %v55
  %v513 = vpop.permute.xlu0 %512
  %515 = vset.pattern.permute.xlu0 1
  %516 = vperm.xlu0 %515, %v56
  %v517 = vpop.permute.xlu0 %516
  %519 = vset.pattern.permute.xlu0 1
  %520 = vperm.xlu0 %519, %v57
  %v521 = vpop.permute.xlu0 %520
  %523 = vset.pattern.permute.xlu0 1
  %524 = vperm.xlu0 %523, %v58
  %v525 = vpop.permute.xlu0 %524
  %527 = vset.pattern.permute.xlu0 1
  %528 = vperm.xlu0 %527, %v59
  %v529 = vpop.permute.xlu0 %528
  %531 = vset.pattern.permute.xlu0 1
  %532 = vperm.xlu0 %531, %v60
  %v533 = vpop.permute.xlu0 %532
  %535 = vset.pattern.permute.xlu0 1
  %536 = vperm.xlu0 %535, %v61
  %v537 = vpop.permute.xlu0 %536
  %539 = vset.pattern.permute.xlu0 1
  %540 = vperm.xlu0 %539, %v62
  %v541 = vpop.permute.xlu0 %540
  %543 = vset.pattern.permute.xlu0 1
  %544 = vperm.xlu0 %543, %v63
  %v545 = vpop.permute.xlu0 %544
  %547 = vset.pattern.permute.xlu0 1
  %548 = vperm.xlu0 %547, %v64
  %v549 = vpop.permute.xlu0 %548
  %551 = vset.pattern.permute.xlu0 1
  %552 = vperm.xlu0 %551, %v65
  %v553 = vpop.permute.xlu0 %552
  %555 = vset.pattern.permute.xlu0 1
  %556 = vperm.xlu0 %555, %v66
  %v557 = vpop.permute.xlu0 %556
  %559 = vset.pattern.permute.xlu0 1
  %560 = vperm.xlu0 %559, %v67
  %v561 = vpop.permute.xlu0 %560
  %563 = vset.pattern.permute.xlu0 1
  %564 = vperm.xlu0 %563, %v68
  %v565 = vpop.permute.xlu0 %564
  %567 = vset.pattern.permute.xlu0 1
  %568 = vperm.xlu0 %567, %v69
  %v569 = vpop.permute.xlu0 %568
  %571 = vset.pattern.permute.xlu0 1
  %572 = vperm.xlu0 %571, %v70
  %v573 = vpop.permute.xlu0 %572
  %575 = vset.pattern.permute.xlu0 1
  %576 = vperm.xlu0 %575, %v71
  %v577 = vpop.permute.xlu0 %576
  %579 = vset.pattern.permute.xlu0 1
  %580 = vperm.xlu0 %579, %v72
  %v581 = vpop.permute.xlu0 %580
  %583 = vset.pattern.permute.xlu0 1
  %584 = vperm.xlu0 %583, %v73
  %v585 = vpop.permute.xlu0 %584
  %587 = vset.pattern.permute.xlu0 1
  %588 = vperm.xlu0 %587, %v74
  %v589 = vpop.permute.xlu0 %588
  %591 = vset.pattern.permute.xlu0 1
  %592 = vperm.xlu0 %591, %v75
  %v593 = vpop.permute.xlu0 %592
  %595 = vset.pattern.permute.xlu0 1
  %596 = vperm.xlu0 %595, %v76
  %v597 = vpop.permute.xlu0 %596
  %599 = vset.pattern.permute.xlu0 1
  %600 = vperm.xlu0 %599, %v77
  %v601 = vpop.permute.xlu0 %600
  %603 = vset.pattern.permute.xlu0 1
  %604 = vperm.xlu0 %603, %v78
  %v605 = vpop.permute.xlu0 %604
  %607 = vset.pattern.permute.xlu0 1
  %608 = vperm.xlu0 %607, %v79
  %v609 = vpop.permute.xlu0 %608
  %611 = vset.pattern.permute.xlu0 1
  %612 = vperm.xlu0 %611, %v80
  %v613 = vpop.permute.xlu0 %612
  %615 = vset.pattern.permute.xlu0 1
  %616 = vperm.xlu0 %615, %v81
  %v617 = vpop.permute.xlu0 %616
  %619 = vset.pattern.permute.xlu0 1
  %620 = vperm.xlu0 %619, %v82
  %v621 = vpop.permute.xlu0 %620
  %623 = vset.pattern.permute.xlu0 1
  %624 = vperm.xlu0 %623, %v83
  %v625 = vpop.permute.xlu0 %624
  %627 = vset.pattern.permute.xlu0 1
  %628 = vperm.xlu0 %627, %v84
  %v629 = vpop.permute.xlu0 %628
  %631 = vset.pattern.permute.xlu0 1
  %632 = vperm.xlu0 %631, %v85
  %v633 = vpop.permute.xlu0 %632
  %635 = vset.pattern.permute.xlu0 1
  %636 = vperm.xlu0 %635, %v86
  %v637 = vpop.permute.xlu0 %636
  %639 = vset.pattern.permute.xlu0 1
  %640 = vperm.xlu0 %639, %v87
  %v641 = vpop.permute.xlu0 %640
  %643 = vset.pattern.permute.xlu0 1
  %644 = vperm.xlu0 %643, %v88
  %v645 = vpop.permute.xlu0 %644
  %647 = vset.pattern.permute.xlu0 1
  %648 = vperm.xlu0 %647, %v89
  %v649 = vpop.permute.xlu0 %648
  %651 = vset.pattern.permute.xlu0 1
  %652 = vperm.xlu0 %651, %v90
  %v653 = vpop.permute.xlu0 %652
  %655 = vset.pattern.permute.xlu0 1
  %656 = vperm.xlu0 %655, %v91
  %v657 = vpop.permute.xlu0 %656
  %659 = vset.pattern.permute.xlu0 1
  %660 = vperm.xlu0 %659, %v92
  %v661 = vpop.permute.xlu0 %660
  %663 = vset.pattern.permute.xlu0 1
  %664 = vperm.xlu0 %663, %v93
  %v665 = vpop.permute.xlu0 %664
  %667 = vset.pattern.permute.xlu0 1
  %668 = vperm.xlu0 %667, %v94
  %v669 = vpop.permute.xlu0 %668
  %671 = vset.pattern.permute.xlu0 1
  %672 = vperm.xlu0 %671, %v95
  %v673 = vpop.permute.xlu0 %672
  %675 = vset.pattern.permute.xlu0 1
  %676 = vperm.xlu0 %675, %v96
  %v677 = vpop.permute.xlu0 %676
  %679 = vset.pattern.permute.xlu0 1
  %680 = vperm.xlu0 %679, %v97
  %v681 = vpop.permute.xlu0 %680
  %683 = vset.pattern.permute.xlu0 1
  %684 = vperm.xlu0 %683, %v98
  %v685 = vpop.permute.xlu0 %684
  %687 = vset.pattern.permute.xlu0 1
  %688 = vperm.xlu0 %687, %v99
  %v689 = vpop.permute.xlu0 %688
  %691 = vset.pattern.permute.xlu0 1
  %692 = vperm.xlu0 %691, %v100
  %v693 = vpop.permute.xlu0 %692
  %695 = vset.pattern.permute.xlu0 1
  %696 = vperm.xlu0 %695, %v101
  %v697 = vpop.permute.xlu0 %696
  %699 = vset.pattern.permute.xlu0 1
  %700 = vperm.xlu0 %699, %v102
  %v701 = vpop.permute.xlu0 %700
  %703 = vset.pattern.permute.xlu0 1
  %704 = vperm.xlu0 %703, %v103
  %v705 = vpop.permute.xlu0 %704
  %707 = vset.pattern.permute.xlu0 1
  %708 = vperm.xlu0 %707, %v104
  %v709 = vpop.permute.xlu0 %708
  %711 = vset.pattern.permute.xlu0 1
  %712 = vperm.xlu0 %711, %v105
  %v713 = vpop.permute.xlu0 %712
  %715 = vset.pattern.permute.xlu0 1
  %716 = vperm.xlu0 %715, %v106
  %v717 = vpop.permute.xlu0 %716
  %719 = vset.pattern.permute.xlu0 1
  %720 = vperm.xlu0 %719, %v107
  %v721 = vpop.permute.xlu0 %720
  %723 = vset.pattern.permute.xlu0 1
  %724 = vperm.xlu0 %723, %v108
  %v725 = vpop.permute.xlu0 %724
  %727 = vset.pattern.permute.xlu0 1
  %728 = vperm.xlu0 %727, %v109
  %v729 = vpop.permute.xlu0 %728
  %731 = vset.pattern.permute.xlu0 1
  %732 = vperm.xlu0 %731, %v110
  %v733 = vpop.permute.xlu0 %732
  %735 = vset.pattern.permute.xlu0 1
  %736 = vperm.xlu0 %735, %v111
  %v737 = vpop.permute.xlu0 %736
  %739 = vset.pattern.permute.xlu0 1
  %740 = vperm.xlu0 %739, %v112
  %v741 = vpop.permute.xlu0 %740
  %743 = vset.pattern.permute.xlu0 1
  %744 = vperm.xlu0 %743, %v113
  %v745 = vpop.permute.xlu0 %744
  %747 = vset.pattern.permute.xlu0 1
  %748 = vperm.xlu0 %747, %v114
  %v749 = vpop.permute.xlu0 %748
  %751 = vset.pattern.permute.xlu0 1
  %752 = vperm.xlu0 %751, %v115
  %v753 = vpop.permute.xlu0 %752
  %755 = vset.pattern.permute.xlu0 1
  %756 = vperm.xlu0 %755, %v116
  %v757 = vpop.permute.xlu0 %756
  %v759 = vperm.slane %v117, 1
  %v760 = vmul.f32 %v505, %v759
  %v761 = vmul.f32 %v509, %v759
  %v762 = vmul.f32 %v513, %v759
  %v763 = vmul.f32 %v517, %v759
  %v764 = vmul.f32 %v521, %v759
  %v765 = vmul.f32 %v525, %v759
  %v766 = vmul.f32 %v529, %v759
  %v767 = vmul.f32 %v533, %v759
  %v768 = vmul.f32 %v537, %v759
  %v769 = vmul.f32 %v541, %v759
  %v770 = vmul.f32 %v545, %v759
  %v771 = vmul.f32 %v549, %v759
  %v772 = vmul.f32 %v553, %v759
  %v773 = vmul.f32 %v557, %v759
  %v774 = vmul.f32 %v561, %v759
  %v775 = vmul.f32 %v565, %v759
  %v776 = vmul.f32 %v569, %v759
  %v777 = vmul.f32 %v573, %v759
  %v778 = vmul.f32 %v577, %v759
  %v779 = vmul.f32 %v581, %v759
  %v780 = vmul.f32 %v585, %v759
  %v781 = vmul.f32 %v589, %v759
  %v782 = vmul.f32 %v593, %v759
  %v783 = vmul.f32 %v597, %v759
  %v784 = vmul.f32 %v601, %v759
  %v785 = vmul.f32 %v605, %v759
  %v786 = vmul.f32 %v609, %v759
  %v787 = vmul.f32 %v613, %v759
  %v788 = vmul.f32 %v617, %v759
  %v789 = vmul.f32 %v621, %v759
  %v790 = vmul.f32 %v625, %v759
  %v791 = vmul.f32 %v629, %v759
  %v792 = vmul.f32 %v633, %v759
  %v793 = vmul.f32 %v637, %v759
  %v794 = vmul.f32 %v641, %v759
  %v795 = vmul.f32 %v645, %v759
  %v796 = vmul.f32 %v649, %v759
  %v797 = vmul.f32 %v653, %v759
  %v798 = vmul.f32 %v657, %v759
  %v799 = vmul.f32 %v661, %v759
  %v800 = vmul.f32 %v665, %v759
  %v801 = vmul.f32 %v669, %v759
  %v802 = vmul.f32 %v673, %v759
  %v803 = vmul.f32 %v677, %v759
  %v804 = vmul.f32 %v681, %v759
  %v805 = vmul.f32 %v685, %v759
  %v806 = vmul.f32 %v689, %v759
  %v807 = vmul.f32 %v693, %v759
  %v808 = vmul.f32 %v697, %v759
  %v809 = vmul.f32 %v701, %v759
  %v810 = vmul.f32 %v705, %v759
  %v811 = vmul.f32 %v709, %v759
  %v812 = vmul.f32 %v713, %v759
  %v813 = vmul.f32 %v717, %v759
  %v814 = vmul.f32 %v721, %v759
  %v815 = vmul.f32 %v725, %v759
  %v816 = vmul.f32 %v729, %v759
  %v817 = vmul.f32 %v733, %v759
  %v818 = vmul.f32 %v737, %v759
  %v819 = vmul.f32 %v741, %v759
  %v820 = vmul.f32 %v745, %v759
  %v821 = vmul.f32 %v749, %v759
  %v822 = vmul.f32 %v753, %v759
  %v823 = vmul.f32 %v757, %v759
  %v824 = vadd.f32 %v439, %v760
  %v825 = vadd.f32 %v440, %v761
  %v826 = vadd.f32 %v441, %v762
  %v827 = vadd.f32 %v442, %v763
  %v828 = vadd.f32 %v443, %v764
  %v829 = vadd.f32 %v444, %v765
  %v830 = vadd.f32 %v445, %v766
  %v831 = vadd.f32 %v446, %v767
  %v832 = vadd.f32 %v447, %v768
  %v833 = vadd.f32 %v448, %v769
  %v834 = vadd.f32 %v449, %v770
  %v835 = vadd.f32 %v450, %v771
  %v836 = vadd.f32 %v451, %v772
  %v837 = vadd.f32 %v452, %v773
  %v838 = vadd.f32 %v453, %v774
  %v839 = vadd.f32 %v454, %v775
  %v840 = vadd.f32 %v455, %v776
  %v841 = vadd.f32 %v456, %v777
  %v842 = vadd.f32 %v457, %v778
  %v843 = vadd.f32 %v458, %v779
  %v844 = vadd.f32 %v459, %v780
  %v845 = vadd.f32 %v460, %v781
  %v846 = vadd.f32 %v461, %v782
  %v847 = vadd.f32 %v462, %v783
  %v848 = vadd.f32 %v463, %v784
  %v849 = vadd.f32 %v464, %v785
  %v850 = vadd.f32 %v465, %v786
  %v851 = vadd.f32 %v466, %v787
  %v852 = vadd.f32 %v467, %v788
  %v853 = vadd.f32 %v468, %v789
  %v854 = vadd.f32 %v469, %v790
  %v855 = vadd.f32 %v470, %v791
  %v856 = vadd.f32 %v471, %v792
  %v857 = vadd.f32 %v472, %v793
  %v858 = vadd.f32 %v473, %v794
  %v859 = vadd.f32 %v474, %v795
  %v860 = vadd.f32 %v475, %v796
  %v861 = vadd.f32 %v476, %v797
  %v862 = vadd.f32 %v477, %v798
  %v863 = vadd.f32 %v478, %v799
  %v864 = vadd.f32 %v479, %v800
  %v865 = vadd.f32 %v480, %v801
  %v866 = vadd.f32 %v481, %v802
  %v867 = vadd.f32 %v482, %v803
  %v868 = vadd.f32 %v483, %v804
  %v869 = vadd.f32 %v484, %v805
  %v870 = vadd.f32 %v485, %v806
  %v871 = vadd.f32 %v486, %v807
  %v872 = vadd.f32 %v487, %v808
  %v873 = vadd.f32 %v488, %v809
  %v874 = vadd.f32 %v489, %v810
  %v875 = vadd.f32 %v490, %v811
  %v876 = vadd.f32 %v491, %v812
  %v877 = vadd.f32 %v492, %v813
  %v878 = vadd.f32 %v493, %v814
  %v879 = vadd.f32 %v494, %v815
  %v880 = vadd.f32 %v495, %v816
  %v881 = vadd.f32 %v496, %v817
  %v882 = vadd.f32 %v497, %v818
  %v883 = vadd.f32 %v498, %v819
  %v884 = vadd.f32 %v499, %v820
  %v885 = vadd.f32 %v500, %v821
  %v886 = vadd.f32 %v501, %v822
  %v887 = vadd.f32 %v502, %v823
  %888 = vset.pattern.permute.xlu0 2
  %889 = vperm.xlu0 %888, %v53
  %v890 = vpop.permute.xlu0 %889
  %892 = vset.pattern.permute.xlu0 2
  %893 = vperm.xlu0 %892, %v54
  %v894 = vpop.permute.xlu0 %893
  %896 = vset.pattern.permute.xlu0 2
  %897 = vperm.xlu0 %896, %v55
  %v898 = vpop.permute.xlu0 %897
  %900 = vset.pattern.permute.xlu0 2
  %901 = vperm.xlu0 %900, %v56
  %v902 = vpop.permute.xlu0 %901
  %904 = vset.pattern.permute.xlu0 2
  %905 = vperm.xlu0 %904, %v57
  %v906 = vpop.permute.xlu0 %905
  %908 = vset.pattern.permute.xlu0 2
  %909 = vperm.xlu0 %908, %v58
  %v910 = vpop.permute.xlu0 %909
  %912 = vset.pattern.permute.xlu0 2
  %913 = vperm.xlu0 %912, %v59
  %v914 = vpop.permute.xlu0 %913
  %916 = vset.pattern.permute.xlu0 2
  %917 = vperm.xlu0 %916, %v60
  %v918 = vpop.permute.xlu0 %917
  %920 = vset.pattern.permute.xlu0 2
  %921 = vperm.xlu0 %920, %v61
  %v922 = vpop.permute.xlu0 %921
  %924 = vset.pattern.permute.xlu0 2
  %925 = vperm.xlu0 %924, %v62
  %v926 = vpop.permute.xlu0 %925
  %928 = vset.pattern.permute.xlu0 2
  %929 = vperm.xlu0 %928, %v63
  %v930 = vpop.permute.xlu0 %929
  %932 = vset.pattern.permute.xlu0 2
  %933 = vperm.xlu0 %932, %v64
  %v934 = vpop.permute.xlu0 %933
  %936 = vset.pattern.permute.xlu0 2
  %937 = vperm.xlu0 %936, %v65
  %v938 = vpop.permute.xlu0 %937
  %940 = vset.pattern.permute.xlu0 2
  %941 = vperm.xlu0 %940, %v66
  %v942 = vpop.permute.xlu0 %941
  %944 = vset.pattern.permute.xlu0 2
  %945 = vperm.xlu0 %944, %v67
  %v946 = vpop.permute.xlu0 %945
  %948 = vset.pattern.permute.xlu0 2
  %949 = vperm.xlu0 %948, %v68
  %v950 = vpop.permute.xlu0 %949
  %952 = vset.pattern.permute.xlu0 2
  %953 = vperm.xlu0 %952, %v69
  %v954 = vpop.permute.xlu0 %953
  %956 = vset.pattern.permute.xlu0 2
  %957 = vperm.xlu0 %956, %v70
  %v958 = vpop.permute.xlu0 %957
  %960 = vset.pattern.permute.xlu0 2
  %961 = vperm.xlu0 %960, %v71
  %v962 = vpop.permute.xlu0 %961
  %964 = vset.pattern.permute.xlu0 2
  %965 = vperm.xlu0 %964, %v72
  %v966 = vpop.permute.xlu0 %965
  %968 = vset.pattern.permute.xlu0 2
  %969 = vperm.xlu0 %968, %v73
  %v970 = vpop.permute.xlu0 %969
  %972 = vset.pattern.permute.xlu0 2
  %973 = vperm.xlu0 %972, %v74
  %v974 = vpop.permute.xlu0 %973
  %976 = vset.pattern.permute.xlu0 2
  %977 = vperm.xlu0 %976, %v75
  %v978 = vpop.permute.xlu0 %977
  %980 = vset.pattern.permute.xlu0 2
  %981 = vperm.xlu0 %980, %v76
  %v982 = vpop.permute.xlu0 %981
  %984 = vset.pattern.permute.xlu0 2
  %985 = vperm.xlu0 %984, %v77
  %v986 = vpop.permute.xlu0 %985
  %988 = vset.pattern.permute.xlu0 2
  %989 = vperm.xlu0 %988, %v78
  %v990 = vpop.permute.xlu0 %989
  %992 = vset.pattern.permute.xlu0 2
  %993 = vperm.xlu0 %992, %v79
  %v994 = vpop.permute.xlu0 %993
  %996 = vset.pattern.permute.xlu0 2
  %997 = vperm.xlu0 %996, %v80
  %v998 = vpop.permute.xlu0 %997
  %1000 = vset.pattern.permute.xlu0 2
  %1001 = vperm.xlu0 %1000, %v81
  %v1002 = vpop.permute.xlu0 %1001
  %1004 = vset.pattern.permute.xlu0 2
  %1005 = vperm.xlu0 %1004, %v82
  %v1006 = vpop.permute.xlu0 %1005
  %1008 = vset.pattern.permute.xlu0 2
  %1009 = vperm.xlu0 %1008, %v83
  %v1010 = vpop.permute.xlu0 %1009
  %1012 = vset.pattern.permute.xlu0 2
  %1013 = vperm.xlu0 %1012, %v84
  %v1014 = vpop.permute.xlu0 %1013
  %1016 = vset.pattern.permute.xlu0 2
  %1017 = vperm.xlu0 %1016, %v85
  %v1018 = vpop.permute.xlu0 %1017
  %1020 = vset.pattern.permute.xlu0 2
  %1021 = vperm.xlu0 %1020, %v86
  %v1022 = vpop.permute.xlu0 %1021
  %1024 = vset.pattern.permute.xlu0 2
  %1025 = vperm.xlu0 %1024, %v87
  %v1026 = vpop.permute.xlu0 %1025
  %1028 = vset.pattern.permute.xlu0 2
  %1029 = vperm.xlu0 %1028, %v88
  %v1030 = vpop.permute.xlu0 %1029
  %1032 = vset.pattern.permute.xlu0 2
  %1033 = vperm.xlu0 %1032, %v89
  %v1034 = vpop.permute.xlu0 %1033
  %1036 = vset.pattern.permute.xlu0 2
  %1037 = vperm.xlu0 %1036, %v90
  %v1038 = vpop.permute.xlu0 %1037
  %1040 = vset.pattern.permute.xlu0 2
  %1041 = vperm.xlu0 %1040, %v91
  %v1042 = vpop.permute.xlu0 %1041
  %1044 = vset.pattern.permute.xlu0 2
  %1045 = vperm.xlu0 %1044, %v92
  %v1046 = vpop.permute.xlu0 %1045
  %1048 = vset.pattern.permute.xlu0 2
  %1049 = vperm.xlu0 %1048, %v93
  %v1050 = vpop.permute.xlu0 %1049
  %1052 = vset.pattern.permute.xlu0 2
  %1053 = vperm.xlu0 %1052, %v94
  %v1054 = vpop.permute.xlu0 %1053
  %1056 = vset.pattern.permute.xlu0 2
  %1057 = vperm.xlu0 %1056, %v95
  %v1058 = vpop.permute.xlu0 %1057
  %1060 = vset.pattern.permute.xlu0 2
  %1061 = vperm.xlu0 %1060, %v96
  %v1062 = vpop.permute.xlu0 %1061
  %1064 = vset.pattern.permute.xlu0 2
  %1065 = vperm.xlu0 %1064, %v97
  %v1066 = vpop.permute.xlu0 %1065
  %1068 = vset.pattern.permute.xlu0 2
  %1069 = vperm.xlu0 %1068, %v98
  %v1070 = vpop.permute.xlu0 %1069
  %1072 = vset.pattern.permute.xlu0 2
  %1073 = vperm.xlu0 %1072, %v99
  %v1074 = vpop.permute.xlu0 %1073
  %1076 = vset.pattern.permute.xlu0 2
  %1077 = vperm.xlu0 %1076, %v100
  %v1078 = vpop.permute.xlu0 %1077
  %1080 = vset.pattern.permute.xlu0 2
  %1081 = vperm.xlu0 %1080, %v101
  %v1082 = vpop.permute.xlu0 %1081
  %1084 = vset.pattern.permute.xlu0 2
  %1085 = vperm.xlu0 %1084, %v102
  %v1086 = vpop.permute.xlu0 %1085
  %1088 = vset.pattern.permute.xlu0 2
  %1089 = vperm.xlu0 %1088, %v103
  %v1090 = vpop.permute.xlu0 %1089
  %1092 = vset.pattern.permute.xlu0 2
  %1093 = vperm.xlu0 %1092, %v104
  %v1094 = vpop.permute.xlu0 %1093
  %1096 = vset.pattern.permute.xlu0 2
  %1097 = vperm.xlu0 %1096, %v105
  %v1098 = vpop.permute.xlu0 %1097
  %1100 = vset.pattern.permute.xlu0 2
  %1101 = vperm.xlu0 %1100, %v106
  %v1102 = vpop.permute.xlu0 %1101
  %1104 = vset.pattern.permute.xlu0 2
  %1105 = vperm.xlu0 %1104, %v107
  %v1106 = vpop.permute.xlu0 %1105
  %1108 = vset.pattern.permute.xlu0 2
  %1109 = vperm.xlu0 %1108, %v108
  %v1110 = vpop.permute.xlu0 %1109
  %1112 = vset.pattern.permute.xlu0 2
  %1113 = vperm.xlu0 %1112, %v109
  %v1114 = vpop.permute.xlu0 %1113
  %1116 = vset.pattern.permute.xlu0 2
  %1117 = vperm.xlu0 %1116, %v110
  %v1118 = vpop.permute.xlu0 %1117
  %1120 = vset.pattern.permute.xlu0 2
  %1121 = vperm.xlu0 %1120, %v111
  %v1122 = vpop.permute.xlu0 %1121
  %1124 = vset.pattern.permute.xlu0 2
  %1125 = vperm.xlu0 %1124, %v112
  %v1126 = vpop.permute.xlu0 %1125
  %1128 = vset.pattern.permute.xlu0 2
  %1129 = vperm.xlu0 %1128, %v113
  %v1130 = vpop.permute.xlu0 %1129
  %1132 = vset.pattern.permute.xlu0 2
  %1133 = vperm.xlu0 %1132, %v114
  %v1134 = vpop.permute.xlu0 %1133
  %1136 = vset.pattern.permute.xlu0 2
  %1137 = vperm.xlu0 %1136, %v115
  %v1138 = vpop.permute.xlu0 %1137
  %1140 = vset.pattern.permute.xlu0 2
  %1141 = vperm.xlu0 %1140, %v116
  %v1142 = vpop.permute.xlu0 %1141
  %v1144 = vperm.slane %v117, 2
  %v1145 = vmul.f32 %v890, %v1144
  %v1146 = vmul.f32 %v894, %v1144
  %v1147 = vmul.f32 %v898, %v1144
  %v1148 = vmul.f32 %v902, %v1144
  %v1149 = vmul.f32 %v906, %v1144
  %v1150 = vmul.f32 %v910, %v1144
  %v1151 = vmul.f32 %v914, %v1144
  %v1152 = vmul.f32 %v918, %v1144
  %v1153 = vmul.f32 %v922, %v1144
  %v1154 = vmul.f32 %v926, %v1144
  %v1155 = vmul.f32 %v930, %v1144
  %v1156 = vmul.f32 %v934, %v1144
  %v1157 = vmul.f32 %v938, %v1144
  %v1158 = vmul.f32 %v942, %v1144
  %v1159 = vmul.f32 %v946, %v1144
  %v1160 = vmul.f32 %v950, %v1144
  %v1161 = vmul.f32 %v954, %v1144
  %v1162 = vmul.f32 %v958, %v1144
  %v1163 = vmul.f32 %v962, %v1144
  %v1164 = vmul.f32 %v966, %v1144
  %v1165 = vmul.f32 %v970, %v1144
  %v1166 = vmul.f32 %v974, %v1144
  %v1167 = vmul.f32 %v978, %v1144
  %v1168 = vmul.f32 %v982, %v1144
  %v1169 = vmul.f32 %v986, %v1144
  %v1170 = vmul.f32 %v990, %v1144
  %v1171 = vmul.f32 %v994, %v1144
  %v1172 = vmul.f32 %v998, %v1144
  %v1173 = vmul.f32 %v1002, %v1144
  %v1174 = vmul.f32 %v1006, %v1144
  %v1175 = vmul.f32 %v1010, %v1144
  %v1176 = vmul.f32 %v1014, %v1144
  %v1177 = vmul.f32 %v1018, %v1144
  %v1178 = vmul.f32 %v1022, %v1144
  %v1179 = vmul.f32 %v1026, %v1144
  %v1180 = vmul.f32 %v1030, %v1144
  %v1181 = vmul.f32 %v1034, %v1144
  %v1182 = vmul.f32 %v1038, %v1144
  %v1183 = vmul.f32 %v1042, %v1144
  %v1184 = vmul.f32 %v1046, %v1144
  %v1185 = vmul.f32 %v1050, %v1144
  %v1186 = vmul.f32 %v1054, %v1144
  %v1187 = vmul.f32 %v1058, %v1144
  %v1188 = vmul.f32 %v1062, %v1144
  %v1189 = vmul.f32 %v1066, %v1144
  %v1190 = vmul.f32 %v1070, %v1144
  %v1191 = vmul.f32 %v1074, %v1144
  %v1192 = vmul.f32 %v1078, %v1144
  %v1193 = vmul.f32 %v1082, %v1144
  %v1194 = vmul.f32 %v1086, %v1144
  %v1195 = vmul.f32 %v1090, %v1144
  %v1196 = vmul.f32 %v1094, %v1144
  %v1197 = vmul.f32 %v1098, %v1144
  %v1198 = vmul.f32 %v1102, %v1144
  %v1199 = vmul.f32 %v1106, %v1144
  %v1200 = vmul.f32 %v1110, %v1144
  %v1201 = vmul.f32 %v1114, %v1144
  %v1202 = vmul.f32 %v1118, %v1144
  %v1203 = vmul.f32 %v1122, %v1144
  %v1204 = vmul.f32 %v1126, %v1144
  %v1205 = vmul.f32 %v1130, %v1144
  %v1206 = vmul.f32 %v1134, %v1144
  %v1207 = vmul.f32 %v1138, %v1144
  %v1208 = vmul.f32 %v1142, %v1144
  %v1209 = vadd.f32 %v824, %v1145
  %v1210 = vadd.f32 %v825, %v1146
  %v1211 = vadd.f32 %v826, %v1147
  %v1212 = vadd.f32 %v827, %v1148
  %v1213 = vadd.f32 %v828, %v1149
  %v1214 = vadd.f32 %v829, %v1150
  %v1215 = vadd.f32 %v830, %v1151
  %v1216 = vadd.f32 %v831, %v1152
  %v1217 = vadd.f32 %v832, %v1153
  %v1218 = vadd.f32 %v833, %v1154
  %v1219 = vadd.f32 %v834, %v1155
  %v1220 = vadd.f32 %v835, %v1156
  %v1221 = vadd.f32 %v836, %v1157
  %v1222 = vadd.f32 %v837, %v1158
  %v1223 = vadd.f32 %v838, %v1159
  %v1224 = vadd.f32 %v839, %v1160
  %v1225 = vadd.f32 %v840, %v1161
  %v1226 = vadd.f32 %v841, %v1162
  %v1227 = vadd.f32 %v842, %v1163
  %v1228 = vadd.f32 %v843, %v1164
  %v1229 = vadd.f32 %v844, %v1165
  %v1230 = vadd.f32 %v845, %v1166
  %v1231 = vadd.f32 %v846, %v1167
  %v1232 = vadd.f32 %v847, %v1168
  %v1233 = vadd.f32 %v848, %v1169
  %v1234 = vadd.f32 %v849, %v1170
  %v1235 = vadd.f32 %v850, %v1171
  %v1236 = vadd.f32 %v851, %v1172
  %v1237 = vadd.f32 %v852, %v1173
  %v1238 = vadd.f32 %v853, %v1174
  %v1239 = vadd.f32 %v854, %v1175
  %v1240 = vadd.f32 %v855, %v1176
  %v1241 = vadd.f32 %v856, %v1177
  %v1242 = vadd.f32 %v857, %v1178
  %v1243 = vadd.f32 %v858, %v1179
  %v1244 = vadd.f32 %v859, %v1180
  %v1245 = vadd.f32 %v860, %v1181
  %v1246 = vadd.f32 %v861, %v1182
  %v1247 = vadd.f32 %v862, %v1183
  %v1248 = vadd.f32 %v863, %v1184
  %v1249 = vadd.f32 %v864, %v1185
  %v1250 = vadd.f32 %v865, %v1186
  %v1251 = vadd.f32 %v866, %v1187
  %v1252 = vadd.f32 %v867, %v1188
  %v1253 = vadd.f32 %v868, %v1189
  %v1254 = vadd.f32 %v869, %v1190
  %v1255 = vadd.f32 %v870, %v1191
  %v1256 = vadd.f32 %v871, %v1192
  %v1257 = vadd.f32 %v872, %v1193
  %v1258 = vadd.f32 %v873, %v1194
  %v1259 = vadd.f32 %v874, %v1195
  %v1260 = vadd.f32 %v875, %v1196
  %v1261 = vadd.f32 %v876, %v1197
  %v1262 = vadd.f32 %v877, %v1198
  %v1263 = vadd.f32 %v878, %v1199
  %v1264 = vadd.f32 %v879, %v1200
  %v1265 = vadd.f32 %v880, %v1201
  %v1266 = vadd.f32 %v881, %v1202
  %v1267 = vadd.f32 %v882, %v1203
  %v1268 = vadd.f32 %v883, %v1204
  %v1269 = vadd.f32 %v884, %v1205
  %v1270 = vadd.f32 %v885, %v1206
  %v1271 = vadd.f32 %v886, %v1207
  %v1272 = vadd.f32 %v887, %v1208
  %v1273 = vld [vmem:[%s0] sm:$0xf]
  %v1274 = vld [vmem:[%s0 + $0x4] sm:$0xf]
  %v1275 = vld [vmem:[%s0 + $0x8] sm:$0xf]
  %v1276 = vld [vmem:[%s0 + $0xc] sm:$0xf]
  %v1277 = vld [vmem:[%s0 + $0x10] sm:$0xf]
  %v1278 = vld [vmem:[%s0 + $0x14] sm:$0xf]
  %v1279 = vld [vmem:[%s0 + $0x18] sm:$0xf]
  %v1280 = vld [vmem:[%s0 + $0x1c] sm:$0xf]
  %v1281 = vld [vmem:[%s0 + $0x20] sm:$0xf]
  %v1282 = vld [vmem:[%s0 + $0x24] sm:$0xf]
  %v1283 = vld [vmem:[%s0 + $0x28] sm:$0xf]
  %v1284 = vld [vmem:[%s0 + $0x2c] sm:$0xf]
  %v1285 = vld [vmem:[%s0 + $0x30] sm:$0xf]
  %v1286 = vld [vmem:[%s0 + $0x34] sm:$0xf]
  %v1287 = vld [vmem:[%s0 + $0x38] sm:$0xf]
  %v1288 = vld [vmem:[%s0 + $0x3c] sm:$0xf]
  %v1289 = vld [vmem:[%s0 + $0x40] sm:$0xf]
  %v1290 = vld [vmem:[%s0 + $0x44] sm:$0xf]
  %v1291 = vld [vmem:[%s0 + $0x48] sm:$0xf]
  %v1292 = vld [vmem:[%s0 + $0x4c] sm:$0xf]
  %v1293 = vld [vmem:[%s0 + $0x50] sm:$0xf]
  %v1294 = vld [vmem:[%s0 + $0x54] sm:$0xf]
  %v1295 = vld [vmem:[%s0 + $0x58] sm:$0xf]
  %v1296 = vld [vmem:[%s0 + $0x5c] sm:$0xf]
  %v1297 = vld [vmem:[%s0 + $0x60] sm:$0xf]
  %v1298 = vld [vmem:[%s0 + $0x64] sm:$0xf]
  %v1299 = vld [vmem:[%s0 + $0x68] sm:$0xf]
  %v1300 = vld [vmem:[%s0 + $0x6c] sm:$0xf]
  %v1301 = vld [vmem:[%s0 + $0x70] sm:$0xf]
  %v1302 = vld [vmem:[%s0 + $0x74] sm:$0xf]
  %v1303 = vld [vmem:[%s0 + $0x78] sm:$0xf]
  %v1304 = vld [vmem:[%s0 + $0x7c] sm:$0xf]
  %v1305 = vld [vmem:[%s0 + $0x80] sm:$0xf]
  %v1306 = vld [vmem:[%s0 + $0x84] sm:$0xf]
  %v1307 = vld [vmem:[%s0 + $0x88] sm:$0xf]
  %v1308 = vld [vmem:[%s0 + $0x8c] sm:$0xf]
  %v1309 = vld [vmem:[%s0 + $0x90] sm:$0xf]
  %v1310 = vld [vmem:[%s0 + $0x94] sm:$0xf]
  %v1311 = vld [vmem:[%s0 + $0x98] sm:$0xf]
  %v1312 = vld [vmem:[%s0 + $0x9c] sm:$0xf]
  %v1313 = vld [vmem:[%s0 + $0xa0] sm:$0xf]
  %v1314 = vld [vmem:[%s0 + $0xa4] sm:$0xf]
  %v1315 = vld [vmem:[%s0 + $0xa8] sm:$0xf]
  %v1316 = vld [vmem:[%s0 + $0xac] sm:$0xf]
  %v1317 = vld [vmem:[%s0 + $0xb0] sm:$0xf]
  %v1318 = vld [vmem:[%s0 + $0xb4] sm:$0xf]
  %v1319 = vld [vmem:[%s0 + $0xb8] sm:$0xf]
  %v1320 = vld [vmem:[%s0 + $0xbc] sm:$0xf]
  %v1321 = vld [vmem:[%s0 + $0xc0] sm:$0xf]
  %v1322 = vld [vmem:[%s0 + $0xc4] sm:$0xf]
  %v1323 = vld [vmem:[%s0 + $0xc8] sm:$0xf]
  %v1324 = vld [vmem:[%s0 + $0xcc] sm:$0xf]
  %v1325 = vld [vmem:[%s0 + $0xd0] sm:$0xf]
  %v1326 = vld [vmem:[%s0 + $0xd4] sm:$0xf]
  %v1327 = vld [vmem:[%s0 + $0xd8] sm:$0xf]
  %v1328 = vld [vmem:[%s0 + $0xdc] sm:$0xf]
  %v1329 = vld [vmem:[%s0 + $0xe0] sm:$0xf]
  %v1330 = vld [vmem:[%s0 + $0xe4] sm:$0xf]
  %v1331 = vld [vmem:[%s0 + $0xe8] sm:$0xf]
  %v1332 = vld [vmem:[%s0 + $0xec] sm:$0xf]
  %v1333 = vld [vmem:[%s0 + $0xf0] sm:$0xf]
  %v1334 = vld [vmem:[%s0 + $0xf4] sm:$0xf]
  %v1335 = vld [vmem:[%s0 + $0xf8] sm:$0xf]
  %v1336 = vld [vmem:[%s0 + $0xfc] sm:$0xf]
  %v1337 = vunpack.c.l.bf16 %v1273
  %v1338 = vunpack.c.l.bf16 %v1274
  %v1339 = vunpack.c.l.bf16 %v1275
  %v1340 = vunpack.c.l.bf16 %v1276
  %v1341 = vunpack.c.l.bf16 %v1277
  %v1342 = vunpack.c.l.bf16 %v1278
  %v1343 = vunpack.c.l.bf16 %v1279
  %v1344 = vunpack.c.l.bf16 %v1280
  %v1345 = vunpack.c.l.bf16 %v1281
  %v1346 = vunpack.c.l.bf16 %v1282
  %v1347 = vunpack.c.l.bf16 %v1283
  %v1348 = vunpack.c.l.bf16 %v1284
  %v1349 = vunpack.c.l.bf16 %v1285
  %v1350 = vunpack.c.l.bf16 %v1286
  %v1351 = vunpack.c.l.bf16 %v1287
  %v1352 = vunpack.c.l.bf16 %v1288
  %v1353 = vunpack.c.l.bf16 %v1289
  %v1354 = vunpack.c.l.bf16 %v1290
  %v1355 = vunpack.c.l.bf16 %v1291
  %v1356 = vunpack.c.l.bf16 %v1292
  %v1357 = vunpack.c.l.bf16 %v1293
  %v1358 = vunpack.c.l.bf16 %v1294
  %v1359 = vunpack.c.l.bf16 %v1295
  %v1360 = vunpack.c.l.bf16 %v1296
  %v1361 = vunpack.c.l.bf16 %v1297
  %v1362 = vunpack.c.l.bf16 %v1298
  %v1363 = vunpack.c.l.bf16 %v1299
  %v1364 = vunpack.c.l.bf16 %v1300
  %v1365 = vunpack.c.l.bf16 %v1301
  %v1366 = vunpack.c.l.bf16 %v1302
  %v1367 = vunpack.c.l.bf16 %v1303
  %v1368 = vunpack.c.l.bf16 %v1304
  %v1369 = vunpack.c.l.bf16 %v1305
  %v1370 = vunpack.c.l.bf16 %v1306
  %v1371 = vunpack.c.l.bf16 %v1307
  %v1372 = vunpack.c.l.bf16 %v1308
  %v1373 = vunpack.c.l.bf16 %v1309
  %v1374 = vunpack.c.l.bf16 %v1310
  %v1375 = vunpack.c.l.bf16 %v1311
  %v1376 = vunpack.c.l.bf16 %v1312
  %v1377 = vunpack.c.l.bf16 %v1313
  %v1378 = vunpack.c.l.bf16 %v1314
  %v1379 = vunpack.c.l.bf16 %v1315
  %v1380 = vunpack.c.l.bf16 %v1316
  %v1381 = vunpack.c.l.bf16 %v1317
  %v1382 = vunpack.c.l.bf16 %v1318
  %v1383 = vunpack.c.l.bf16 %v1319
  %v1384 = vunpack.c.l.bf16 %v1320
  %v1385 = vunpack.c.l.bf16 %v1321
  %v1386 = vunpack.c.l.bf16 %v1322
  %v1387 = vunpack.c.l.bf16 %v1323
  %v1388 = vunpack.c.l.bf16 %v1324
  %v1389 = vunpack.c.l.bf16 %v1325
  %v1390 = vunpack.c.l.bf16 %v1326
  %v1391 = vunpack.c.l.bf16 %v1327
  %v1392 = vunpack.c.l.bf16 %v1328
  %v1393 = vunpack.c.l.bf16 %v1329
  %v1394 = vunpack.c.l.bf16 %v1330
  %v1395 = vunpack.c.l.bf16 %v1331
  %v1396 = vunpack.c.l.bf16 %v1332
  %v1397 = vunpack.c.l.bf16 %v1333
  %v1398 = vunpack.c.l.bf16 %v1334
  %v1399 = vunpack.c.l.bf16 %v1335
  %v1400 = vunpack.c.l.bf16 %v1336
  %v1401 = vadd.f32 %v1337, %v1209
  %v1402 = vadd.f32 %v1338, %v1210
  %v1403 = vadd.f32 %v1339, %v1211
  %v1404 = vadd.f32 %v1340, %v1212
  %v1405 = vadd.f32 %v1341, %v1213
  %v1406 = vadd.f32 %v1342, %v1214
  %v1407 = vadd.f32 %v1343, %v1215
  %v1408 = vadd.f32 %v1344, %v1216
  %v1409 = vadd.f32 %v1345, %v1217
  %v1410 = vadd.f32 %v1346, %v1218
  %v1411 = vadd.f32 %v1347, %v1219
  %v1412 = vadd.f32 %v1348, %v1220
  %v1413 = vadd.f32 %v1349, %v1221
  %v1414 = vadd.f32 %v1350, %v1222
  %v1415 = vadd.f32 %v1351, %v1223
  %v1416 = vadd.f32 %v1352, %v1224
  %v1417 = vadd.f32 %v1353, %v1225
  %v1418 = vadd.f32 %v1354, %v1226
  %v1419 = vadd.f32 %v1355, %v1227
  %v1420 = vadd.f32 %v1356, %v1228
  %v1421 = vadd.f32 %v1357, %v1229
  %v1422 = vadd.f32 %v1358, %v1230
  %v1423 = vadd.f32 %v1359, %v1231
  %v1424 = vadd.f32 %v1360, %v1232
  %v1425 = vadd.f32 %v1361, %v1233
  %v1426 = vadd.f32 %v1362, %v1234
  %v1427 = vadd.f32 %v1363, %v1235
  %v1428 = vadd.f32 %v1364, %v1236
  %v1429 = vadd.f32 %v1365, %v1237
  %v1430 = vadd.f32 %v1366, %v1238
  %v1431 = vadd.f32 %v1367, %v1239
  %v1432 = vadd.f32 %v1368, %v1240
  %v1433 = vadd.f32 %v1369, %v1241
  %v1434 = vadd.f32 %v1370, %v1242
  %v1435 = vadd.f32 %v1371, %v1243
  %v1436 = vadd.f32 %v1372, %v1244
  %v1437 = vadd.f32 %v1373, %v1245
  %v1438 = vadd.f32 %v1374, %v1246
  %v1439 = vadd.f32 %v1375, %v1247
  %v1440 = vadd.f32 %v1376, %v1248
  %v1441 = vadd.f32 %v1377, %v1249
  %v1442 = vadd.f32 %v1378, %v1250
  %v1443 = vadd.f32 %v1379, %v1251
  %v1444 = vadd.f32 %v1380, %v1252
  %v1445 = vadd.f32 %v1381, %v1253
  %v1446 = vadd.f32 %v1382, %v1254
  %v1447 = vadd.f32 %v1383, %v1255
  %v1448 = vadd.f32 %v1384, %v1256
  %v1449 = vadd.f32 %v1385, %v1257
  %v1450 = vadd.f32 %v1386, %v1258
  %v1451 = vadd.f32 %v1387, %v1259
  %v1452 = vadd.f32 %v1388, %v1260
  %v1453 = vadd.f32 %v1389, %v1261
  %v1454 = vadd.f32 %v1390, %v1262
  %v1455 = vadd.f32 %v1391, %v1263
  %v1456 = vadd.f32 %v1392, %v1264
  %v1457 = vadd.f32 %v1393, %v1265
  %v1458 = vadd.f32 %v1394, %v1266
  %v1459 = vadd.f32 %v1395, %v1267
  %v1460 = vadd.f32 %v1396, %v1268
  %v1461 = vadd.f32 %v1397, %v1269
  %v1462 = vadd.f32 %v1398, %v1270
  %v1463 = vadd.f32 %v1399, %v1271
  %v1464 = vadd.f32 %v1400, %v1272
  %v1465 = vld [vmem:[%s4] sm:$0x1]
  %v1467 = vperm.slane %v1465, 0
  %v1469 = vadd.f32 %v1401, %v1467
  %v1470 = vadd.f32 %v1402, %v1467
  %v1471 = vadd.f32 %v1403, %v1467
  %v1472 = vadd.f32 %v1404, %v1467
  %v1473 = vadd.f32 %v1405, %v1467
  %v1474 = vadd.f32 %v1406, %v1467
  %v1475 = vadd.f32 %v1407, %v1467
  %v1476 = vadd.f32 %v1408, %v1467
  %v1477 = vadd.f32 %v1409, %v1467
  %v1478 = vadd.f32 %v1410, %v1467
  %v1479 = vadd.f32 %v1411, %v1467
  %v1480 = vadd.f32 %v1412, %v1467
  %v1481 = vadd.f32 %v1413, %v1467
  %v1482 = vadd.f32 %v1414, %v1467
  %v1483 = vadd.f32 %v1415, %v1467
  %v1484 = vadd.f32 %v1416, %v1467
  %v1485 = vadd.f32 %v1417, %v1467
  %v1486 = vadd.f32 %v1418, %v1467
  %v1487 = vadd.f32 %v1419, %v1467
  %v1488 = vadd.f32 %v1420, %v1467
  %v1489 = vadd.f32 %v1421, %v1467
  %v1490 = vadd.f32 %v1422, %v1467
  %v1491 = vadd.f32 %v1423, %v1467
  %v1492 = vadd.f32 %v1424, %v1467
  %v1493 = vadd.f32 %v1425, %v1467
  %v1494 = vadd.f32 %v1426, %v1467
  %v1495 = vadd.f32 %v1427, %v1467
  %v1496 = vadd.f32 %v1428, %v1467
  %v1497 = vadd.f32 %v1429, %v1467
  %v1498 = vadd.f32 %v1430, %v1467
  %v1499 = vadd.f32 %v1431, %v1467
  %v1500 = vadd.f32 %v1432, %v1467
  %v1501 = vadd.f32 %v1433, %v1467
  %v1502 = vadd.f32 %v1434, %v1467
  %v1503 = vadd.f32 %v1435, %v1467
  %v1504 = vadd.f32 %v1436, %v1467
  %v1505 = vadd.f32 %v1437, %v1467
  %v1506 = vadd.f32 %v1438, %v1467
  %v1507 = vadd.f32 %v1439, %v1467
  %v1508 = vadd.f32 %v1440, %v1467
  %v1509 = vadd.f32 %v1441, %v1467
  %v1510 = vadd.f32 %v1442, %v1467
  %v1511 = vadd.f32 %v1443, %v1467
  %v1512 = vadd.f32 %v1444, %v1467
  %v1513 = vadd.f32 %v1445, %v1467
  %v1514 = vadd.f32 %v1446, %v1467
  %v1515 = vadd.f32 %v1447, %v1467
  %v1516 = vadd.f32 %v1448, %v1467
  %v1517 = vadd.f32 %v1449, %v1467
  %v1518 = vadd.f32 %v1450, %v1467
  %v1519 = vadd.f32 %v1451, %v1467
  %v1520 = vadd.f32 %v1452, %v1467
  %v1521 = vadd.f32 %v1453, %v1467
  %v1522 = vadd.f32 %v1454, %v1467
  %v1523 = vadd.f32 %v1455, %v1467
  %v1524 = vadd.f32 %v1456, %v1467
  %v1525 = vadd.f32 %v1457, %v1467
  %v1526 = vadd.f32 %v1458, %v1467
  %v1527 = vadd.f32 %v1459, %v1467
  %v1528 = vadd.f32 %v1460, %v1467
  %v1529 = vadd.f32 %v1461, %v1467
  %v1530 = vadd.f32 %v1462, %v1467
  %v1531 = vadd.f32 %v1463, %v1467
  %v1532 = vadd.f32 %v1464, %v1467
  %v1533 = vmax.f32 %v1469, 0.0
  %v1534 = vmax.f32 %v1470, 0.0
  %v1535 = vmax.f32 %v1471, 0.0
  %v1536 = vmax.f32 %v1472, 0.0
  %v1537 = vmax.f32 %v1473, 0.0
  %v1538 = vmax.f32 %v1474, 0.0
  %v1539 = vmax.f32 %v1475, 0.0
  %v1540 = vmax.f32 %v1476, 0.0
  %v1541 = vmax.f32 %v1477, 0.0
  %v1542 = vmax.f32 %v1478, 0.0
  %v1543 = vmax.f32 %v1479, 0.0
  %v1544 = vmax.f32 %v1480, 0.0
  %v1545 = vmax.f32 %v1481, 0.0
  %v1546 = vmax.f32 %v1482, 0.0
  %v1547 = vmax.f32 %v1483, 0.0
  %v1548 = vmax.f32 %v1484, 0.0
  %v1549 = vmax.f32 %v1485, 0.0
  %v1550 = vmax.f32 %v1486, 0.0
  %v1551 = vmax.f32 %v1487, 0.0
  %v1552 = vmax.f32 %v1488, 0.0
  %v1553 = vmax.f32 %v1489, 0.0
  %v1554 = vmax.f32 %v1490, 0.0
  %v1555 = vmax.f32 %v1491, 0.0
  %v1556 = vmax.f32 %v1492, 0.0
  %v1557 = vmax.f32 %v1493, 0.0
  %v1558 = vmax.f32 %v1494, 0.0
  %v1559 = vmax.f32 %v1495, 0.0
  %v1560 = vmax.f32 %v1496, 0.0
  %v1561 = vmax.f32 %v1497, 0.0
  %v1562 = vmax.f32 %v1498, 0.0
  %v1563 = vmax.f32 %v1499, 0.0
  %v1564 = vmax.f32 %v1500, 0.0
  %v1565 = vmax.f32 %v1501, 0.0
  %v1566 = vmax.f32 %v1502, 0.0
  %v1567 = vmax.f32 %v1503, 0.0
  %v1568 = vmax.f32 %v1504, 0.0
  %v1569 = vmax.f32 %v1505, 0.0
  %v1570 = vmax.f32 %v1506, 0.0
  %v1571 = vmax.f32 %v1507, 0.0
  %v1572 = vmax.f32 %v1508, 0.0
  %v1573 = vmax.f32 %v1509, 0.0
  %v1574 = vmax.f32 %v1510, 0.0
  %v1575 = vmax.f32 %v1511, 0.0
  %v1576 = vmax.f32 %v1512, 0.0
  %v1577 = vmax.f32 %v1513, 0.0
  %v1578 = vmax.f32 %v1514, 0.0
  %v1579 = vmax.f32 %v1515, 0.0
  %v1580 = vmax.f32 %v1516, 0.0
  %v1581 = vmax.f32 %v1517, 0.0
  %v1582 = vmax.f32 %v1518, 0.0
  %v1583 = vmax.f32 %v1519, 0.0
  %v1584 = vmax.f32 %v1520, 0.0
  %v1585 = vmax.f32 %v1521, 0.0
  %v1586 = vmax.f32 %v1522, 0.0
  %v1587 = vmax.f32 %v1523, 0.0
  %v1588 = vmax.f32 %v1524, 0.0
  %v1589 = vmax.f32 %v1525, 0.0
  %v1590 = vmax.f32 %v1526, 0.0
  %v1591 = vmax.f32 %v1527, 0.0
  %v1592 = vmax.f32 %v1528, 0.0
  %v1593 = vmax.f32 %v1529, 0.0
  %v1594 = vmax.f32 %v1530, 0.0
  %v1595 = vmax.f32 %v1531, 0.0
  %v1596 = vmax.f32 %v1532, 0.0
  %v1597 = vpack.c.bf16 %v1533, %v1533
  %v1598 = vpack.c.bf16 %v1534, %v1534
  %v1599 = vpack.c.bf16 %v1535, %v1535
  %v1600 = vpack.c.bf16 %v1536, %v1536
  %v1601 = vpack.c.bf16 %v1537, %v1537
  %v1602 = vpack.c.bf16 %v1538, %v1538
  %v1603 = vpack.c.bf16 %v1539, %v1539
  %v1604 = vpack.c.bf16 %v1540, %v1540
  %v1605 = vpack.c.bf16 %v1541, %v1541
  %v1606 = vpack.c.bf16 %v1542, %v1542
  %v1607 = vpack.c.bf16 %v1543, %v1543
  %v1608 = vpack.c.bf16 %v1544, %v1544
  %v1609 = vpack.c.bf16 %v1545, %v1545
  %v1610 = vpack.c.bf16 %v1546, %v1546
  %v1611 = vpack.c.bf16 %v1547, %v1547
  %v1612 = vpack.c.bf16 %v1548, %v1548
  %v1613 = vpack.c.bf16 %v1549, %v1549
  %v1614 = vpack.c.bf16 %v1550, %v1550
  %v1615 = vpack.c.bf16 %v1551, %v1551
  %v1616 = vpack.c.bf16 %v1552, %v1552
  %v1617 = vpack.c.bf16 %v1553, %v1553
  %v1618 = vpack.c.bf16 %v1554, %v1554
  %v1619 = vpack.c.bf16 %v1555, %v1555
  %v1620 = vpack.c.bf16 %v1556, %v1556
  %v1621 = vpack.c.bf16 %v1557, %v1557
  %v1622 = vpack.c.bf16 %v1558, %v1558
  %v1623 = vpack.c.bf16 %v1559, %v1559
  %v1624 = vpack.c.bf16 %v1560, %v1560
  %v1625 = vpack.c.bf16 %v1561, %v1561
  %v1626 = vpack.c.bf16 %v1562, %v1562
  %v1627 = vpack.c.bf16 %v1563, %v1563
  %v1628 = vpack.c.bf16 %v1564, %v1564
  %v1629 = vpack.c.bf16 %v1565, %v1565
  %v1630 = vpack.c.bf16 %v1566, %v1566
  %v1631 = vpack.c.bf16 %v1567, %v1567
  %v1632 = vpack.c.bf16 %v1568, %v1568
  %v1633 = vpack.c.bf16 %v1569, %v1569
  %v1634 = vpack.c.bf16 %v1570, %v1570
  %v1635 = vpack.c.bf16 %v1571, %v1571
  %v1636 = vpack.c.bf16 %v1572, %v1572
  %v1637 = vpack.c.bf16 %v1573, %v1573
  %v1638 = vpack.c.bf16 %v1574, %v1574
  %v1639 = vpack.c.bf16 %v1575, %v1575
  %v1640 = vpack.c.bf16 %v1576, %v1576
  %v1641 = vpack.c.bf16 %v1577, %v1577
  %v1642 = vpack.c.bf16 %v1578, %v1578
  %v1643 = vpack.c.bf16 %v1579, %v1579
  %v1644 = vpack.c.bf16 %v1580, %v1580
  %v1645 = vpack.c.bf16 %v1581, %v1581
  %v1646 = vpack.c.bf16 %v1582, %v1582
  %v1647 = vpack.c.bf16 %v1583, %v1583
  %v1648 = vpack.c.bf16 %v1584, %v1584
  %v1649 = vpack.c.bf16 %v1585, %v1585
  %v1650 = vpack.c.bf16 %v1586, %v1586
  %v1651 = vpack.c.bf16 %v1587, %v1587
  %v1652 = vpack.c.bf16 %v1588, %v1588
  %v1653 = vpack.c.bf16 %v1589, %v1589
  %v1654 = vpack.c.bf16 %v1590, %v1590
  %v1655 = vpack.c.bf16 %v1591, %v1591
  %v1656 = vpack.c.bf16 %v1592, %v1592
  %v1657 = vpack.c.bf16 %v1593, %v1593
  %v1658 = vpack.c.bf16 %v1594, %v1594
  %v1659 = vpack.c.bf16 %v1595, %v1595
  %v1660 = vpack.c.bf16 %v1596, %v1596
  %v1661 = vld [vmem:[%s5] sm:$0xf]
  %v1662 = vld [vmem:[%s5 + $0x4] sm:$0xf]
  %v1663 = vld [vmem:[%s5 + $0x8] sm:$0xf]
  %v1664 = vld [vmem:[%s5 + $0xc] sm:$0xf]
  %v1665 = vld [vmem:[%s5 + $0x10] sm:$0xf]
  %v1666 = vld [vmem:[%s5 + $0x14] sm:$0xf]
  %v1667 = vld [vmem:[%s5 + $0x18] sm:$0xf]
  %v1668 = vld [vmem:[%s5 + $0x1c] sm:$0xf]
  %v1669 = vld [vmem:[%s5 + $0x20] sm:$0xf]
  %v1670 = vld [vmem:[%s5 + $0x24] sm:$0xf]
  %v1671 = vld [vmem:[%s5 + $0x28] sm:$0xf]
  %v1672 = vld [vmem:[%s5 + $0x2c] sm:$0xf]
  %v1673 = vld [vmem:[%s5 + $0x30] sm:$0xf]
  %v1674 = vld [vmem:[%s5 + $0x34] sm:$0xf]
  %v1675 = vld [vmem:[%s5 + $0x38] sm:$0xf]
  %v1676 = vld [vmem:[%s5 + $0x3c] sm:$0xf]
  %v1677 = vld [vmem:[%s6] sm:$0x1]
  %v1679 = vperm.slane %v1677, 0
  %v1745 = vunpack.c.l.b16 %v1597
  %v1746 = vunpack.c.l.b16 %v1598
  %v1747 = vunpack.c.l.b16 %v1599
  %v1748 = vunpack.c.l.b16 %v1600
  %v1749 = vunpack.c.l.b16 %v1601
  %v1750 = vunpack.c.l.b16 %v1602
  %v1751 = vunpack.c.l.b16 %v1603
  %v1752 = vunpack.c.l.b16 %v1604
  %v1753 = vunpack.c.l.b16 %v1605
  %v1754 = vunpack.c.l.b16 %v1606
  %v1755 = vunpack.c.l.b16 %v1607
  %v1756 = vunpack.c.l.b16 %v1608
  %v1757 = vunpack.c.l.b16 %v1609
  %v1758 = vunpack.c.l.b16 %v1610
  %v1759 = vunpack.c.l.b16 %v1611
  %v1760 = vunpack.c.l.b16 %v1612
  %v1761 = vunpack.c.l.b16 %v1613
  %v1762 = vunpack.c.l.b16 %v1614
  %v1763 = vunpack.c.l.b16 %v1615
  %v1764 = vunpack.c.l.b16 %v1616
  %v1765 = vunpack.c.l.b16 %v1617
  %v1766 = vunpack.c.l.b16 %v1618
  %v1767 = vunpack.c.l.b16 %v1619
  %v1768 = vunpack.c.l.b16 %v1620
  %v1769 = vunpack.c.l.b16 %v1621
  %v1770 = vunpack.c.l.b16 %v1622
  %v1771 = vunpack.c.l.b16 %v1623
  %v1772 = vunpack.c.l.b16 %v1624
  %v1773 = vunpack.c.l.b16 %v1625
  %v1774 = vunpack.c.l.b16 %v1626
  %v1775 = vunpack.c.l.b16 %v1627
  %v1776 = vunpack.c.l.b16 %v1628
  %v1777 = vunpack.c.l.b16 %v1629
  %v1778 = vunpack.c.l.b16 %v1630
  %v1779 = vunpack.c.l.b16 %v1631
  %v1780 = vunpack.c.l.b16 %v1632
  %v1781 = vunpack.c.l.b16 %v1633
  %v1782 = vunpack.c.l.b16 %v1634
  %v1783 = vunpack.c.l.b16 %v1635
  %v1784 = vunpack.c.l.b16 %v1636
  %v1785 = vunpack.c.l.b16 %v1637
  %v1786 = vunpack.c.l.b16 %v1638
  %v1787 = vunpack.c.l.b16 %v1639
  %v1788 = vunpack.c.l.b16 %v1640
  %v1789 = vunpack.c.l.b16 %v1641
  %v1790 = vunpack.c.l.b16 %v1642
  %v1791 = vunpack.c.l.b16 %v1643
  %v1792 = vunpack.c.l.b16 %v1644
  %v1793 = vunpack.c.l.b16 %v1645
  %v1794 = vunpack.c.l.b16 %v1646
  %v1795 = vunpack.c.l.b16 %v1647
  %v1796 = vunpack.c.l.b16 %v1648
  %v1797 = vunpack.c.l.b16 %v1649
  %v1798 = vunpack.c.l.b16 %v1650
  %v1799 = vunpack.c.l.b16 %v1651
  %v1800 = vunpack.c.l.b16 %v1652
  %v1801 = vunpack.c.l.b16 %v1653
  %v1802 = vunpack.c.l.b16 %v1654
  %v1803 = vunpack.c.l.b16 %v1655
  %v1804 = vunpack.c.l.b16 %v1656
  %v1805 = vunpack.c.l.b16 %v1657
  %v1806 = vunpack.c.l.b16 %v1658
  %v1807 = vunpack.c.l.b16 %v1659
  %v1808 = vunpack.c.l.b16 %v1660
  %v1809 = vpack.c.b16 %v1746, %v1745
  %v1810 = vpack.c.b16 %v1748, %v1747
  %v1811 = vpack.c.b16 %v1750, %v1749
  %v1812 = vpack.c.b16 %v1752, %v1751
  %v1813 = vpack.c.b16 %v1754, %v1753
  %v1814 = vpack.c.b16 %v1756, %v1755
  %v1815 = vpack.c.b16 %v1758, %v1757
  %v1816 = vpack.c.b16 %v1760, %v1759
  %v1817 = vpack.c.b16 %v1762, %v1761
  %v1818 = vpack.c.b16 %v1764, %v1763
  %v1819 = vpack.c.b16 %v1766, %v1765
  %v1820 = vpack.c.b16 %v1768, %v1767
  %v1821 = vpack.c.b16 %v1770, %v1769
  %v1822 = vpack.c.b16 %v1772, %v1771
  %v1823 = vpack.c.b16 %v1774, %v1773
  %v1824 = vpack.c.b16 %v1776, %v1775
  %v1825 = vpack.c.b16 %v1778, %v1777
  %v1826 = vpack.c.b16 %v1780, %v1779
  %v1827 = vpack.c.b16 %v1782, %v1781
  %v1828 = vpack.c.b16 %v1784, %v1783
  %v1829 = vpack.c.b16 %v1786, %v1785
  %v1830 = vpack.c.b16 %v1788, %v1787
  %v1831 = vpack.c.b16 %v1790, %v1789
  %v1832 = vpack.c.b16 %v1792, %v1791
  %v1833 = vpack.c.b16 %v1794, %v1793
  %v1834 = vpack.c.b16 %v1796, %v1795
  %v1835 = vpack.c.b16 %v1798, %v1797
  %v1836 = vpack.c.b16 %v1800, %v1799
  %v1837 = vpack.c.b16 %v1802, %v1801
  %v1838 = vpack.c.b16 %v1804, %v1803
  %v1839 = vpack.c.b16 %v1806, %v1805
  %v1840 = vpack.c.b16 %v1808, %v1807
  %v1889 = vunpack.c.l.b16 %v1661
  %v1890 = vunpack.c.l.b16 %v1662
  %v1891 = vunpack.c.l.b16 %v1663
  %v1892 = vunpack.c.l.b16 %v1664
  %v1893 = vunpack.c.l.b16 %v1665
  %v1894 = vunpack.c.l.b16 %v1666
  %v1895 = vunpack.c.l.b16 %v1667
  %v1896 = vunpack.c.l.b16 %v1668
  %v1897 = vunpack.c.l.b16 %v1669
  %v1898 = vunpack.c.l.b16 %v1670
  %v1899 = vunpack.c.l.b16 %v1671
  %v1900 = vunpack.c.l.b16 %v1672
  %v1901 = vunpack.c.l.b16 %v1673
  %v1902 = vunpack.c.l.b16 %v1674
  %v1903 = vunpack.c.l.b16 %v1675
  %v1904 = vunpack.c.l.b16 %v1676
  %v1905 = vpack.c.b16 %v1890, %v1889
  %v1906 = vpack.c.b16 %v1892, %v1891
  %v1907 = vpack.c.b16 %v1894, %v1893
  %v1908 = vpack.c.b16 %v1896, %v1895
  %v1909 = vpack.c.b16 %v1898, %v1897
  %v1910 = vpack.c.b16 %v1900, %v1899
  %v1911 = vpack.c.b16 %v1902, %v1901
  %v1912 = vpack.c.b16 %v1904, %v1903
  %1921 = vmatpush.bf16.msra.mxu0 %v1912
  %1922 = vmatpush.bf16.msra.mxu0 %v1911
  %1923 = vmatpush.bf16.msra.mxu0 %v1910
  %1924 = vmatpush.bf16.msra.mxu0 %v1909
  %1925 = vmatpush.bf16.msra.mxu0 %v1908
  %1926 = vmatpush.bf16.msra.mxu0 %v1907
  %1927 = vmatpush.bf16.msra.mxu0 %v1906
  %1928 = vmatpush.bf16.msra.mxu0 %v1905
  %1929 = vmatmul.bf16.gmra.mxu0 %v1809
  %v1930 = vpop.f32.mrf.mxu0
  %v1931 = vadd.f32 %v1679, %v1930
  %v1932 = vpop.f32.mrf.mxu0
  %v1933 = vadd.f32 %v1679, %v1932
  %1934 = vmatmul.bf16.gmra.mxu0 %v1810
  %v1935 = vpop.f32.mrf.mxu0
  %v1936 = vadd.f32 %v1679, %v1935
  %v1937 = vpop.f32.mrf.mxu0
  %v1938 = vadd.f32 %v1679, %v1937
  %1939 = vmatmul.bf16.gmra.mxu0 %v1811
  %v1940 = vpop.f32.mrf.mxu0
  %v1941 = vadd.f32 %v1679, %v1940
  %v1942 = vpop.f32.mrf.mxu0
  %v1943 = vadd.f32 %v1679, %v1942
  %1944 = vmatmul.bf16.gmra.mxu0 %v1812
  %v1945 = vpop.f32.mrf.mxu0
  %v1946 = vadd.f32 %v1679, %v1945
  %v1947 = vpop.f32.mrf.mxu0
  %v1948 = vadd.f32 %v1679, %v1947
  %1949 = vmatmul.bf16.gmra.mxu0 %v1813
  %v1950 = vpop.f32.mrf.mxu0
  %v1951 = vadd.f32 %v1679, %v1950
  %v1952 = vpop.f32.mrf.mxu0
  %v1953 = vadd.f32 %v1679, %v1952
  %1954 = vmatmul.bf16.gmra.mxu0 %v1814
  %v1955 = vpop.f32.mrf.mxu0
  %v1956 = vadd.f32 %v1679, %v1955
  %v1957 = vpop.f32.mrf.mxu0
  %v1958 = vadd.f32 %v1679, %v1957
  %1959 = vmatmul.bf16.gmra.mxu0 %v1815
  %v1960 = vpop.f32.mrf.mxu0
  %v1961 = vadd.f32 %v1679, %v1960
  %v1962 = vpop.f32.mrf.mxu0
  %v1963 = vadd.f32 %v1679, %v1962
  %1964 = vmatmul.bf16.gmra.mxu0 %v1816
  %v1965 = vpop.f32.mrf.mxu0
  %v1966 = vadd.f32 %v1679, %v1965
  %v1967 = vpop.f32.mrf.mxu0
  %v1968 = vadd.f32 %v1679, %v1967
  %1969 = vmatmul.bf16.gmra.mxu0 %v1817
  %v1970 = vpop.f32.mrf.mxu0
  %v1971 = vadd.f32 %v1679, %v1970
  %v1972 = vpop.f32.mrf.mxu0
  %v1973 = vadd.f32 %v1679, %v1972
  %1974 = vmatmul.bf16.gmra.mxu0 %v1818
  %v1975 = vpop.f32.mrf.mxu0
  %v1976 = vadd.f32 %v1679, %v1975
  %v1977 = vpop.f32.mrf.mxu0
  %v1978 = vadd.f32 %v1679, %v1977
  %1979 = vmatmul.bf16.gmra.mxu0 %v1819
  %v1980 = vpop.f32.mrf.mxu0
  %v1981 = vadd.f32 %v1679, %v1980
  %v1982 = vpop.f32.mrf.mxu0
  %v1983 = vadd.f32 %v1679, %v1982
  %1984 = vmatmul.bf16.gmra.mxu0 %v1820
  %v1985 = vpop.f32.mrf.mxu0
  %v1986 = vadd.f32 %v1679, %v1985
  %v1987 = vpop.f32.mrf.mxu0
  %v1988 = vadd.f32 %v1679, %v1987
  %1989 = vmatmul.bf16.gmra.mxu0 %v1821
  %v1990 = vpop.f32.mrf.mxu0
  %v1991 = vadd.f32 %v1679, %v1990
  %v1992 = vpop.f32.mrf.mxu0
  %v1993 = vadd.f32 %v1679, %v1992
  %1994 = vmatmul.bf16.gmra.mxu0 %v1822
  %v1995 = vpop.f32.mrf.mxu0
  %v1996 = vadd.f32 %v1679, %v1995
  %v1997 = vpop.f32.mrf.mxu0
  %v1998 = vadd.f32 %v1679, %v1997
  %1999 = vmatmul.bf16.gmra.mxu0 %v1823
  %v2000 = vpop.f32.mrf.mxu0
  %v2001 = vadd.f32 %v1679, %v2000
  %v2002 = vpop.f32.mrf.mxu0
  %v2003 = vadd.f32 %v1679, %v2002
  %2004 = vmatmul.bf16.gmra.mxu0 %v1824
  %v2005 = vpop.f32.mrf.mxu0
  %v2006 = vadd.f32 %v1679, %v2005
  %v2007 = vpop.f32.mrf.mxu0
  %v2008 = vadd.f32 %v1679, %v2007
  %2009 = vmatmul.bf16.gmra.mxu0 %v1825
  %v2010 = vpop.f32.mrf.mxu0
  %v2011 = vadd.f32 %v1679, %v2010
  %v2012 = vpop.f32.mrf.mxu0
  %v2013 = vadd.f32 %v1679, %v2012
  %2014 = vmatmul.bf16.gmra.mxu0 %v1826
  %v2015 = vpop.f32.mrf.mxu0
  %v2016 = vadd.f32 %v1679, %v2015
  %v2017 = vpop.f32.mrf.mxu0
  %v2018 = vadd.f32 %v1679, %v2017
  %2019 = vmatmul.bf16.gmra.mxu0 %v1827
  %v2020 = vpop.f32.mrf.mxu0
  %v2021 = vadd.f32 %v1679, %v2020
  %v2022 = vpop.f32.mrf.mxu0
  %v2023 = vadd.f32 %v1679, %v2022
  %2024 = vmatmul.bf16.gmra.mxu0 %v1828
  %v2025 = vpop.f32.mrf.mxu0
  %v2026 = vadd.f32 %v1679, %v2025
  %v2027 = vpop.f32.mrf.mxu0
  %v2028 = vadd.f32 %v1679, %v2027
  %2029 = vmatmul.bf16.gmra.mxu0 %v1829
  %v2030 = vpop.f32.mrf.mxu0
  %v2031 = vadd.f32 %v1679, %v2030
  %v2032 = vpop.f32.mrf.mxu0
  %v2033 = vadd.f32 %v1679, %v2032
  %2034 = vmatmul.bf16.gmra.mxu0 %v1830
  %v2035 = vpop.f32.mrf.mxu0
  %v2036 = vadd.f32 %v1679, %v2035
  %v2037 = vpop.f32.mrf.mxu0
  %v2038 = vadd.f32 %v1679, %v2037
  %2039 = vmatmul.bf16.gmra.mxu0 %v1831
  %v2040 = vpop.f32.mrf.mxu0
  %v2041 = vadd.f32 %v1679, %v2040
  %v2042 = vpop.f32.mrf.mxu0
  %v2043 = vadd.f32 %v1679, %v2042
  %2044 = vmatmul.bf16.gmra.mxu0 %v1832
  %v2045 = vpop.f32.mrf.mxu0
  %v2046 = vadd.f32 %v1679, %v2045
  %v2047 = vpop.f32.mrf.mxu0
  %v2048 = vadd.f32 %v1679, %v2047
  %2049 = vmatmul.bf16.gmra.mxu0 %v1833
  %v2050 = vpop.f32.mrf.mxu0
  %v2051 = vadd.f32 %v1679, %v2050
  %v2052 = vpop.f32.mrf.mxu0
  %v2053 = vadd.f32 %v1679, %v2052
  %2054 = vmatmul.bf16.gmra.mxu0 %v1834
  %v2055 = vpop.f32.mrf.mxu0
  %v2056 = vadd.f32 %v1679, %v2055
  %v2057 = vpop.f32.mrf.mxu0
  %v2058 = vadd.f32 %v1679, %v2057
  %2059 = vmatmul.bf16.gmra.mxu0 %v1835
  %v2060 = vpop.f32.mrf.mxu0
  %v2061 = vadd.f32 %v1679, %v2060
  %v2062 = vpop.f32.mrf.mxu0
  %v2063 = vadd.f32 %v1679, %v2062
  %2064 = vmatmul.bf16.gmra.mxu0 %v1836
  %v2065 = vpop.f32.mrf.mxu0
  %v2066 = vadd.f32 %v1679, %v2065
  %v2067 = vpop.f32.mrf.mxu0
  %v2068 = vadd.f32 %v1679, %v2067
  %2069 = vmatmul.bf16.gmra.mxu0 %v1837
  %v2070 = vpop.f32.mrf.mxu0
  %v2071 = vadd.f32 %v1679, %v2070
  %v2072 = vpop.f32.mrf.mxu0
  %v2073 = vadd.f32 %v1679, %v2072
  %2074 = vmatmul.bf16.gmra.mxu0 %v1838
  %v2075 = vpop.f32.mrf.mxu0
  %v2076 = vadd.f32 %v1679, %v2075
  %v2077 = vpop.f32.mrf.mxu0
  %v2078 = vadd.f32 %v1679, %v2077
  %2079 = vmatmul.bf16.gmra.mxu0 %v1839
  %v2080 = vpop.f32.mrf.mxu0
  %v2081 = vadd.f32 %v1679, %v2080
  %v2082 = vpop.f32.mrf.mxu0
  %v2083 = vadd.f32 %v1679, %v2082
  %2084 = vmatmul.bf16.gmra.mxu0 %v1840
  %v2085 = vpop.f32.mrf.mxu0
  %v2086 = vadd.f32 %v1679, %v2085
  %v2087 = vpop.f32.mrf.mxu0
  %v2088 = vadd.f32 %v1679, %v2087
  %2089 = vdwg.mxu0
  %v2090 = vmax.f32 %v1931, 0.0
  %v2091 = vmax.f32 %v1933, 0.0
  %v2092 = vmax.f32 %v1936, 0.0
  %v2093 = vmax.f32 %v1938, 0.0
  %v2094 = vmax.f32 %v1941, 0.0
  %v2095 = vmax.f32 %v1943, 0.0
  %v2096 = vmax.f32 %v1946, 0.0
  %v2097 = vmax.f32 %v1948, 0.0
  %v2098 = vmax.f32 %v1951, 0.0
  %v2099 = vmax.f32 %v1953, 0.0
  %v2100 = vmax.f32 %v1956, 0.0
  %v2101 = vmax.f32 %v1958, 0.0
  %v2102 = vmax.f32 %v1961, 0.0
  %v2103 = vmax.f32 %v1963, 0.0
  %v2104 = vmax.f32 %v1966, 0.0
  %v2105 = vmax.f32 %v1968, 0.0
  %v2106 = vmax.f32 %v1971, 0.0
  %v2107 = vmax.f32 %v1973, 0.0
  %v2108 = vmax.f32 %v1976, 0.0
  %v2109 = vmax.f32 %v1978, 0.0
  %v2110 = vmax.f32 %v1981, 0.0
  %v2111 = vmax.f32 %v1983, 0.0
  %v2112 = vmax.f32 %v1986, 0.0
  %v2113 = vmax.f32 %v1988, 0.0
  %v2114 = vmax.f32 %v1991, 0.0
  %v2115 = vmax.f32 %v1993, 0.0
  %v2116 = vmax.f32 %v1996, 0.0
  %v2117 = vmax.f32 %v1998, 0.0
  %v2118 = vmax.f32 %v2001, 0.0
  %v2119 = vmax.f32 %v2003, 0.0
  %v2120 = vmax.f32 %v2006, 0.0
  %v2121 = vmax.f32 %v2008, 0.0
  %v2122 = vmax.f32 %v2011, 0.0
  %v2123 = vmax.f32 %v2013, 0.0
  %v2124 = vmax.f32 %v2016, 0.0
  %v2125 = vmax.f32 %v2018, 0.0
  %v2126 = vmax.f32 %v2021, 0.0
  %v2127 = vmax.f32 %v2023, 0.0
  %v2128 = vmax.f32 %v2026, 0.0
  %v2129 = vmax.f32 %v2028, 0.0
  %v2130 = vmax.f32 %v2031, 0.0
  %v2131 = vmax.f32 %v2033, 0.0
  %v2132 = vmax.f32 %v2036, 0.0
  %v2133 = vmax.f32 %v2038, 0.0
  %v2134 = vmax.f32 %v2041, 0.0
  %v2135 = vmax.f32 %v2043, 0.0
  %v2136 = vmax.f32 %v2046, 0.0
  %v2137 = vmax.f32 %v2048, 0.0
  %v2138 = vmax.f32 %v2051, 0.0
  %v2139 = vmax.f32 %v2053, 0.0
  %v2140 = vmax.f32 %v2056, 0.0
  %v2141 = vmax.f32 %v2058, 0.0
  %v2142 = vmax.f32 %v2061, 0.0
  %v2143 = vmax.f32 %v2063, 0.0
  %v2144 = vmax.f32 %v2066, 0.0
  %v2145 = vmax.f32 %v2068, 0.0
  %v2146 = vmax.f32 %v2071, 0.0
  %v2147 = vmax.f32 %v2073, 0.0
  %v2148 = vmax.f32 %v2076, 0.0
  %v2149 = vmax.f32 %v2078, 0.0
  %v2150 = vmax.f32 %v2081, 0.0
  %v2151 = vmax.f32 %v2083, 0.0
  %v2152 = vmax.f32 %v2086, 0.0
  %v2153 = vmax.f32 %v2088, 0.0
  %v2154 = vpack.c.bf16 %v2091, %v2090
  %v2155 = vpack.c.bf16 %v2093, %v2092
  %v2156 = vpack.c.bf16 %v2095, %v2094
  %v2157 = vpack.c.bf16 %v2097, %v2096
  %v2158 = vpack.c.bf16 %v2099, %v2098
  %v2159 = vpack.c.bf16 %v2101, %v2100
  %v2160 = vpack.c.bf16 %v2103, %v2102
  %v2161 = vpack.c.bf16 %v2105, %v2104
  %v2162 = vpack.c.bf16 %v2107, %v2106
  %v2163 = vpack.c.bf16 %v2109, %v2108
  %v2164 = vpack.c.bf16 %v2111, %v2110
  %v2165 = vpack.c.bf16 %v2113, %v2112
  %v2166 = vpack.c.bf16 %v2115, %v2114
  %v2167 = vpack.c.bf16 %v2117, %v2116
  %v2168 = vpack.c.bf16 %v2119, %v2118
  %v2169 = vpack.c.bf16 %v2121, %v2120
  %v2170 = vpack.c.bf16 %v2123, %v2122
  %v2171 = vpack.c.bf16 %v2125, %v2124
  %v2172 = vpack.c.bf16 %v2127, %v2126
  %v2173 = vpack.c.bf16 %v2129, %v2128
  %v2174 = vpack.c.bf16 %v2131, %v2130
  %v2175 = vpack.c.bf16 %v2133, %v2132
  %v2176 = vpack.c.bf16 %v2135, %v2134
  %v2177 = vpack.c.bf16 %v2137, %v2136
  %v2178 = vpack.c.bf16 %v2139, %v2138
  %v2179 = vpack.c.bf16 %v2141, %v2140
  %v2180 = vpack.c.bf16 %v2143, %v2142
  %v2181 = vpack.c.bf16 %v2145, %v2144
  %v2182 = vpack.c.bf16 %v2147, %v2146
  %v2183 = vpack.c.bf16 %v2149, %v2148
  %v2184 = vpack.c.bf16 %v2151, %v2150
  %v2185 = vpack.c.bf16 %v2153, %v2152
  %v2186 = vld [vmem:[%s7] sm:$0xf]
  %v2187 = vld [vmem:[%s7 + $0x4] sm:$0xf]
  %v2188 = vld [vmem:[%s7 + $0x8] sm:$0xf]
  %v2189 = vld [vmem:[%s7 + $0xc] sm:$0xf]
  %v2190 = vld [vmem:[%s7 + $0x10] sm:$0xf]
  %v2191 = vld [vmem:[%s7 + $0x14] sm:$0xf]
  %v2192 = vld [vmem:[%s7 + $0x18] sm:$0xf]
  %v2193 = vld [vmem:[%s7 + $0x1c] sm:$0xf]
  %v2194 = vld [vmem:[%s7 + $0x20] sm:$0xf]
  %v2195 = vld [vmem:[%s7 + $0x24] sm:$0xf]
  %v2196 = vld [vmem:[%s7 + $0x28] sm:$0xf]
  %v2197 = vld [vmem:[%s7 + $0x2c] sm:$0xf]
  %v2198 = vld [vmem:[%s7 + $0x30] sm:$0xf]
  %v2199 = vld [vmem:[%s7 + $0x34] sm:$0xf]
  %v2200 = vld [vmem:[%s7 + $0x38] sm:$0xf]
  %v2201 = vld [vmem:[%s7 + $0x3c] sm:$0xf]
  %v2202 = vld [vmem:[%s8] sm:$0x1]
  %v2204 = vperm.slane %v2202, 0
  %v2222 = vunpack.c.l.b16 %v2186
  %v2223 = vunpack.c.l.b16 %v2187
  %v2224 = vunpack.c.l.b16 %v2188
  %v2225 = vunpack.c.l.b16 %v2189
  %v2226 = vunpack.c.l.b16 %v2190
  %v2227 = vunpack.c.l.b16 %v2191
  %v2228 = vunpack.c.l.b16 %v2192
  %v2229 = vunpack.c.l.b16 %v2193
  %v2230 = vunpack.c.l.b16 %v2194
  %v2231 = vunpack.c.l.b16 %v2195
  %v2232 = vunpack.c.l.b16 %v2196
  %v2233 = vunpack.c.l.b16 %v2197
  %v2234 = vunpack.c.l.b16 %v2198
  %v2235 = vunpack.c.l.b16 %v2199
  %v2236 = vunpack.c.l.b16 %v2200
  %v2237 = vunpack.c.l.b16 %v2201
  %v2238 = vpack.c.b16 %v2223, %v2222
  %v2239 = vpack.c.b16 %v2225, %v2224
  %v2240 = vpack.c.b16 %v2227, %v2226
  %v2241 = vpack.c.b16 %v2229, %v2228
  %v2242 = vpack.c.b16 %v2231, %v2230
  %v2243 = vpack.c.b16 %v2233, %v2232
  %v2244 = vpack.c.b16 %v2235, %v2234
  %v2245 = vpack.c.b16 %v2237, %v2236
  %2254 = vmatpush.bf16.msra.mxu0 %v2245
  %2255 = vmatpush.bf16.msra.mxu0 %v2244
  %2256 = vmatpush.bf16.msra.mxu0 %v2243
  %2257 = vmatpush.bf16.msra.mxu0 %v2242
  %2258 = vmatpush.bf16.msra.mxu0 %v2241
  %2259 = vmatpush.bf16.msra.mxu0 %v2240
  %2260 = vmatpush.bf16.msra.mxu0 %v2239
  %2261 = vmatpush.bf16.msra.mxu0 %v2238
  %2262 = vmatmul.bf16.gmra.mxu0 %v2154
  %v2263 = vpop.f32.mrf.mxu0
  %v2264 = vadd.f32 %v2204, %v2263
  %v2265 = vpop.f32.mrf.mxu0
  %v2266 = vadd.f32 %v2204, %v2265
  %2267 = vmatmul.bf16.gmra.mxu0 %v2155
  %v2268 = vpop.f32.mrf.mxu0
  %v2269 = vadd.f32 %v2204, %v2268
  %v2270 = vpop.f32.mrf.mxu0
  %v2271 = vadd.f32 %v2204, %v2270
  %2272 = vmatmul.bf16.gmra.mxu0 %v2156
  %v2273 = vpop.f32.mrf.mxu0
  %v2274 = vadd.f32 %v2204, %v2273
  %v2275 = vpop.f32.mrf.mxu0
  %v2276 = vadd.f32 %v2204, %v2275
  %2277 = vmatmul.bf16.gmra.mxu0 %v2157
  %v2278 = vpop.f32.mrf.mxu0
  %v2279 = vadd.f32 %v2204, %v2278
  %v2280 = vpop.f32.mrf.mxu0
  %v2281 = vadd.f32 %v2204, %v2280
  %2282 = vmatmul.bf16.gmra.mxu0 %v2158
  %v2283 = vpop.f32.mrf.mxu0
  %v2284 = vadd.f32 %v2204, %v2283
  %v2285 = vpop.f32.mrf.mxu0
  %v2286 = vadd.f32 %v2204, %v2285
  %2287 = vmatmul.bf16.gmra.mxu0 %v2159
  %v2288 = vpop.f32.mrf.mxu0
  %v2289 = vadd.f32 %v2204, %v2288
  %v2290 = vpop.f32.mrf.mxu0
  %v2291 = vadd.f32 %v2204, %v2290
  %2292 = vmatmul.bf16.gmra.mxu0 %v2160
  %v2293 = vpop.f32.mrf.mxu0
  %v2294 = vadd.f32 %v2204, %v2293
  %v2295 = vpop.f32.mrf.mxu0
  %v2296 = vadd.f32 %v2204, %v2295
  %2297 = vmatmul.bf16.gmra.mxu0 %v2161
  %v2298 = vpop.f32.mrf.mxu0
  %v2299 = vadd.f32 %v2204, %v2298
  %v2300 = vpop.f32.mrf.mxu0
  %v2301 = vadd.f32 %v2204, %v2300
  %2302 = vmatmul.bf16.gmra.mxu0 %v2162
  %v2303 = vpop.f32.mrf.mxu0
  %v2304 = vadd.f32 %v2204, %v2303
  %v2305 = vpop.f32.mrf.mxu0
  %v2306 = vadd.f32 %v2204, %v2305
  %2307 = vmatmul.bf16.gmra.mxu0 %v2163
  %v2308 = vpop.f32.mrf.mxu0
  %v2309 = vadd.f32 %v2204, %v2308
  %v2310 = vpop.f32.mrf.mxu0
  %v2311 = vadd.f32 %v2204, %v2310
  %2312 = vmatmul.bf16.gmra.mxu0 %v2164
  %v2313 = vpop.f32.mrf.mxu0
  %v2314 = vadd.f32 %v2204, %v2313
  %v2315 = vpop.f32.mrf.mxu0
  %v2316 = vadd.f32 %v2204, %v2315
  %2317 = vmatmul.bf16.gmra.mxu0 %v2165
  %v2318 = vpop.f32.mrf.mxu0
  %v2319 = vadd.f32 %v2204, %v2318
  %v2320 = vpop.f32.mrf.mxu0
  %v2321 = vadd.f32 %v2204, %v2320
  %2322 = vmatmul.bf16.gmra.mxu0 %v2166
  %v2323 = vpop.f32.mrf.mxu0
  %v2324 = vadd.f32 %v2204, %v2323
  %v2325 = vpop.f32.mrf.mxu0
  %v2326 = vadd.f32 %v2204, %v2325
  %2327 = vmatmul.bf16.gmra.mxu0 %v2167
  %v2328 = vpop.f32.mrf.mxu0
  %v2329 = vadd.f32 %v2204, %v2328
  %v2330 = vpop.f32.mrf.mxu0
  %v2331 = vadd.f32 %v2204, %v2330
  %2332 = vmatmul.bf16.gmra.mxu0 %v2168
  %v2333 = vpop.f32.mrf.mxu0
  %v2334 = vadd.f32 %v2204, %v2333
  %v2335 = vpop.f32.mrf.mxu0
  %v2336 = vadd.f32 %v2204, %v2335
  %2337 = vmatmul.bf16.gmra.mxu0 %v2169
  %v2338 = vpop.f32.mrf.mxu0
  %v2339 = vadd.f32 %v2204, %v2338
  %v2340 = vpop.f32.mrf.mxu0
  %v2341 = vadd.f32 %v2204, %v2340
  %2342 = vmatmul.bf16.gmra.mxu0 %v2170
  %v2343 = vpop.f32.mrf.mxu0
  %v2344 = vadd.f32 %v2204, %v2343
  %v2345 = vpop.f32.mrf.mxu0
  %v2346 = vadd.f32 %v2204, %v2345
  %2347 = vmatmul.bf16.gmra.mxu0 %v2171
  %v2348 = vpop.f32.mrf.mxu0
  %v2349 = vadd.f32 %v2204, %v2348
  %v2350 = vpop.f32.mrf.mxu0
  %v2351 = vadd.f32 %v2204, %v2350
  %2352 = vmatmul.bf16.gmra.mxu0 %v2172
  %v2353 = vpop.f32.mrf.mxu0
  %v2354 = vadd.f32 %v2204, %v2353
  %v2355 = vpop.f32.mrf.mxu0
  %v2356 = vadd.f32 %v2204, %v2355
  %2357 = vmatmul.bf16.gmra.mxu0 %v2173
  %v2358 = vpop.f32.mrf.mxu0
  %v2359 = vadd.f32 %v2204, %v2358
  %v2360 = vpop.f32.mrf.mxu0
  %v2361 = vadd.f32 %v2204, %v2360
  %2362 = vmatmul.bf16.gmra.mxu0 %v2174
  %v2363 = vpop.f32.mrf.mxu0
  %v2364 = vadd.f32 %v2204, %v2363
  %v2365 = vpop.f32.mrf.mxu0
  %v2366 = vadd.f32 %v2204, %v2365
  %2367 = vmatmul.bf16.gmra.mxu0 %v2175
  %v2368 = vpop.f32.mrf.mxu0
  %v2369 = vadd.f32 %v2204, %v2368
  %v2370 = vpop.f32.mrf.mxu0
  %v2371 = vadd.f32 %v2204, %v2370
  %2372 = vmatmul.bf16.gmra.mxu0 %v2176
  %v2373 = vpop.f32.mrf.mxu0
  %v2374 = vadd.f32 %v2204, %v2373
  %v2375 = vpop.f32.mrf.mxu0
  %v2376 = vadd.f32 %v2204, %v2375
  %2377 = vmatmul.bf16.gmra.mxu0 %v2177
  %v2378 = vpop.f32.mrf.mxu0
  %v2379 = vadd.f32 %v2204, %v2378
  %v2380 = vpop.f32.mrf.mxu0
  %v2381 = vadd.f32 %v2204, %v2380
  %2382 = vmatmul.bf16.gmra.mxu0 %v2178
  %v2383 = vpop.f32.mrf.mxu0
  %v2384 = vadd.f32 %v2204, %v2383
  %v2385 = vpop.f32.mrf.mxu0
  %v2386 = vadd.f32 %v2204, %v2385
  %2387 = vmatmul.bf16.gmra.mxu0 %v2179
  %v2388 = vpop.f32.mrf.mxu0
  %v2389 = vadd.f32 %v2204, %v2388
  %v2390 = vpop.f32.mrf.mxu0
  %v2391 = vadd.f32 %v2204, %v2390
  %2392 = vmatmul.bf16.gmra.mxu0 %v2180
  %v2393 = vpop.f32.mrf.mxu0
  %v2394 = vadd.f32 %v2204, %v2393
  %v2395 = vpop.f32.mrf.mxu0
  %v2396 = vadd.f32 %v2204, %v2395
  %2397 = vmatmul.bf16.gmra.mxu0 %v2181
  %v2398 = vpop.f32.mrf.mxu0
  %v2399 = vadd.f32 %v2204, %v2398
  %v2400 = vpop.f32.mrf.mxu0
  %v2401 = vadd.f32 %v2204, %v2400
  %2402 = vmatmul.bf16.gmra.mxu0 %v2182
  %v2403 = vpop.f32.mrf.mxu0
  %v2404 = vadd.f32 %v2204, %v2403
  %v2405 = vpop.f32.mrf.mxu0
  %v2406 = vadd.f32 %v2204, %v2405
  %2407 = vmatmul.bf16.gmra.mxu0 %v2183
  %v2408 = vpop.f32.mrf.mxu0
  %v2409 = vadd.f32 %v2204, %v2408
  %v2410 = vpop.f32.mrf.mxu0
  %v2411 = vadd.f32 %v2204, %v2410
  %2412 = vmatmul.bf16.gmra.mxu0 %v2184
  %v2413 = vpop.f32.mrf.mxu0
  %v2414 = vadd.f32 %v2204, %v2413
  %v2415 = vpop.f32.mrf.mxu0
  %v2416 = vadd.f32 %v2204, %v2415
  %2417 = vmatmul.bf16.gmra.mxu0 %v2185
  %v2418 = vpop.f32.mrf.mxu0
  %v2419 = vadd.f32 %v2204, %v2418
  %v2420 = vpop.f32.mrf.mxu0
  %v2421 = vadd.f32 %v2204, %v2420
  %2422 = vdwg.mxu0
  %v2423 = vmax.f32 %v2264, 0.0
  %v2424 = vmax.f32 %v2266, 0.0
  %v2425 = vmax.f32 %v2269, 0.0
  %v2426 = vmax.f32 %v2271, 0.0
  %v2427 = vmax.f32 %v2274, 0.0
  %v2428 = vmax.f32 %v2276, 0.0
  %v2429 = vmax.f32 %v2279, 0.0
  %v2430 = vmax.f32 %v2281, 0.0
  %v2431 = vmax.f32 %v2284, 0.0
  %v2432 = vmax.f32 %v2286, 0.0
  %v2433 = vmax.f32 %v2289, 0.0
  %v2434 = vmax.f32 %v2291, 0.0
  %v2435 = vmax.f32 %v2294, 0.0
  %v2436 = vmax.f32 %v2296, 0.0
  %v2437 = vmax.f32 %v2299, 0.0
  %v2438 = vmax.f32 %v2301, 0.0
  %v2439 = vmax.f32 %v2304, 0.0
  %v2440 = vmax.f32 %v2306, 0.0
  %v2441 = vmax.f32 %v2309, 0.0
  %v2442 = vmax.f32 %v2311, 0.0
  %v2443 = vmax.f32 %v2314, 0.0
  %v2444 = vmax.f32 %v2316, 0.0
  %v2445 = vmax.f32 %v2319, 0.0
  %v2446 = vmax.f32 %v2321, 0.0
  %v2447 = vmax.f32 %v2324, 0.0
  %v2448 = vmax.f32 %v2326, 0.0
  %v2449 = vmax.f32 %v2329, 0.0
  %v2450 = vmax.f32 %v2331, 0.0
  %v2451 = vmax.f32 %v2334, 0.0
  %v2452 = vmax.f32 %v2336, 0.0
  %v2453 = vmax.f32 %v2339, 0.0
  %v2454 = vmax.f32 %v2341, 0.0
  %v2455 = vmax.f32 %v2344, 0.0
  %v2456 = vmax.f32 %v2346, 0.0
  %v2457 = vmax.f32 %v2349, 0.0
  %v2458 = vmax.f32 %v2351, 0.0
  %v2459 = vmax.f32 %v2354, 0.0
  %v2460 = vmax.f32 %v2356, 0.0
  %v2461 = vmax.f32 %v2359, 0.0
  %v2462 = vmax.f32 %v2361, 0.0
  %v2463 = vmax.f32 %v2364, 0.0
  %v2464 = vmax.f32 %v2366, 0.0
  %v2465 = vmax.f32 %v2369, 0.0
  %v2466 = vmax.f32 %v2371, 0.0
  %v2467 = vmax.f32 %v2374, 0.0
  %v2468 = vmax.f32 %v2376, 0.0
  %v2469 = vmax.f32 %v2379, 0.0
  %v2470 = vmax.f32 %v2381, 0.0
  %v2471 = vmax.f32 %v2384, 0.0
  %v2472 = vmax.f32 %v2386, 0.0
  %v2473 = vmax.f32 %v2389, 0.0
  %v2474 = vmax.f32 %v2391, 0.0
  %v2475 = vmax.f32 %v2394, 0.0
  %v2476 = vmax.f32 %v2396, 0.0
  %v2477 = vmax.f32 %v2399, 0.0
  %v2478 = vmax.f32 %v2401, 0.0
  %v2479 = vmax.f32 %v2404, 0.0
  %v2480 = vmax.f32 %v2406, 0.0
  %v2481 = vmax.f32 %v2409, 0.0
  %v2482 = vmax.f32 %v2411, 0.0
  %v2483 = vmax.f32 %v2414, 0.0
  %v2484 = vmax.f32 %v2416, 0.0
  %v2485 = vmax.f32 %v2419, 0.0
  %v2486 = vmax.f32 %v2421, 0.0
  %v2487 = vpack.c.bf16 %v2423, %v2423
  %v2488 = vpack.c.bf16 %v2424, %v2424
  %v2489 = vpack.c.bf16 %v2425, %v2425
  %v2490 = vpack.c.bf16 %v2426, %v2426
  %v2491 = vpack.c.bf16 %v2427, %v2427
  %v2492 = vpack.c.bf16 %v2428, %v2428
  %v2493 = vpack.c.bf16 %v2429, %v2429
  %v2494 = vpack.c.bf16 %v2430, %v2430
  %v2495 = vpack.c.bf16 %v2431, %v2431
  %v2496 = vpack.c.bf16 %v2432, %v2432
  %v2497 = vpack.c.bf16 %v2433, %v2433
  %v2498 = vpack.c.bf16 %v2434, %v2434
  %v2499 = vpack.c.bf16 %v2435, %v2435
  %v2500 = vpack.c.bf16 %v2436, %v2436
  %v2501 = vpack.c.bf16 %v2437, %v2437
  %v2502 = vpack.c.bf16 %v2438, %v2438
  %v2503 = vpack.c.bf16 %v2439, %v2439
  %v2504 = vpack.c.bf16 %v2440, %v2440
  %v2505 = vpack.c.bf16 %v2441, %v2441
  %v2506 = vpack.c.bf16 %v2442, %v2442
  %v2507 = vpack.c.bf16 %v2443, %v2443
  %v2508 = vpack.c.bf16 %v2444, %v2444
  %v2509 = vpack.c.bf16 %v2445, %v2445
  %v2510 = vpack.c.bf16 %v2446, %v2446
  %v2511 = vpack.c.bf16 %v2447, %v2447
  %v2512 = vpack.c.bf16 %v2448, %v2448
  %v2513 = vpack.c.bf16 %v2449, %v2449
  %v2514 = vpack.c.bf16 %v2450, %v2450
  %v2515 = vpack.c.bf16 %v2451, %v2451
  %v2516 = vpack.c.bf16 %v2452, %v2452
  %v2517 = vpack.c.bf16 %v2453, %v2453
  %v2518 = vpack.c.bf16 %v2454, %v2454
  %v2519 = vpack.c.bf16 %v2455, %v2455
  %v2520 = vpack.c.bf16 %v2456, %v2456
  %v2521 = vpack.c.bf16 %v2457, %v2457
  %v2522 = vpack.c.bf16 %v2458, %v2458
  %v2523 = vpack.c.bf16 %v2459, %v2459
  %v2524 = vpack.c.bf16 %v2460, %v2460
  %v2525 = vpack.c.bf16 %v2461, %v2461
  %v2526 = vpack.c.bf16 %v2462, %v2462
  %v2527 = vpack.c.bf16 %v2463, %v2463
  %v2528 = vpack.c.bf16 %v2464, %v2464
  %v2529 = vpack.c.bf16 %v2465, %v2465
  %v2530 = vpack.c.bf16 %v2466, %v2466
  %v2531 = vpack.c.bf16 %v2467, %v2467
  %v2532 = vpack.c.bf16 %v2468, %v2468
  %v2533 = vpack.c.bf16 %v2469, %v2469
  %v2534 = vpack.c.bf16 %v2470, %v2470
  %v2535 = vpack.c.bf16 %v2471, %v2471
  %v2536 = vpack.c.bf16 %v2472, %v2472
  %v2537 = vpack.c.bf16 %v2473, %v2473
  %v2538 = vpack.c.bf16 %v2474, %v2474
  %v2539 = vpack.c.bf16 %v2475, %v2475
  %v2540 = vpack.c.bf16 %v2476, %v2476
  %v2541 = vpack.c.bf16 %v2477, %v2477
  %v2542 = vpack.c.bf16 %v2478, %v2478
  %v2543 = vpack.c.bf16 %v2479, %v2479
  %v2544 = vpack.c.bf16 %v2480, %v2480
  %v2545 = vpack.c.bf16 %v2481, %v2481
  %v2546 = vpack.c.bf16 %v2482, %v2482
  %v2547 = vpack.c.bf16 %v2483, %v2483
  %v2548 = vpack.c.bf16 %v2484, %v2484
  %v2549 = vpack.c.bf16 %v2485, %v2485
  %v2550 = vpack.c.bf16 %v2486, %v2486
  %v2551 = vunpack.c.l.bf16 %v2487
  %v2552 = vunpack.c.l.bf16 %v2488
  %v2553 = vunpack.c.l.bf16 %v2489
  %v2554 = vunpack.c.l.bf16 %v2490
  %v2555 = vunpack.c.l.bf16 %v2491
  %v2556 = vunpack.c.l.bf16 %v2492
  %v2557 = vunpack.c.l.bf16 %v2493
  %v2558 = vunpack.c.l.bf16 %v2494
  %v2559 = vunpack.c.l.bf16 %v2495
  %v2560 = vunpack.c.l.bf16 %v2496
  %v2561 = vunpack.c.l.bf16 %v2497
  %v2562 = vunpack.c.l.bf16 %v2498
  %v2563 = vunpack.c.l.bf16 %v2499
  %v2564 = vunpack.c.l.bf16 %v2500
  %v2565 = vunpack.c.l.bf16 %v2501
  %v2566 = vunpack.c.l.bf16 %v2502
  %v2567 = vunpack.c.l.bf16 %v2503
  %v2568 = vunpack.c.l.bf16 %v2504
  %v2569 = vunpack.c.l.bf16 %v2505
  %v2570 = vunpack.c.l.bf16 %v2506
  %v2571 = vunpack.c.l.bf16 %v2507
  %v2572 = vunpack.c.l.bf16 %v2508
  %v2573 = vunpack.c.l.bf16 %v2509
  %v2574 = vunpack.c.l.bf16 %v2510
  %v2575 = vunpack.c.l.bf16 %v2511
  %v2576 = vunpack.c.l.bf16 %v2512
  %v2577 = vunpack.c.l.bf16 %v2513
  %v2578 = vunpack.c.l.bf16 %v2514
  %v2579 = vunpack.c.l.bf16 %v2515
  %v2580 = vunpack.c.l.bf16 %v2516
  %v2581 = vunpack.c.l.bf16 %v2517
  %v2582 = vunpack.c.l.bf16 %v2518
  %v2583 = vunpack.c.l.bf16 %v2519
  %v2584 = vunpack.c.l.bf16 %v2520
  %v2585 = vunpack.c.l.bf16 %v2521
  %v2586 = vunpack.c.l.bf16 %v2522
  %v2587 = vunpack.c.l.bf16 %v2523
  %v2588 = vunpack.c.l.bf16 %v2524
  %v2589 = vunpack.c.l.bf16 %v2525
  %v2590 = vunpack.c.l.bf16 %v2526
  %v2591 = vunpack.c.l.bf16 %v2527
  %v2592 = vunpack.c.l.bf16 %v2528
  %v2593 = vunpack.c.l.bf16 %v2529
  %v2594 = vunpack.c.l.bf16 %v2530
  %v2595 = vunpack.c.l.bf16 %v2531
  %v2596 = vunpack.c.l.bf16 %v2532
  %v2597 = vunpack.c.l.bf16 %v2533
  %v2598 = vunpack.c.l.bf16 %v2534
  %v2599 = vunpack.c.l.bf16 %v2535
  %v2600 = vunpack.c.l.bf16 %v2536
  %v2601 = vunpack.c.l.bf16 %v2537
  %v2602 = vunpack.c.l.bf16 %v2538
  %v2603 = vunpack.c.l.bf16 %v2539
  %v2604 = vunpack.c.l.bf16 %v2540
  %v2605 = vunpack.c.l.bf16 %v2541
  %v2606 = vunpack.c.l.bf16 %v2542
  %v2607 = vunpack.c.l.bf16 %v2543
  %v2608 = vunpack.c.l.bf16 %v2544
  %v2609 = vunpack.c.l.bf16 %v2545
  %v2610 = vunpack.c.l.bf16 %v2546
  %v2611 = vunpack.c.l.bf16 %v2547
  %v2612 = vunpack.c.l.bf16 %v2548
  %v2613 = vunpack.c.l.bf16 %v2549
  %v2614 = vunpack.c.l.bf16 %v2550
  %v2615 = vmax.f32 %v2551, %v2552
  %v2616 = vrot.slane %v2615, 4
  %v2617 = vmax.f32 %v2615, %v2616
  %v2618 = vrot.slane %v2617, 2
  %v2619 = vmax.f32 %v2617, %v2618
  %v2620 = vrot.slane %v2619, 1
  %v2621 = vmax.f32 %v2619, %v2620
  %v2622 = vmax.f32 %v2553, %v2554
  %v2623 = vrot.slane %v2622, 4
  %v2624 = vmax.f32 %v2622, %v2623
  %v2625 = vrot.slane %v2624, 2
  %v2626 = vmax.f32 %v2624, %v2625
  %v2627 = vrot.slane %v2626, 1
  %v2628 = vmax.f32 %v2626, %v2627
  %v2629 = vmax.f32 %v2555, %v2556
  %v2630 = vrot.slane %v2629, 4
  %v2631 = vmax.f32 %v2629, %v2630
  %v2632 = vrot.slane %v2631, 2
  %v2633 = vmax.f32 %v2631, %v2632
  %v2634 = vrot.slane %v2633, 1
  %v2635 = vmax.f32 %v2633, %v2634
  %v2636 = vmax.f32 %v2557, %v2558
  %v2637 = vrot.slane %v2636, 4
  %v2638 = vmax.f32 %v2636, %v2637
  %v2639 = vrot.slane %v2638, 2
  %v2640 = vmax.f32 %v2638, %v2639
  %v2641 = vrot.slane %v2640, 1
  %v2642 = vmax.f32 %v2640, %v2641
  %v2643 = vmax.f32 %v2559, %v2560
  %v2644 = vrot.slane %v2643, 4
  %v2645 = vmax.f32 %v2643, %v2644
  %v2646 = vrot.slane %v2645, 2
  %v2647 = vmax.f32 %v2645, %v2646
  %v2648 = vrot.slane %v2647, 1
  %v2649 = vmax.f32 %v2647, %v2648
  %v2650 = vmax.f32 %v2561, %v2562
  %v2651 = vrot.slane %v2650, 4
  %v2652 = vmax.f32 %v2650, %v2651
  %v2653 = vrot.slane %v2652, 2
  %v2654 = vmax.f32 %v2652, %v2653
  %v2655 = vrot.slane %v2654, 1
  %v2656 = vmax.f32 %v2654, %v2655
  %v2657 = vmax.f32 %v2563, %v2564
  %v2658 = vrot.slane %v2657, 4
  %v2659 = vmax.f32 %v2657, %v2658
  %v2660 = vrot.slane %v2659, 2
  %v2661 = vmax.f32 %v2659, %v2660
  %v2662 = vrot.slane %v2661, 1
  %v2663 = vmax.f32 %v2661, %v2662
  %v2664 = vmax.f32 %v2565, %v2566
  %v2665 = vrot.slane %v2664, 4
  %v2666 = vmax.f32 %v2664, %v2665
  %v2667 = vrot.slane %v2666, 2
  %v2668 = vmax.f32 %v2666, %v2667
  %v2669 = vrot.slane %v2668, 1
  %v2670 = vmax.f32 %v2668, %v2669
  %v2671 = vmax.f32 %v2567, %v2568
  %v2672 = vrot.slane %v2671, 4
  %v2673 = vmax.f32 %v2671, %v2672
  %v2674 = vrot.slane %v2673, 2
  %v2675 = vmax.f32 %v2673, %v2674
  %v2676 = vrot.slane %v2675, 1
  %v2677 = vmax.f32 %v2675, %v2676
  %v2678 = vmax.f32 %v2569, %v2570
  %v2679 = vrot.slane %v2678, 4
  %v2680 = vmax.f32 %v2678, %v2679
  %v2681 = vrot.slane %v2680, 2
  %v2682 = vmax.f32 %v2680, %v2681
  %v2683 = vrot.slane %v2682, 1
  %v2684 = vmax.f32 %v2682, %v2683
  %v2685 = vmax.f32 %v2571, %v2572
  %v2686 = vrot.slane %v2685, 4
  %v2687 = vmax.f32 %v2685, %v2686
  %v2688 = vrot.slane %v2687, 2
  %v2689 = vmax.f32 %v2687, %v2688
  %v2690 = vrot.slane %v2689, 1
  %v2691 = vmax.f32 %v2689, %v2690
  %v2692 = vmax.f32 %v2573, %v2574
  %v2693 = vrot.slane %v2692, 4
  %v2694 = vmax.f32 %v2692, %v2693
  %v2695 = vrot.slane %v2694, 2
  %v2696 = vmax.f32 %v2694, %v2695
  %v2697 = vrot.slane %v2696, 1
  %v2698 = vmax.f32 %v2696, %v2697
  %v2699 = vmax.f32 %v2575, %v2576
  %v2700 = vrot.slane %v2699, 4
  %v2701 = vmax.f32 %v2699, %v2700
  %v2702 = vrot.slane %v2701, 2
  %v2703 = vmax.f32 %v2701, %v2702
  %v2704 = vrot.slane %v2703, 1
  %v2705 = vmax.f32 %v2703, %v2704
  %v2706 = vmax.f32 %v2577, %v2578
  %v2707 = vrot.slane %v2706, 4
  %v2708 = vmax.f32 %v2706, %v2707
  %v2709 = vrot.slane %v2708, 2
  %v2710 = vmax.f32 %v2708, %v2709
  %v2711 = vrot.slane %v2710, 1
  %v2712 = vmax.f32 %v2710, %v2711
  %v2713 = vmax.f32 %v2579, %v2580
  %v2714 = vrot.slane %v2713, 4
  %v2715 = vmax.f32 %v2713, %v2714
  %v2716 = vrot.slane %v2715, 2
  %v2717 = vmax.f32 %v2715, %v2716
  %v2718 = vrot.slane %v2717, 1
  %v2719 = vmax.f32 %v2717, %v2718
  %v2720 = vmax.f32 %v2581, %v2582
  %v2721 = vrot.slane %v2720, 4
  %v2722 = vmax.f32 %v2720, %v2721
  %v2723 = vrot.slane %v2722, 2
  %v2724 = vmax.f32 %v2722, %v2723
  %v2725 = vrot.slane %v2724, 1
  %v2726 = vmax.f32 %v2724, %v2725
  %v2727 = vmax.f32 %v2583, %v2584
  %v2728 = vrot.slane %v2727, 4
  %v2729 = vmax.f32 %v2727, %v2728
  %v2730 = vrot.slane %v2729, 2
  %v2731 = vmax.f32 %v2729, %v2730
  %v2732 = vrot.slane %v2731, 1
  %v2733 = vmax.f32 %v2731, %v2732
  %v2734 = vmax.f32 %v2585, %v2586
  %v2735 = vrot.slane %v2734, 4
  %v2736 = vmax.f32 %v2734, %v2735
  %v2737 = vrot.slane %v2736, 2
  %v2738 = vmax.f32 %v2736, %v2737
  %v2739 = vrot.slane %v2738, 1
  %v2740 = vmax.f32 %v2738, %v2739
  %v2741 = vmax.f32 %v2587, %v2588
  %v2742 = vrot.slane %v2741, 4
  %v2743 = vmax.f32 %v2741, %v2742
  %v2744 = vrot.slane %v2743, 2
  %v2745 = vmax.f32 %v2743, %v2744
  %v2746 = vrot.slane %v2745, 1
  %v2747 = vmax.f32 %v2745, %v2746
  %v2748 = vmax.f32 %v2589, %v2590
  %v2749 = vrot.slane %v2748, 4
  %v2750 = vmax.f32 %v2748, %v2749
  %v2751 = vrot.slane %v2750, 2
  %v2752 = vmax.f32 %v2750, %v2751
  %v2753 = vrot.slane %v2752, 1
  %v2754 = vmax.f32 %v2752, %v2753
  %v2755 = vmax.f32 %v2591, %v2592
  %v2756 = vrot.slane %v2755, 4
  %v2757 = vmax.f32 %v2755, %v2756
  %v2758 = vrot.slane %v2757, 2
  %v2759 = vmax.f32 %v2757, %v2758
  %v2760 = vrot.slane %v2759, 1
  %v2761 = vmax.f32 %v2759, %v2760
  %v2762 = vmax.f32 %v2593, %v2594
  %v2763 = vrot.slane %v2762, 4
  %v2764 = vmax.f32 %v2762, %v2763
  %v2765 = vrot.slane %v2764, 2
  %v2766 = vmax.f32 %v2764, %v2765
  %v2767 = vrot.slane %v2766, 1
  %v2768 = vmax.f32 %v2766, %v2767
  %v2769 = vmax.f32 %v2595, %v2596
  %v2770 = vrot.slane %v2769, 4
  %v2771 = vmax.f32 %v2769, %v2770
  %v2772 = vrot.slane %v2771, 2
  %v2773 = vmax.f32 %v2771, %v2772
  %v2774 = vrot.slane %v2773, 1
  %v2775 = vmax.f32 %v2773, %v2774
  %v2776 = vmax.f32 %v2597, %v2598
  %v2777 = vrot.slane %v2776, 4
  %v2778 = vmax.f32 %v2776, %v2777
  %v2779 = vrot.slane %v2778, 2
  %v2780 = vmax.f32 %v2778, %v2779
  %v2781 = vrot.slane %v2780, 1
  %v2782 = vmax.f32 %v2780, %v2781
  %v2783 = vmax.f32 %v2599, %v2600
  %v2784 = vrot.slane %v2783, 4
  %v2785 = vmax.f32 %v2783, %v2784
  %v2786 = vrot.slane %v2785, 2
  %v2787 = vmax.f32 %v2785, %v2786
  %v2788 = vrot.slane %v2787, 1
  %v2789 = vmax.f32 %v2787, %v2788
  %v2790 = vmax.f32 %v2601, %v2602
  %v2791 = vrot.slane %v2790, 4
  %v2792 = vmax.f32 %v2790, %v2791
  %v2793 = vrot.slane %v2792, 2
  %v2794 = vmax.f32 %v2792, %v2793
  %v2795 = vrot.slane %v2794, 1
  %v2796 = vmax.f32 %v2794, %v2795
  %v2797 = vmax.f32 %v2603, %v2604
  %v2798 = vrot.slane %v2797, 4
  %v2799 = vmax.f32 %v2797, %v2798
  %v2800 = vrot.slane %v2799, 2
  %v2801 = vmax.f32 %v2799, %v2800
  %v2802 = vrot.slane %v2801, 1
  %v2803 = vmax.f32 %v2801, %v2802
  %v2804 = vmax.f32 %v2605, %v2606
  %v2805 = vrot.slane %v2804, 4
  %v2806 = vmax.f32 %v2804, %v2805
  %v2807 = vrot.slane %v2806, 2
  %v2808 = vmax.f32 %v2806, %v2807
  %v2809 = vrot.slane %v2808, 1
  %v2810 = vmax.f32 %v2808, %v2809
  %v2811 = vmax.f32 %v2607, %v2608
  %v2812 = vrot.slane %v2811, 4
  %v2813 = vmax.f32 %v2811, %v2812
  %v2814 = vrot.slane %v2813, 2
  %v2815 = vmax.f32 %v2813, %v2814
  %v2816 = vrot.slane %v2815, 1
  %v2817 = vmax.f32 %v2815, %v2816
  %v2818 = vmax.f32 %v2609, %v2610
  %v2819 = vrot.slane %v2818, 4
  %v2820 = vmax.f32 %v2818, %v2819
  %v2821 = vrot.slane %v2820, 2
  %v2822 = vmax.f32 %v2820, %v2821
  %v2823 = vrot.slane %v2822, 1
  %v2824 = vmax.f32 %v2822, %v2823
  %v2825 = vmax.f32 %v2611, %v2612
  %v2826 = vrot.slane %v2825, 4
  %v2827 = vmax.f32 %v2825, %v2826
  %v2828 = vrot.slane %v2827, 2
  %v2829 = vmax.f32 %v2827, %v2828
  %v2830 = vrot.slane %v2829, 1
  %v2831 = vmax.f32 %v2829, %v2830
  %v2832 = vmax.f32 %v2613, %v2614
  %v2833 = vrot.slane %v2832, 4
  %v2834 = vmax.f32 %v2832, %v2833
  %v2835 = vrot.slane %v2834, 2
  %v2836 = vmax.f32 %v2834, %v2835
  %v2837 = vrot.slane %v2836, 1
  %v2838 = vmax.f32 %v2836, %v2837
  %v2839 = vpack.c.bf16 %v2621, %v2621
  %v2840 = vpack.c.bf16 %v2628, %v2628
  %v2841 = vpack.c.bf16 %v2635, %v2635
  %v2842 = vpack.c.bf16 %v2642, %v2642
  %v2843 = vpack.c.bf16 %v2649, %v2649
  %v2844 = vpack.c.bf16 %v2656, %v2656
  %v2845 = vpack.c.bf16 %v2663, %v2663
  %v2846 = vpack.c.bf16 %v2670, %v2670
  %v2847 = vpack.c.bf16 %v2677, %v2677
  %v2848 = vpack.c.bf16 %v2684, %v2684
  %v2849 = vpack.c.bf16 %v2691, %v2691
  %v2850 = vpack.c.bf16 %v2698, %v2698
  %v2851 = vpack.c.bf16 %v2705, %v2705
  %v2852 = vpack.c.bf16 %v2712, %v2712
  %v2853 = vpack.c.bf16 %v2719, %v2719
  %v2854 = vpack.c.bf16 %v2726, %v2726
  %v2855 = vpack.c.bf16 %v2733, %v2733
  %v2856 = vpack.c.bf16 %v2740, %v2740
  %v2857 = vpack.c.bf16 %v2747, %v2747
  %v2858 = vpack.c.bf16 %v2754, %v2754
  %v2859 = vpack.c.bf16 %v2761, %v2761
  %v2860 = vpack.c.bf16 %v2768, %v2768
  %v2861 = vpack.c.bf16 %v2775, %v2775
  %v2862 = vpack.c.bf16 %v2782, %v2782
  %v2863 = vpack.c.bf16 %v2789, %v2789
  %v2864 = vpack.c.bf16 %v2796, %v2796
  %v2865 = vpack.c.bf16 %v2803, %v2803
  %v2866 = vpack.c.bf16 %v2810, %v2810
  %v2867 = vpack.c.bf16 %v2817, %v2817
  %v2868 = vpack.c.bf16 %v2824, %v2824
  %v2869 = vpack.c.bf16 %v2831, %v2831
  %v2870 = vpack.c.bf16 %v2838, %v2838
  %v2871 = vunpack.c.l.bf16 %v2839
  %v2872 = vunpack.c.l.bf16 %v2840
  %v2873 = vunpack.c.l.bf16 %v2841
  %v2874 = vunpack.c.l.bf16 %v2842
  %v2875 = vunpack.c.l.bf16 %v2843
  %v2876 = vunpack.c.l.bf16 %v2844
  %v2877 = vunpack.c.l.bf16 %v2845
  %v2878 = vunpack.c.l.bf16 %v2846
  %v2879 = vunpack.c.l.bf16 %v2847
  %v2880 = vunpack.c.l.bf16 %v2848
  %v2881 = vunpack.c.l.bf16 %v2849
  %v2882 = vunpack.c.l.bf16 %v2850
  %v2883 = vunpack.c.l.bf16 %v2851
  %v2884 = vunpack.c.l.bf16 %v2852
  %v2885 = vunpack.c.l.bf16 %v2853
  %v2886 = vunpack.c.l.bf16 %v2854
  %v2887 = vunpack.c.l.bf16 %v2855
  %v2888 = vunpack.c.l.bf16 %v2856
  %v2889 = vunpack.c.l.bf16 %v2857
  %v2890 = vunpack.c.l.bf16 %v2858
  %v2891 = vunpack.c.l.bf16 %v2859
  %v2892 = vunpack.c.l.bf16 %v2860
  %v2893 = vunpack.c.l.bf16 %v2861
  %v2894 = vunpack.c.l.bf16 %v2862
  %v2895 = vunpack.c.l.bf16 %v2863
  %v2896 = vunpack.c.l.bf16 %v2864
  %v2897 = vunpack.c.l.bf16 %v2865
  %v2898 = vunpack.c.l.bf16 %v2866
  %v2899 = vunpack.c.l.bf16 %v2867
  %v2900 = vunpack.c.l.bf16 %v2868
  %v2901 = vunpack.c.l.bf16 %v2869
  %v2902 = vunpack.c.l.bf16 %v2870
  %vm2935 = vcmask 1041409
  %v2936 = vsel %vm2935, %v2872, %v2871
  %vm2937 = vcmask 1042434
  %v2938 = vsel %vm2937, %v2873, %v2936
  %vm2939 = vcmask 1043459
  %v2940 = vsel %vm2939, %v2874, %v2938
  %vm2941 = vcmask 1044484
  %v2942 = vsel %vm2941, %v2875, %v2940
  %vm2943 = vcmask 1045509
  %v2944 = vsel %vm2943, %v2876, %v2942
  %vm2945 = vcmask 1046534
  %v2946 = vsel %vm2945, %v2877, %v2944
  %vm2947 = vcmask 1047559
  %v2948 = vsel %vm2947, %v2878, %v2946
  %v2949 = vsel %vm2935, %v2880, %v2879
  %v2950 = vsel %vm2937, %v2881, %v2949
  %v2951 = vsel %vm2939, %v2882, %v2950
  %v2952 = vsel %vm2941, %v2883, %v2951
  %v2953 = vsel %vm2943, %v2884, %v2952
  %v2954 = vsel %vm2945, %v2885, %v2953
  %v2955 = vsel %vm2947, %v2886, %v2954
  %v2956 = vsel %vm2935, %v2888, %v2887
  %v2957 = vsel %vm2937, %v2889, %v2956
  %v2958 = vsel %vm2939, %v2890, %v2957
  %v2959 = vsel %vm2941, %v2891, %v2958
  %v2960 = vsel %vm2943, %v2892, %v2959
  %v2961 = vsel %vm2945, %v2893, %v2960
  %v2962 = vsel %vm2947, %v2894, %v2961
  %v2963 = vsel %vm2935, %v2896, %v2895
  %v2964 = vsel %vm2937, %v2897, %v2963
  %v2965 = vsel %vm2939, %v2898, %v2964
  %v2966 = vsel %vm2941, %v2899, %v2965
  %v2967 = vsel %vm2943, %v2900, %v2966
  %v2968 = vsel %vm2945, %v2901, %v2967
  %v2969 = vsel %vm2947, %v2902, %v2968
  %2974 = vst [vmem:[%s15] sm:$0xff] %v2948
  %2975 = vst [vmem:[%s15 + $0x8] sm:$0xff] %v2955
  %2976 = vst [vmem:[%s15 + $0x10] sm:$0xff] %v2962
  %2977 = vst [vmem:[%s15 + $0x18] sm:$0xff] %v2969
  %v2978 = vld [vmem:[%s9] sm:$0xf]
  %v2979 = vld [vmem:[%s9 + $0x4] sm:$0xf]
  %v2980 = vld [vmem:[%s9 + $0x8] sm:$0xf]
  %v2981 = vld [vmem:[%s9 + $0xc] sm:$0xf]
  %v2982 = vld [vmem:[%s9 + $0x10] sm:$0xf]
  %v2983 = vld [vmem:[%s9 + $0x14] sm:$0xf]
  %v2984 = vld [vmem:[%s9 + $0x18] sm:$0xf]
  %v2985 = vld [vmem:[%s9 + $0x1c] sm:$0xf]
  %v2986 = vld [vmem:[%s9 + $0x20] sm:$0xf]
  %v2987 = vld [vmem:[%s9 + $0x24] sm:$0xf]
  %v2988 = vld [vmem:[%s9 + $0x28] sm:$0xf]
  %v2989 = vld [vmem:[%s9 + $0x2c] sm:$0xf]
  %v2990 = vld [vmem:[%s9 + $0x30] sm:$0xf]
  %v2991 = vld [vmem:[%s9 + $0x34] sm:$0xf]
  %v2992 = vld [vmem:[%s9 + $0x38] sm:$0xf]
  %v2993 = vld [vmem:[%s9 + $0x3c] sm:$0xf]
  %v2994 = vld [vmem:[%s10] sm:$0x1]
  %v2996 = vperm.slane %v2994, 0
  %v3030 = vperm.slane %v2839, 0
  %v3031 = vperm.slane %v2840, 0
  %v3032 = vperm.slane %v2841, 0
  %v3033 = vperm.slane %v2842, 0
  %v3034 = vperm.slane %v2843, 0
  %v3035 = vperm.slane %v2844, 0
  %v3036 = vperm.slane %v2845, 0
  %v3037 = vperm.slane %v2846, 0
  %v3038 = vperm.slane %v2847, 0
  %v3039 = vperm.slane %v2848, 0
  %v3040 = vperm.slane %v2849, 0
  %v3041 = vperm.slane %v2850, 0
  %v3042 = vperm.slane %v2851, 0
  %v3043 = vperm.slane %v2852, 0
  %v3044 = vperm.slane %v2853, 0
  %v3045 = vperm.slane %v2854, 0
  %v3046 = vperm.slane %v2855, 0
  %v3047 = vperm.slane %v2856, 0
  %v3048 = vperm.slane %v2857, 0
  %v3049 = vperm.slane %v2858, 0
  %v3050 = vperm.slane %v2859, 0
  %v3051 = vperm.slane %v2860, 0
  %v3052 = vperm.slane %v2861, 0
  %v3053 = vperm.slane %v2862, 0
  %v3054 = vperm.slane %v2863, 0
  %v3055 = vperm.slane %v2864, 0
  %v3056 = vperm.slane %v2865, 0
  %v3057 = vperm.slane %v2866, 0
  %v3058 = vperm.slane %v2867, 0
  %v3059 = vperm.slane %v2868, 0
  %v3060 = vperm.slane %v2869, 0
  %v3061 = vperm.slane %v2870, 0
  %v3062 = vunpack.c.l.b16 %v3030
  %v3063 = vunpack.c.l.b16 %v3031
  %v3064 = vunpack.c.l.b16 %v3032
  %v3065 = vunpack.c.l.b16 %v3033
  %v3066 = vunpack.c.l.b16 %v3034
  %v3067 = vunpack.c.l.b16 %v3035
  %v3068 = vunpack.c.l.b16 %v3036
  %v3069 = vunpack.c.l.b16 %v3037
  %v3070 = vunpack.c.l.b16 %v3038
  %v3071 = vunpack.c.l.b16 %v3039
  %v3072 = vunpack.c.l.b16 %v3040
  %v3073 = vunpack.c.l.b16 %v3041
  %v3074 = vunpack.c.l.b16 %v3042
  %v3075 = vunpack.c.l.b16 %v3043
  %v3076 = vunpack.c.l.b16 %v3044
  %v3077 = vunpack.c.l.b16 %v3045
  %v3078 = vunpack.c.l.b16 %v3046
  %v3079 = vunpack.c.l.b16 %v3047
  %v3080 = vunpack.c.l.b16 %v3048
  %v3081 = vunpack.c.l.b16 %v3049
  %v3082 = vunpack.c.l.b16 %v3050
  %v3083 = vunpack.c.l.b16 %v3051
  %v3084 = vunpack.c.l.b16 %v3052
  %v3085 = vunpack.c.l.b16 %v3053
  %v3086 = vunpack.c.l.b16 %v3054
  %v3087 = vunpack.c.l.b16 %v3055
  %v3088 = vunpack.c.l.b16 %v3056
  %v3089 = vunpack.c.l.b16 %v3057
  %v3090 = vunpack.c.l.b16 %v3058
  %v3091 = vunpack.c.l.b16 %v3059
  %v3092 = vunpack.c.l.b16 %v3060
  %v3093 = vunpack.c.l.b16 %v3061
  %v3094 = vsel %vm2935, %v3063, %v3062
  %v3095 = vsel %vm2937, %v3064, %v3094
  %v3096 = vsel %vm2939, %v3065, %v3095
  %v3097 = vsel %vm2941, %v3066, %v3096
  %v3098 = vsel %vm2943, %v3067, %v3097
  %v3099 = vsel %vm2945, %v3068, %v3098
  %v3100 = vsel %vm2947, %v3069, %v3099
  %v3101 = vsel %vm2935, %v3071, %v3070
  %v3102 = vsel %vm2937, %v3072, %v3101
  %v3103 = vsel %vm2939, %v3073, %v3102
  %v3104 = vsel %vm2941, %v3074, %v3103
  %v3105 = vsel %vm2943, %v3075, %v3104
  %v3106 = vsel %vm2945, %v3076, %v3105
  %v3107 = vsel %vm2947, %v3077, %v3106
  %v3108 = vsel %vm2935, %v3079, %v3078
  %v3109 = vsel %vm2937, %v3080, %v3108
  %v3110 = vsel %vm2939, %v3081, %v3109
  %v3111 = vsel %vm2941, %v3082, %v3110
  %v3112 = vsel %vm2943, %v3083, %v3111
  %v3113 = vsel %vm2945, %v3084, %v3112
  %v3114 = vsel %vm2947, %v3085, %v3113
  %v3115 = vsel %vm2935, %v3087, %v3086
  %v3116 = vsel %vm2937, %v3088, %v3115
  %v3117 = vsel %vm2939, %v3089, %v3116
  %v3118 = vsel %vm2941, %v3090, %v3117
  %v3119 = vsel %vm2943, %v3091, %v3118
  %v3120 = vsel %vm2945, %v3092, %v3119
  %v3121 = vsel %vm2947, %v3093, %v3120
  %v3122 = vpack.c.b16 %v3107, %v3100
  %v3123 = vpack.c.b16 %v3121, %v3114
  %v3142 = vunpack.c.l.b16 %v2978
  %v3143 = vunpack.c.l.b16 %v2979
  %v3144 = vunpack.c.l.b16 %v2980
  %v3145 = vunpack.c.l.b16 %v2981
  %v3146 = vunpack.c.l.b16 %v2982
  %v3147 = vunpack.c.l.b16 %v2983
  %v3148 = vunpack.c.l.b16 %v2984
  %v3149 = vunpack.c.l.b16 %v2985
  %v3150 = vunpack.c.l.b16 %v2986
  %v3151 = vunpack.c.l.b16 %v2987
  %v3152 = vunpack.c.l.b16 %v2988
  %v3153 = vunpack.c.l.b16 %v2989
  %v3154 = vunpack.c.l.b16 %v2990
  %v3155 = vunpack.c.l.b16 %v2991
  %v3156 = vunpack.c.l.b16 %v2992
  %v3157 = vunpack.c.l.b16 %v2993
  %v3158 = vpack.c.b16 %v3143, %v3142
  %v3159 = vpack.c.b16 %v3145, %v3144
  %v3160 = vpack.c.b16 %v3147, %v3146
  %v3161 = vpack.c.b16 %v3149, %v3148
  %v3162 = vpack.c.b16 %v3151, %v3150
  %v3163 = vpack.c.b16 %v3153, %v3152
  %v3164 = vpack.c.b16 %v3155, %v3154
  %v3165 = vpack.c.b16 %v3157, %v3156
  %3174 = vmatpush.bf16.msra.mxu0 %v3165
  %3175 = vmatpush.bf16.msra.mxu0 %v3164
  %3176 = vmatpush.bf16.msra.mxu0 %v3163
  %3177 = vmatpush.bf16.msra.mxu0 %v3162
  %3178 = vmatpush.bf16.msra.mxu0 %v3161
  %3179 = vmatpush.bf16.msra.mxu0 %v3160
  %3180 = vmatpush.bf16.msra.mxu0 %v3159
  %3181 = vmatpush.bf16.msra.mxu0 %v3158
  %3182 = vmatmul.bf16.gmra.mxu0 %v3122
  %v3183 = vpop.f32.mrf.mxu0
  %v3184 = vadd.f32 %v2996, %v3183
  %v3185 = vpop.f32.mrf.mxu0
  %v3186 = vadd.f32 %v2996, %v3185
  %3187 = vmatmul.bf16.gmra.mxu0 %v3123
  %v3188 = vpop.f32.mrf.mxu0
  %v3189 = vadd.f32 %v2996, %v3188
  %v3190 = vpop.f32.mrf.mxu0
  %v3191 = vadd.f32 %v2996, %v3190
  %3192 = vdwg.mxu0
  %v3193 = vmax.f32 %v3184, 0.0
  %v3194 = vmax.f32 %v3186, 0.0
  %v3195 = vmax.f32 %v3189, 0.0
  %v3196 = vmax.f32 %v3191, 0.0
  %v3197 = vpack.c.bf16 %v3194, %v3193
  %v3198 = vpack.c.bf16 %v3196, %v3195
  %v3199 = vld [vmem:[%s11] sm:$0xf]
  %v3200 = vld [vmem:[%s11 + $0x4] sm:$0xf]
  %v3201 = vld [vmem:[%s11 + $0x8] sm:$0xf]
  %v3202 = vld [vmem:[%s11 + $0xc] sm:$0xf]
  %v3203 = vld [vmem:[%s11 + $0x10] sm:$0xf]
  %v3204 = vld [vmem:[%s11 + $0x14] sm:$0xf]
  %v3205 = vld [vmem:[%s11 + $0x18] sm:$0xf]
  %v3206 = vld [vmem:[%s11 + $0x1c] sm:$0xf]
  %v3207 = vld [vmem:[%s11 + $0x20] sm:$0xf]
  %v3208 = vld [vmem:[%s11 + $0x24] sm:$0xf]
  %v3209 = vld [vmem:[%s11 + $0x28] sm:$0xf]
  %v3210 = vld [vmem:[%s11 + $0x2c] sm:$0xf]
  %v3211 = vld [vmem:[%s11 + $0x30] sm:$0xf]
  %v3212 = vld [vmem:[%s11 + $0x34] sm:$0xf]
  %v3213 = vld [vmem:[%s11 + $0x38] sm:$0xf]
  %v3214 = vld [vmem:[%s11 + $0x3c] sm:$0xf]
  %v3215 = vld [vmem:[%s12] sm:$0x1]
  %v3217 = vperm.slane %v3215, 0
  %v3235 = vunpack.c.l.b16 %v3199
  %v3236 = vunpack.c.l.b16 %v3200
  %v3237 = vunpack.c.l.b16 %v3201
  %v3238 = vunpack.c.l.b16 %v3202
  %v3239 = vunpack.c.l.b16 %v3203
  %v3240 = vunpack.c.l.b16 %v3204
  %v3241 = vunpack.c.l.b16 %v3205
  %v3242 = vunpack.c.l.b16 %v3206
  %v3243 = vunpack.c.l.b16 %v3207
  %v3244 = vunpack.c.l.b16 %v3208
  %v3245 = vunpack.c.l.b16 %v3209
  %v3246 = vunpack.c.l.b16 %v3210
  %v3247 = vunpack.c.l.b16 %v3211
  %v3248 = vunpack.c.l.b16 %v3212
  %v3249 = vunpack.c.l.b16 %v3213
  %v3250 = vunpack.c.l.b16 %v3214
  %v3251 = vpack.c.b16 %v3236, %v3235
  %v3252 = vpack.c.b16 %v3238, %v3237
  %v3253 = vpack.c.b16 %v3240, %v3239
  %v3254 = vpack.c.b16 %v3242, %v3241
  %v3255 = vpack.c.b16 %v3244, %v3243
  %v3256 = vpack.c.b16 %v3246, %v3245
  %v3257 = vpack.c.b16 %v3248, %v3247
  %v3258 = vpack.c.b16 %v3250, %v3249
  %3267 = vmatpush.bf16.msra.mxu0 %v3258
  %3268 = vmatpush.bf16.msra.mxu0 %v3257
  %3269 = vmatpush.bf16.msra.mxu0 %v3256
  %3270 = vmatpush.bf16.msra.mxu0 %v3255
  %3271 = vmatpush.bf16.msra.mxu0 %v3254
  %3272 = vmatpush.bf16.msra.mxu0 %v3253
  %3273 = vmatpush.bf16.msra.mxu0 %v3252
  %3274 = vmatpush.bf16.msra.mxu0 %v3251
  %3275 = vmatmul.bf16.gmra.mxu0 %v3197
  %v3276 = vpop.f32.mrf.mxu0
  %v3277 = vadd.f32 %v3217, %v3276
  %v3278 = vpop.f32.mrf.mxu0
  %v3279 = vadd.f32 %v3217, %v3278
  %3280 = vmatmul.bf16.gmra.mxu0 %v3198
  %v3281 = vpop.f32.mrf.mxu0
  %v3282 = vadd.f32 %v3217, %v3281
  %v3283 = vpop.f32.mrf.mxu0
  %v3284 = vadd.f32 %v3217, %v3283
  %3285 = vdwg.mxu0
  %v3286 = vmax.f32 %v3277, 0.0
  %v3287 = vmax.f32 %v3279, 0.0
  %v3288 = vmax.f32 %v3282, 0.0
  %v3289 = vmax.f32 %v3284, 0.0
  %v3290 = vpack.c.bf16 %v3287, %v3286
  %v3291 = vpack.c.bf16 %v3289, %v3288
  %v3292 = vld [vmem:[%s13] sm:$0xf]
  %v3293 = vld [vmem:[%s13 + $0x4] sm:$0xf]
  %v3294 = vld [vmem:[%s13 + $0x8] sm:$0xf]
  %v3295 = vld [vmem:[%s13 + $0xc] sm:$0xf]
  %v3296 = vld [vmem:[%s13 + $0x10] sm:$0xf]
  %v3297 = vld [vmem:[%s13 + $0x14] sm:$0xf]
  %v3298 = vld [vmem:[%s13 + $0x18] sm:$0xf]
  %v3299 = vld [vmem:[%s13 + $0x1c] sm:$0xf]
  %v3300 = vld [vmem:[%s13 + $0x20] sm:$0xf]
  %v3301 = vld [vmem:[%s13 + $0x24] sm:$0xf]
  %v3302 = vld [vmem:[%s13 + $0x28] sm:$0xf]
  %v3303 = vld [vmem:[%s13 + $0x2c] sm:$0xf]
  %v3304 = vld [vmem:[%s13 + $0x30] sm:$0xf]
  %v3305 = vld [vmem:[%s13 + $0x34] sm:$0xf]
  %v3306 = vld [vmem:[%s13 + $0x38] sm:$0xf]
  %v3307 = vld [vmem:[%s13 + $0x3c] sm:$0xf]
  %v3308 = vld [vmem:[%s14] sm:$0x1]
  %v3310 = vperm.slane %v3308, 0
  %v3328 = vunpack.c.l.b16 %v3292
  %v3329 = vunpack.c.l.b16 %v3293
  %v3330 = vunpack.c.l.b16 %v3294
  %v3331 = vunpack.c.l.b16 %v3295
  %v3332 = vunpack.c.l.b16 %v3296
  %v3333 = vunpack.c.l.b16 %v3297
  %v3334 = vunpack.c.l.b16 %v3298
  %v3335 = vunpack.c.l.b16 %v3299
  %v3336 = vunpack.c.l.b16 %v3300
  %v3337 = vunpack.c.l.b16 %v3301
  %v3338 = vunpack.c.l.b16 %v3302
  %v3339 = vunpack.c.l.b16 %v3303
  %v3340 = vunpack.c.l.b16 %v3304
  %v3341 = vunpack.c.l.b16 %v3305
  %v3342 = vunpack.c.l.b16 %v3306
  %v3343 = vunpack.c.l.b16 %v3307
  %v3344 = vpack.c.b16 %v3329, %v3328
  %v3345 = vpack.c.b16 %v3331, %v3330
  %v3346 = vpack.c.b16 %v3333, %v3332
  %v3347 = vpack.c.b16 %v3335, %v3334
  %v3348 = vpack.c.b16 %v3337, %v3336
  %v3349 = vpack.c.b16 %v3339, %v3338
  %v3350 = vpack.c.b16 %v3341, %v3340
  %v3351 = vpack.c.b16 %v3343, %v3342
  %3360 = vmatpush.bf16.msra.mxu0 %v3351
  %3361 = vmatpush.bf16.msra.mxu0 %v3350
  %3362 = vmatpush.bf16.msra.mxu0 %v3349
  %3363 = vmatpush.bf16.msra.mxu0 %v3348
  %3364 = vmatpush.bf16.msra.mxu0 %v3347
  %3365 = vmatpush.bf16.msra.mxu0 %v3346
  %3366 = vmatpush.bf16.msra.mxu0 %v3345
  %3367 = vmatpush.bf16.msra.mxu0 %v3344
  %3368 = vmatmul.bf16.gmra.mxu0 %v3290
  %v3369 = vpop.f32.mrf.mxu0
  %v3370 = vadd.f32 %v3310, %v3369
  %v3371 = vpop.f32.mrf.mxu0
  %v3372 = vadd.f32 %v3310, %v3371
  %3373 = vmatmul.bf16.gmra.mxu0 %v3291
  %v3374 = vpop.f32.mrf.mxu0
  %v3375 = vadd.f32 %v3310, %v3374
  %v3376 = vpop.f32.mrf.mxu0
  %v3377 = vadd.f32 %v3310, %v3376
  %3378 = vdwg.mxu0
  %3379 = vst [vmem:[%s16] sm:$0xff] %v3370
  %3380 = vst [vmem:[%s16 + $0x8] sm:$0xff] %v3372
  %3381 = vst [vmem:[%s16 + $0x10] sm:$0xff] %v3375
  %3382 = vst [vmem:[%s16 + $0x18] sm:$0xff] %v3377
  %vm3383 = vcmask 97344
  %v3384 = vsel %vm3383, %v3370, -inf
  %3385 = vmax.xlane.f32.xlu0 %v3384
  %v3386 = vpop.xlane.xlu0 %3385
  %v3387 = vsel %vm3383, %v3372, -inf
  %3388 = vmax.xlane.f32.xlu0 %v3387
  %v3389 = vpop.xlane.xlu0 %3388
  %v3390 = vsel %vm3383, %v3375, -inf
  %3391 = vmax.xlane.f32.xlu0 %v3390
  %v3392 = vpop.xlane.xlu0 %3391
  %v3393 = vsel %vm3383, %v3377, -inf
  %3394 = vmax.xlane.f32.xlu0 %v3393
  %v3395 = vpop.xlane.xlu0 %3394
  %v3396 = vlaneseq
  %v3397 = vand.u32 %v3396, 127
  %vm3398 = vcmp.ge.f32.partialorder %v3370, %v3386
  %vm3399 = vcmp.ge.f32.partialorder %v3372, %v3389
  %vm3400 = vcmp.ge.f32.partialorder %v3375, %v3392
  %vm3401 = vcmp.ge.f32.partialorder %v3377, %v3395
  %3402 = vrot.lane.b32.xlu0 %v3397, 8
  %v3403 = vpop.permute.xlu0 %3402
  %v3404 = vsel %vm3398, %v3403, 4
  %v3405 = vsel %vm3399, %v3403, 4
  %v3406 = vsel %vm3400, %v3403, 4
  %v3407 = vsel %vm3401, %v3403, 4
  %v3408 = vsel %vm3383, %v3404, 2147483647
  %v3409 = vand.u32 %v3408, 65535
  %v3410 = vshra.s32 %v3408, 16
  %v3411 = vcvt.s32.f32 %v3409
  %v3412 = vcvt.s32.f32 %v3410
  %3413 = vmin.xlane.f32.xlu0 %v3412
  %v3414 = vpop.xlane.xlu0 %3413
  %vm3415 = vcmp.eq.f32.partialorder %v3412, %v3414
  %v3416 = vsel %vm3415, %v3411, inf
  %3417 = vmin.xlane.f32.xlu0 %v3416
  %v3418 = vpop.xlane.xlu0 %3417
  %v3419 = vcvt.f32.s32 %v3418
  %v3420 = vcvt.f32.s32 %v3414
  %v3421 = vshll.u32 %v3420, 16
  %v3422 = vadd.s32 %v3421, %v3419
  %v3423 = vsel %vm3383, %v3405, 2147483647
  %v3424 = vand.u32 %v3423, 65535
  %v3425 = vshra.s32 %v3423, 16
  %v3426 = vcvt.s32.f32 %v3424
  %v3427 = vcvt.s32.f32 %v3425
  %3428 = vmin.xlane.f32.xlu0 %v3427
  %v3429 = vpop.xlane.xlu0 %3428
  %vm3430 = vcmp.eq.f32.partialorder %v3427, %v3429
  %v3431 = vsel %vm3430, %v3426, inf
  %3432 = vmin.xlane.f32.xlu0 %v3431
  %v3433 = vpop.xlane.xlu0 %3432
  %v3434 = vcvt.f32.s32 %v3433
  %v3435 = vcvt.f32.s32 %v3429
  %v3436 = vshll.u32 %v3435, 16
  %v3437 = vadd.s32 %v3436, %v3434
  %v3438 = vsel %vm3383, %v3406, 2147483647
  %v3439 = vand.u32 %v3438, 65535
  %v3440 = vshra.s32 %v3438, 16
  %v3441 = vcvt.s32.f32 %v3439
  %v3442 = vcvt.s32.f32 %v3440
  %3443 = vmin.xlane.f32.xlu0 %v3442
  %v3444 = vpop.xlane.xlu0 %3443
  %vm3445 = vcmp.eq.f32.partialorder %v3442, %v3444
  %v3446 = vsel %vm3445, %v3441, inf
  %3447 = vmin.xlane.f32.xlu0 %v3446
  %v3448 = vpop.xlane.xlu0 %3447
  %v3449 = vcvt.f32.s32 %v3448
  %v3450 = vcvt.f32.s32 %v3444
  %v3451 = vshll.u32 %v3450, 16
  %v3452 = vadd.s32 %v3451, %v3449
  %v3453 = vsel %vm3383, %v3407, 2147483647
  %v3454 = vand.u32 %v3453, 65535
  %v3455 = vshra.s32 %v3453, 16
  %v3456 = vcvt.s32.f32 %v3454
  %v3457 = vcvt.s32.f32 %v3455
  %3458 = vmin.xlane.f32.xlu0 %v3457
  %v3459 = vpop.xlane.xlu0 %3458
  %vm3460 = vcmp.eq.f32.partialorder %v3457, %v3459
  %v3461 = vsel %vm3460, %v3456, inf
  %3462 = vmin.xlane.f32.xlu0 %v3461
  %v3463 = vpop.xlane.xlu0 %3462
  %v3464 = vcvt.f32.s32 %v3463
  %v3465 = vcvt.f32.s32 %v3459
  %v3466 = vshll.u32 %v3465, 16
  %v3467 = vadd.s32 %v3466, %v3464
  %vm3468 = vcmp.eq.s32.totalorder %v3397, %v3422
  %vm3469 = vcmp.eq.s32.totalorder %v3397, %v3437
  %vm3470 = vcmp.eq.s32.totalorder %v3397, %v3452
  %vm3471 = vcmp.eq.s32.totalorder %v3397, %v3467
  %3476 = vrot.lane.b32.xlu0 %v3370, 116
  %v3477 = vpop.permute.xlu0 %3476
  %3478 = vrot.lane.b32.xlu0 %v3372, 116
  %v3479 = vpop.permute.xlu0 %3478
  %3480 = vrot.lane.b32.xlu0 %v3375, 116
  %v3481 = vpop.permute.xlu0 %3480
  %3482 = vrot.lane.b32.xlu0 %v3377, 116
  %v3483 = vpop.permute.xlu0 %3482
  %v3488 = vsel %vm3468, %v3477, 0.0
  %v3489 = vsel %vm3469, %v3479, 0.0
  %v3490 = vsel %vm3470, %v3481, 0.0
  %v3491 = vsel %vm3471, %v3483, 0.0
  %vm3492 = vcmask 31744
  %v3493 = vsel %vm3492, %v3488, 0.0
  %3494 = vadd.xlane.f32.xlu0 %v3493
  %v3495 = vpop.xlane.xlu0 %3494
  %v3496 = vsel %vm3492, %v3489, 0.0
  %3497 = vadd.xlane.f32.xlu0 %v3496
  %v3498 = vpop.xlane.xlu0 %3497
  %v3499 = vsel %vm3492, %v3490, 0.0
  %3500 = vadd.xlane.f32.xlu0 %v3499
  %v3501 = vpop.xlane.xlu0 %3500
  %v3502 = vsel %vm3492, %v3491, 0.0
  %3503 = vadd.xlane.f32.xlu0 %v3502
  %v3504 = vpop.xlane.xlu0 %3503
  %v3505 = vcvt.s32.f32 %v3422
  %v3506 = vcvt.s32.f32 %v3437
  %v3507 = vcvt.s32.f32 %v3452
  %v3508 = vcvt.s32.f32 %v3467
  %v3509 = vmul.f32 %v3505, 1.5707964
  %v3510 = vmul.f32 %v3506, 1.5707964
  %v3511 = vmul.f32 %v3507, 1.5707964
  %v3512 = vmul.f32 %v3508, 1.5707964
  %v3513 = vadd.f32 %v3509, %v3495
  %v3514 = vadd.f32 %v3510, %v3498
  %v3515 = vadd.f32 %v3511, %v3501
  %v3516 = vadd.f32 %v3512, %v3504
  %3517 = vrot.lane.b32.xlu0 %v3370, 125
  %v3518 = vpop.permute.xlu0 %3517
  %3519 = vrot.lane.b32.xlu0 %v3372, 125
  %v3520 = vpop.permute.xlu0 %3519
  %3521 = vrot.lane.b32.xlu0 %v3375, 125
  %v3522 = vpop.permute.xlu0 %3521
  %3523 = vrot.lane.b32.xlu0 %v3377, 125
  %v3524 = vpop.permute.xlu0 %3523
  %v3529 = vadd.f32 %v3370, %v3518
  %v3530 = vadd.f32 %v3372, %v3520
  %v3531 = vadd.f32 %v3375, %v3522
  %v3532 = vadd.f32 %v3377, %v3524
  %v3533 = vsub.f32 %v3370, %v3518
  %v3534 = vsub.f32 %v3372, %v3520
  %v3535 = vsub.f32 %v3375, %v3522
  %v3536 = vsub.f32 %v3377, %v3524
  %v3537 = vmul.f32 %v3533, 0.5
  %v3538 = vmul.f32 %v3534, 0.5
  %v3539 = vmul.f32 %v3535, 0.5
  %v3540 = vmul.f32 %v3536, 0.5
  %v3541 = vand.u32 2147483647, %v3513
  %vm3542 = vcmp.le.f32.partialorder %v3541, 0.7853982
  %vm3543 = vcmp.lt.s32.totalorder %v3513, 0
  %v3544 = vand.u32 %v3513, 2139095040
  %v3545 = vshrl.u32 %v3544, 23
  %v3546 = vsub.s32 %v3545, 127
  %v3547 = vand.u32 2147483647, %v3513
  %v3548 = vand.u32 %v3547, 8388607
  %v3549 = vor.u32 %v3548, 8388608
  %v3550 = vsub.s32 0, %v3549
  %v3551 = vadd.s32 %v3546, 1
  %vm3552 = vcmp.gt.s32.totalorder %v3551, 0
  %v3553 = vsel %vm3552, %v3551, 0
  %v3554 = vshrl.u32 %v3553, 5
  %v3555 = vand.u32 %v3553, 31
  %v3556 = vsub.s32 32, %v3555
  %v3557 = vshrl.u32 683565275, %v3556
  %v3558 = vshll.u32 683565275, %v3555
  %v3559 = vshrl.u32 2475754826, %v3556
  %v3560 = vor.u32 %v3558, %v3559
  %v3561 = vshll.u32 2475754826, %v3555
  %v3562 = vshrl.u32 2131351028, %v3556
  %v3563 = vor.u32 %v3561, %v3562
  %v3564 = vshll.u32 2131351028, %v3555
  %v3565 = vshrl.u32 2102212464, %v3556
  %v3566 = vor.u32 %v3564, %v3565
  %v3567 = vshll.u32 2102212464, %v3555
  %v3568 = vshrl.u32 920167782, %v3556
  %v3569 = vor.u32 %v3567, %v3568
  %v3570 = vshll.u32 920167782, %v3555
  %v3571 = vshrl.u32 1326507024, %v3556
  %v3572 = vor.u32 %v3570, %v3571
  %vm3573 = vcmp.lt.s32.totalorder %v3554, 1
  %vm3574 = vcmp.lt.s32.totalorder %v3554, 2
  %vm3575 = vcmp.lt.s32.totalorder %v3554, 3
  %vm3576 = vcmp.lt.s32.totalorder %v3554, 4
  %v3577 = vsel %vm3573, %v3557, %v3560
  %v3578 = vsel %vm3576, %v3566, 2102212464
  %v3579 = vsel %vm3575, %v3563, %v3578
  %v3580 = vsel %vm3574, %v3577, %v3579
  %v3581 = vsel %vm3573, %v3560, %v3563
  %v3582 = vsel %vm3576, %v3569, 920167782
  %v3583 = vsel %vm3575, %v3566, %v3582
  %v3584 = vsel %vm3574, %v3581, %v3583
  %v3585 = vsel %vm3573, %v3563, %v3566
  %v3586 = vsel %vm3576, %v3572, 1326507024
  %v3587 = vsel %vm3575, %v3569, %v3586
  %v3588 = vsel %vm3574, %v3585, %v3587
  %v3589 = vshll.u32 %v3549, 8
  %v3590 = vand.u32 %v3589, 65535
  %v3591 = vshrl.u32 %v3589, 16
  %v3592 = vand.u32 %v3588, 65535
  %v3593 = vshrl.u32 %v3588, 16
  %v3594 = vmul.u32 %v3590, %v3592
  %v3595 = vmul.u32 %v3590, %v3593
  %v3596 = vmul.u32 %v3591, %v3592
  %v3597 = vmul.u32 %v3591, %v3593
  %v3598 = vshll.u32 %v3595, 16
  %v3599 = vshrl.u32 %v3595, 16
  %v3600 = vshll.u32 %v3596, 16
  %v3601 = vshrl.u32 %v3596, 16
  %vm3602 = vc.u32 %v3594, %v3598
  %v3603 = vsel %vm3602, 1, 0
  %v3604 = vadd.s32 %v3594, %v3598
  %v3605 = vadd.s32 %v3597, %v3603
  %vm3606 = vc.u32 %v3604, %v3600
  %v3607 = vsel %vm3606, 1, 0
  %v3608 = vadd.s32 %v3604, %v3600
  %v3609 = vadd.s32 %v3605, %v3607
  %v3610 = vadd.s32 %v3609, %v3599
  %v3611 = vadd.s32 %v3610, %v3601
  %v3612 = vand.u32 %v3589, 65535
  %v3613 = vshrl.u32 %v3589, 16
  %v3614 = vand.u32 %v3584, 65535
  %v3615 = vshrl.u32 %v3584, 16
  %v3616 = vmul.u32 %v3612, %v3614
  %v3617 = vmul.u32 %v3612, %v3615
  %v3618 = vmul.u32 %v3613, %v3614
  %v3619 = vmul.u32 %v3613, %v3615
  %v3620 = vshll.u32 %v3617, 16
  %v3621 = vshrl.u32 %v3617, 16
  %v3622 = vshll.u32 %v3618, 16
  %v3623 = vshrl.u32 %v3618, 16
  %vm3624 = vc.u32 %v3616, %v3620
  %v3625 = vsel %vm3624, 1, 0
  %v3626 = vadd.s32 %v3616, %v3620
  %v3627 = vadd.s32 %v3619, %v3625
  %vm3628 = vc.u32 %v3626, %v3622
  %v3629 = vsel %vm3628, 1, 0
  %v3630 = vadd.s32 %v3626, %v3622
  %v3631 = vadd.s32 %v3627, %v3629
  %v3632 = vadd.s32 %v3631, %v3621
  %v3633 = vadd.s32 %v3632, %v3623
  %v3634 = vmul.u32 %v3589, %v3580
  %v3635 = vadd.s32 %v3611, %v3630
  %vm3636 = vc.u32 %v3611, %v3630
  %v3637 = vadd.s32 %v3633, 1
  %v3638 = vsel %vm3636, %v3637, %v3633
  %v3639 = vadd.s32 %v3634, %v3638
  %v3640 = vadd.s32 %v3639, 536870912
  %v3641 = vshrl.u32 %v3640, 30
  %v3642 = vshll.u32 %v3641, 30
  %v3643 = vsub.s32 %v3639, %v3642
  %vm3644 = vcmp.lt.s32.totalorder %v3643, 0
  %v3645 = vsub.s32 0, %v3643
  %v3646 = vsel %vm3644, %v3645, %v3643
  %v3647 = vclz %v3646
  %v3648 = vsub.s32 %v3647, 2
  %vm3649 = vcmp.gt.s32.totalorder 0, %v3648
  %v3650 = vsel %vm3649, 0, %v3648
  %v3651 = vsub.s32 32, %v3650
  %v3652 = vshll.u32 %v3643, %v3650
  %v3653 = vshrl.u32 %v3635, %v3651
  %v3654 = vor.u32 %v3652, %v3653
  %v3655 = vsub.s32 4294967266, %v3650
  %v3656 = vadd.s32 %v3655, 127
  %v3657 = vshll.u32 %v3656, 23
  %v3658 = vor.u32 4788187, %v3657
  %v3659 = vand.u32 2147483647, %v3658
  %v3661 = vcvt.s32.f32 %v3654
  %v3662 = vmul.f32 %v3661, %v3659
  %v3663 = vxor.u32 %v3662, 2147483648
  %v3664 = vsel %vm3543, %v3663, %v3662
  %v3665 = vsub.s32 4, %v3641
  %v3666 = vsel %vm3543, %v3665, %v3641
  %v3667 = vsel %vm3542, %v3513, %v3664
  %v3668 = vsel %vm3542, 0, %v3666
  %v3669 = vmul.f32 %v3667, %v3667
  %v3670 = vmul.f32 %v3669, -0.001358992
  %v3671 = vadd.f32 %v3670, 0.041655596
  %v3672 = vmul.f32 %v3669, %v3671
  %v3673 = vadd.f32 %v3672, -0.4999988
  %v3674 = vmul.f32 %v3669, %v3673
  %v3675 = vadd.f32 1.0, %v3674
  %v3676 = vmul.f32 %v3667, %v3667
  %v3677 = vmul.f32 %v3676, -0.00019511016
  %v3678 = vadd.f32 %v3677, 0.008332121
  %v3679 = vmul.f32 %v3676, %v3678
  %v3680 = vadd.f32 %v3679, -0.16666654
  %v3681 = vmul.f32 %v3676, %v3680
  %v3682 = vadd.f32 %v3681, 1.0
  %v3683 = vmul.f32 %v3682, %v3667
  %vm3684 = vweird.f32 %v3513
  %v3685 = vand.u32 %v3668, 3
  %vm3686 = vcmp.lt.s32.totalorder %v3685, 2
  %vm3687 = vcmp.eq.s32.totalorder %v3685, 0
  %v3688 = vxor.u32 %v3683, 2147483648
  %v3689 = vsel %vm3687, %v3675, %v3688
  %vm3690 = vcmp.eq.s32.totalorder %v3685, 2
  %v3691 = vxor.u32 %v3675, 2147483648
  %v3692 = vsel %vm3690, %v3691, %v3683
  %v3693 = vsel %vm3686, %v3689, %v3692
  %v3694 = vsel %vm3684, nan, %v3693
  %v3695 = vand.u32 2147483647, %v3514
  %vm3696 = vcmp.le.f32.partialorder %v3695, 0.7853982
  %vm3697 = vcmp.lt.s32.totalorder %v3514, 0
  %v3698 = vand.u32 %v3514, 2139095040
  %v3699 = vshrl.u32 %v3698, 23
  %v3700 = vsub.s32 %v3699, 127
  %v3701 = vand.u32 2147483647, %v3514
  %v3702 = vand.u32 %v3701, 8388607
  %v3703 = vor.u32 %v3702, 8388608
  %v3704 = vsub.s32 0, %v3703
  %v3705 = vadd.s32 %v3700, 1
  %vm3706 = vcmp.gt.s32.totalorder %v3705, 0
  %v3707 = vsel %vm3706, %v3705, 0
  %v3708 = vshrl.u32 %v3707, 5
  %v3709 = vand.u32 %v3707, 31
  %v3710 = vsub.s32 32, %v3709
  %v3711 = vshrl.u32 683565275, %v3710
  %v3712 = vshll.u32 683565275, %v3709
  %v3713 = vshrl.u32 2475754826, %v3710
  %v3714 = vor.u32 %v3712, %v3713
  %v3715 = vshll.u32 2475754826, %v3709
  %v3716 = vshrl.u32 2131351028, %v3710
  %v3717 = vor.u32 %v3715, %v3716
  %v3718 = vshll.u32 2131351028, %v3709
  %v3719 = vshrl.u32 2102212464, %v3710
  %v3720 = vor.u32 %v3718, %v3719
  %v3721 = vshll.u32 2102212464, %v3709
  %v3722 = vshrl.u32 920167782, %v3710
  %v3723 = vor.u32 %v3721, %v3722
  %v3724 = vshll.u32 920167782, %v3709
  %v3725 = vshrl.u32 1326507024, %v3710
  %v3726 = vor.u32 %v3724, %v3725
  %vm3727 = vcmp.lt.s32.totalorder %v3708, 1
  %vm3728 = vcmp.lt.s32.totalorder %v3708, 2
  %vm3729 = vcmp.lt.s32.totalorder %v3708, 3
  %vm3730 = vcmp.lt.s32.totalorder %v3708, 4
  %v3731 = vsel %vm3727, %v3711, %v3714
  %v3732 = vsel %vm3730, %v3720, 2102212464
  %v3733 = vsel %vm3729, %v3717, %v3732
  %v3734 = vsel %vm3728, %v3731, %v3733
  %v3735 = vsel %vm3727, %v3714, %v3717
  %v3736 = vsel %vm3730, %v3723, 920167782
  %v3737 = vsel %vm3729, %v3720, %v3736
  %v3738 = vsel %vm3728, %v3735, %v3737
  %v3739 = vsel %vm3727, %v3717, %v3720
  %v3740 = vsel %vm3730, %v3726, 1326507024
  %v3741 = vsel %vm3729, %v3723, %v3740
  %v3742 = vsel %vm3728, %v3739, %v3741
  %v3743 = vshll.u32 %v3703, 8
  %v3744 = vand.u32 %v3743, 65535
  %v3745 = vshrl.u32 %v3743, 16
  %v3746 = vand.u32 %v3742, 65535
  %v3747 = vshrl.u32 %v3742, 16
  %v3748 = vmul.u32 %v3744, %v3746
  %v3749 = vmul.u32 %v3744, %v3747
  %v3750 = vmul.u32 %v3745, %v3746
  %v3751 = vmul.u32 %v3745, %v3747
  %v3752 = vshll.u32 %v3749, 16
  %v3753 = vshrl.u32 %v3749, 16
  %v3754 = vshll.u32 %v3750, 16
  %v3755 = vshrl.u32 %v3750, 16
  %vm3756 = vc.u32 %v3748, %v3752
  %v3757 = vsel %vm3756, 1, 0
  %v3758 = vadd.s32 %v3748, %v3752
  %v3759 = vadd.s32 %v3751, %v3757
  %vm3760 = vc.u32 %v3758, %v3754
  %v3761 = vsel %vm3760, 1, 0
  %v3762 = vadd.s32 %v3758, %v3754
  %v3763 = vadd.s32 %v3759, %v3761
  %v3764 = vadd.s32 %v3763, %v3753
  %v3765 = vadd.s32 %v3764, %v3755
  %v3766 = vand.u32 %v3743, 65535
  %v3767 = vshrl.u32 %v3743, 16
  %v3768 = vand.u32 %v3738, 65535
  %v3769 = vshrl.u32 %v3738, 16
  %v3770 = vmul.u32 %v3766, %v3768
  %v3771 = vmul.u32 %v3766, %v3769
  %v3772 = vmul.u32 %v3767, %v3768
  %v3773 = vmul.u32 %v3767, %v3769
  %v3774 = vshll.u32 %v3771, 16
  %v3775 = vshrl.u32 %v3771, 16
  %v3776 = vshll.u32 %v3772, 16
  %v3777 = vshrl.u32 %v3772, 16
  %vm3778 = vc.u32 %v3770, %v3774
  %v3779 = vsel %vm3778, 1, 0
  %v3780 = vadd.s32 %v3770, %v3774
  %v3781 = vadd.s32 %v3773, %v3779
  %vm3782 = vc.u32 %v3780, %v3776
  %v3783 = vsel %vm3782, 1, 0
  %v3784 = vadd.s32 %v3780, %v3776
  %v3785 = vadd.s32 %v3781, %v3783
  %v3786 = vadd.s32 %v3785, %v3775
  %v3787 = vadd.s32 %v3786, %v3777
  %v3788 = vmul.u32 %v3743, %v3734
  %v3789 = vadd.s32 %v3765, %v3784
  %vm3790 = vc.u32 %v3765, %v3784
  %v3791 = vadd.s32 %v3787, 1
  %v3792 = vsel %vm3790, %v3791, %v3787
  %v3793 = vadd.s32 %v3788, %v3792
  %v3794 = vadd.s32 %v3793, 536870912
  %v3795 = vshrl.u32 %v3794, 30
  %v3796 = vshll.u32 %v3795, 30
  %v3797 = vsub.s32 %v3793, %v3796
  %vm3798 = vcmp.lt.s32.totalorder %v3797, 0
  %v3799 = vsub.s32 0, %v3797
  %v3800 = vsel %vm3798, %v3799, %v3797
  %v3801 = vclz %v3800
  %v3802 = vsub.s32 %v3801, 2
  %vm3803 = vcmp.gt.s32.totalorder 0, %v3802
  %v3804 = vsel %vm3803, 0, %v3802
  %v3805 = vsub.s32 32, %v3804
  %v3806 = vshll.u32 %v3797, %v3804
  %v3807 = vshrl.u32 %v3789, %v3805
  %v3808 = vor.u32 %v3806, %v3807
  %v3809 = vsub.s32 4294967266, %v3804
  %v3810 = vadd.s32 %v3809, 127
  %v3811 = vshll.u32 %v3810, 23
  %v3812 = vor.u32 4788187, %v3811
  %v3813 = vand.u32 2147483647, %v3812
  %v3815 = vcvt.s32.f32 %v3808
  %v3816 = vmul.f32 %v3815, %v3813
  %v3817 = vxor.u32 %v3816, 2147483648
  %v3818 = vsel %vm3697, %v3817, %v3816
  %v3819 = vsub.s32 4, %v3795
  %v3820 = vsel %vm3697, %v3819, %v3795
  %v3821 = vsel %vm3696, %v3514, %v3818
  %v3822 = vsel %vm3696, 0, %v3820
  %v3823 = vmul.f32 %v3821, %v3821
  %v3824 = vmul.f32 %v3823, -0.001358992
  %v3825 = vadd.f32 %v3824, 0.041655596
  %v3826 = vmul.f32 %v3823, %v3825
  %v3827 = vadd.f32 %v3826, -0.4999988
  %v3828 = vmul.f32 %v3823, %v3827
  %v3829 = vadd.f32 1.0, %v3828
  %v3830 = vmul.f32 %v3821, %v3821
  %v3831 = vmul.f32 %v3830, -0.00019511016
  %v3832 = vadd.f32 %v3831, 0.008332121
  %v3833 = vmul.f32 %v3830, %v3832
  %v3834 = vadd.f32 %v3833, -0.16666654
  %v3835 = vmul.f32 %v3830, %v3834
  %v3836 = vadd.f32 %v3835, 1.0
  %v3837 = vmul.f32 %v3836, %v3821
  %vm3838 = vweird.f32 %v3514
  %v3839 = vand.u32 %v3822, 3
  %vm3840 = vcmp.lt.s32.totalorder %v3839, 2
  %vm3841 = vcmp.eq.s32.totalorder %v3839, 0
  %v3842 = vxor.u32 %v3837, 2147483648
  %v3843 = vsel %vm3841, %v3829, %v3842
  %vm3844 = vcmp.eq.s32.totalorder %v3839, 2
  %v3845 = vxor.u32 %v3829, 2147483648
  %v3846 = vsel %vm3844, %v3845, %v3837
  %v3847 = vsel %vm3840, %v3843, %v3846
  %v3848 = vsel %vm3838, nan, %v3847
  %v3849 = vand.u32 2147483647, %v3515
  %vm3850 = vcmp.le.f32.partialorder %v3849, 0.7853982
  %vm3851 = vcmp.lt.s32.totalorder %v3515, 0
  %v3852 = vand.u32 %v3515, 2139095040
  %v3853 = vshrl.u32 %v3852, 23
  %v3854 = vsub.s32 %v3853, 127
  %v3855 = vand.u32 2147483647, %v3515
  %v3856 = vand.u32 %v3855, 8388607
  %v3857 = vor.u32 %v3856, 8388608
  %v3858 = vsub.s32 0, %v3857
  %v3859 = vadd.s32 %v3854, 1
  %vm3860 = vcmp.gt.s32.totalorder %v3859, 0
  %v3861 = vsel %vm3860, %v3859, 0
  %v3862 = vshrl.u32 %v3861, 5
  %v3863 = vand.u32 %v3861, 31
  %v3864 = vsub.s32 32, %v3863
  %v3865 = vshrl.u32 683565275, %v3864
  %v3866 = vshll.u32 683565275, %v3863
  %v3867 = vshrl.u32 2475754826, %v3864
  %v3868 = vor.u32 %v3866, %v3867
  %v3869 = vshll.u32 2475754826, %v3863
  %v3870 = vshrl.u32 2131351028, %v3864
  %v3871 = vor.u32 %v3869, %v3870
  %v3872 = vshll.u32 2131351028, %v3863
  %v3873 = vshrl.u32 2102212464, %v3864
  %v3874 = vor.u32 %v3872, %v3873
  %v3875 = vshll.u32 2102212464, %v3863
  %v3876 = vshrl.u32 920167782, %v3864
  %v3877 = vor.u32 %v3875, %v3876
  %v3878 = vshll.u32 920167782, %v3863
  %v3879 = vshrl.u32 1326507024, %v3864
  %v3880 = vor.u32 %v3878, %v3879
  %vm3881 = vcmp.lt.s32.totalorder %v3862, 1
  %vm3882 = vcmp.lt.s32.totalorder %v3862, 2
  %vm3883 = vcmp.lt.s32.totalorder %v3862, 3
  %vm3884 = vcmp.lt.s32.totalorder %v3862, 4
  %v3885 = vsel %vm3881, %v3865, %v3868
  %v3886 = vsel %vm3884, %v3874, 2102212464
  %v3887 = vsel %vm3883, %v3871, %v3886
  %v3888 = vsel %vm3882, %v3885, %v3887
  %v3889 = vsel %vm3881, %v3868, %v3871
  %v3890 = vsel %vm3884, %v3877, 920167782
  %v3891 = vsel %vm3883, %v3874, %v3890
  %v3892 = vsel %vm3882, %v3889, %v3891
  %v3893 = vsel %vm3881, %v3871, %v3874
  %v3894 = vsel %vm3884, %v3880, 1326507024
  %v3895 = vsel %vm3883, %v3877, %v3894
  %v3896 = vsel %vm3882, %v3893, %v3895
  %v3897 = vshll.u32 %v3857, 8
  %v3898 = vand.u32 %v3897, 65535
  %v3899 = vshrl.u32 %v3897, 16
  %v3900 = vand.u32 %v3896, 65535
  %v3901 = vshrl.u32 %v3896, 16
  %v3902 = vmul.u32 %v3898, %v3900
  %v3903 = vmul.u32 %v3898, %v3901
  %v3904 = vmul.u32 %v3899, %v3900
  %v3905 = vmul.u32 %v3899, %v3901
  %v3906 = vshll.u32 %v3903, 16
  %v3907 = vshrl.u32 %v3903, 16
  %v3908 = vshll.u32 %v3904, 16
  %v3909 = vshrl.u32 %v3904, 16
  %vm3910 = vc.u32 %v3902, %v3906
  %v3911 = vsel %vm3910, 1, 0
  %v3912 = vadd.s32 %v3902, %v3906
  %v3913 = vadd.s32 %v3905, %v3911
  %vm3914 = vc.u32 %v3912, %v3908
  %v3915 = vsel %vm3914, 1, 0
  %v3916 = vadd.s32 %v3912, %v3908
  %v3917 = vadd.s32 %v3913, %v3915
  %v3918 = vadd.s32 %v3917, %v3907
  %v3919 = vadd.s32 %v3918, %v3909
  %v3920 = vand.u32 %v3897, 65535
  %v3921 = vshrl.u32 %v3897, 16
  %v3922 = vand.u32 %v3892, 65535
  %v3923 = vshrl.u32 %v3892, 16
  %v3924 = vmul.u32 %v3920, %v3922
  %v3925 = vmul.u32 %v3920, %v3923
  %v3926 = vmul.u32 %v3921, %v3922
  %v3927 = vmul.u32 %v3921, %v3923
  %v3928 = vshll.u32 %v3925, 16
  %v3929 = vshrl.u32 %v3925, 16
  %v3930 = vshll.u32 %v3926, 16
  %v3931 = vshrl.u32 %v3926, 16
  %vm3932 = vc.u32 %v3924, %v3928
  %v3933 = vsel %vm3932, 1, 0
  %v3934 = vadd.s32 %v3924, %v3928
  %v3935 = vadd.s32 %v3927, %v3933
  %vm3936 = vc.u32 %v3934, %v3930
  %v3937 = vsel %vm3936, 1, 0
  %v3938 = vadd.s32 %v3934, %v3930
  %v3939 = vadd.s32 %v3935, %v3937
  %v3940 = vadd.s32 %v3939, %v3929
  %v3941 = vadd.s32 %v3940, %v3931
  %v3942 = vmul.u32 %v3897, %v3888
  %v3943 = vadd.s32 %v3919, %v3938
  %vm3944 = vc.u32 %v3919, %v3938
  %v3945 = vadd.s32 %v3941, 1
  %v3946 = vsel %vm3944, %v3945, %v3941
  %v3947 = vadd.s32 %v3942, %v3946
  %v3948 = vadd.s32 %v3947, 536870912
  %v3949 = vshrl.u32 %v3948, 30
  %v3950 = vshll.u32 %v3949, 30
  %v3951 = vsub.s32 %v3947, %v3950
  %vm3952 = vcmp.lt.s32.totalorder %v3951, 0
  %v3953 = vsub.s32 0, %v3951
  %v3954 = vsel %vm3952, %v3953, %v3951
  %v3955 = vclz %v3954
  %v3956 = vsub.s32 %v3955, 2
  %vm3957 = vcmp.gt.s32.totalorder 0, %v3956
  %v3958 = vsel %vm3957, 0, %v3956
  %v3959 = vsub.s32 32, %v3958
  %v3960 = vshll.u32 %v3951, %v3958
  %v3961 = vshrl.u32 %v3943, %v3959
  %v3962 = vor.u32 %v3960, %v3961
  %v3963 = vsub.s32 4294967266, %v3958
  %v3964 = vadd.s32 %v3963, 127
  %v3965 = vshll.u32 %v3964, 23
  %v3966 = vor.u32 4788187, %v3965
  %v3967 = vand.u32 2147483647, %v3966
  %v3969 = vcvt.s32.f32 %v3962
  %v3970 = vmul.f32 %v3969, %v3967
  %v3971 = vxor.u32 %v3970, 2147483648
  %v3972 = vsel %vm3851, %v3971, %v3970
  %v3973 = vsub.s32 4, %v3949
  %v3974 = vsel %vm3851, %v3973, %v3949
  %v3975 = vsel %vm3850, %v3515, %v3972
  %v3976 = vsel %vm3850, 0, %v3974
  %v3977 = vmul.f32 %v3975, %v3975
  %v3978 = vmul.f32 %v3977, -0.001358992
  %v3979 = vadd.f32 %v3978, 0.041655596
  %v3980 = vmul.f32 %v3977, %v3979
  %v3981 = vadd.f32 %v3980, -0.4999988
  %v3982 = vmul.f32 %v3977, %v3981
  %v3983 = vadd.f32 1.0, %v3982
  %v3984 = vmul.f32 %v3975, %v3975
  %v3985 = vmul.f32 %v3984, -0.00019511016
  %v3986 = vadd.f32 %v3985, 0.008332121
  %v3987 = vmul.f32 %v3984, %v3986
  %v3988 = vadd.f32 %v3987, -0.16666654
  %v3989 = vmul.f32 %v3984, %v3988
  %v3990 = vadd.f32 %v3989, 1.0
  %v3991 = vmul.f32 %v3990, %v3975
  %vm3992 = vweird.f32 %v3515
  %v3993 = vand.u32 %v3976, 3
  %vm3994 = vcmp.lt.s32.totalorder %v3993, 2
  %vm3995 = vcmp.eq.s32.totalorder %v3993, 0
  %v3996 = vxor.u32 %v3991, 2147483648
  %v3997 = vsel %vm3995, %v3983, %v3996
  %vm3998 = vcmp.eq.s32.totalorder %v3993, 2
  %v3999 = vxor.u32 %v3983, 2147483648
  %v4000 = vsel %vm3998, %v3999, %v3991
  %v4001 = vsel %vm3994, %v3997, %v4000
  %v4002 = vsel %vm3992, nan, %v4001
  %v4003 = vand.u32 2147483647, %v3516
  %vm4004 = vcmp.le.f32.partialorder %v4003, 0.7853982
  %vm4005 = vcmp.lt.s32.totalorder %v3516, 0
  %v4006 = vand.u32 %v3516, 2139095040
  %v4007 = vshrl.u32 %v4006, 23
  %v4008 = vsub.s32 %v4007, 127
  %v4009 = vand.u32 2147483647, %v3516
  %v4010 = vand.u32 %v4009, 8388607
  %v4011 = vor.u32 %v4010, 8388608
  %v4012 = vsub.s32 0, %v4011
  %v4013 = vadd.s32 %v4008, 1
  %vm4014 = vcmp.gt.s32.totalorder %v4013, 0
  %v4015 = vsel %vm4014, %v4013, 0
  %v4016 = vshrl.u32 %v4015, 5
  %v4017 = vand.u32 %v4015, 31
  %v4018 = vsub.s32 32, %v4017
  %v4019 = vshrl.u32 683565275, %v4018
  %v4020 = vshll.u32 683565275, %v4017
  %v4021 = vshrl.u32 2475754826, %v4018
  %v4022 = vor.u32 %v4020, %v4021
  %v4023 = vshll.u32 2475754826, %v4017
  %v4024 = vshrl.u32 2131351028, %v4018
  %v4025 = vor.u32 %v4023, %v4024
  %v4026 = vshll.u32 2131351028, %v4017
  %v4027 = vshrl.u32 2102212464, %v4018
  %v4028 = vor.u32 %v4026, %v4027
  %v4029 = vshll.u32 2102212464, %v4017
  %v4030 = vshrl.u32 920167782, %v4018
  %v4031 = vor.u32 %v4029, %v4030
  %v4032 = vshll.u32 920167782, %v4017
  %v4033 = vshrl.u32 1326507024, %v4018
  %v4034 = vor.u32 %v4032, %v4033
  %vm4035 = vcmp.lt.s32.totalorder %v4016, 1
  %vm4036 = vcmp.lt.s32.totalorder %v4016, 2
  %vm4037 = vcmp.lt.s32.totalorder %v4016, 3
  %vm4038 = vcmp.lt.s32.totalorder %v4016, 4
  %v4039 = vsel %vm4035, %v4019, %v4022
  %v4040 = vsel %vm4038, %v4028, 2102212464
  %v4041 = vsel %vm4037, %v4025, %v4040
  %v4042 = vsel %vm4036, %v4039, %v4041
  %v4043 = vsel %vm4035, %v4022, %v4025
  %v4044 = vsel %vm4038, %v4031, 920167782
  %v4045 = vsel %vm4037, %v4028, %v4044
  %v4046 = vsel %vm4036, %v4043, %v4045
  %v4047 = vsel %vm4035, %v4025, %v4028
  %v4048 = vsel %vm4038, %v4034, 1326507024
  %v4049 = vsel %vm4037, %v4031, %v4048
  %v4050 = vsel %vm4036, %v4047, %v4049
  %v4051 = vshll.u32 %v4011, 8
  %v4052 = vand.u32 %v4051, 65535
  %v4053 = vshrl.u32 %v4051, 16
  %v4054 = vand.u32 %v4050, 65535
  %v4055 = vshrl.u32 %v4050, 16
  %v4056 = vmul.u32 %v4052, %v4054
  %v4057 = vmul.u32 %v4052, %v4055
  %v4058 = vmul.u32 %v4053, %v4054
  %v4059 = vmul.u32 %v4053, %v4055
  %v4060 = vshll.u32 %v4057, 16
  %v4061 = vshrl.u32 %v4057, 16
  %v4062 = vshll.u32 %v4058, 16
  %v4063 = vshrl.u32 %v4058, 16
  %vm4064 = vc.u32 %v4056, %v4060
  %v4065 = vsel %vm4064, 1, 0
  %v4066 = vadd.s32 %v4056, %v4060
  %v4067 = vadd.s32 %v4059, %v4065
  %vm4068 = vc.u32 %v4066, %v4062
  %v4069 = vsel %vm4068, 1, 0
  %v4070 = vadd.s32 %v4066, %v4062
  %v4071 = vadd.s32 %v4067, %v4069
  %v4072 = vadd.s32 %v4071, %v4061
  %v4073 = vadd.s32 %v4072, %v4063
  %v4074 = vand.u32 %v4051, 65535
  %v4075 = vshrl.u32 %v4051, 16
  %v4076 = vand.u32 %v4046, 65535
  %v4077 = vshrl.u32 %v4046, 16
  %v4078 = vmul.u32 %v4074, %v4076
  %v4079 = vmul.u32 %v4074, %v4077
  %v4080 = vmul.u32 %v4075, %v4076
  %v4081 = vmul.u32 %v4075, %v4077
  %v4082 = vshll.u32 %v4079, 16
  %v4083 = vshrl.u32 %v4079, 16
  %v4084 = vshll.u32 %v4080, 16
  %v4085 = vshrl.u32 %v4080, 16
  %vm4086 = vc.u32 %v4078, %v4082
  %v4087 = vsel %vm4086, 1, 0
  %v4088 = vadd.s32 %v4078, %v4082
  %v4089 = vadd.s32 %v4081, %v4087
  %vm4090 = vc.u32 %v4088, %v4084
  %v4091 = vsel %vm4090, 1, 0
  %v4092 = vadd.s32 %v4088, %v4084
  %v4093 = vadd.s32 %v4089, %v4091
  %v4094 = vadd.s32 %v4093, %v4083
  %v4095 = vadd.s32 %v4094, %v4085
  %v4096 = vmul.u32 %v4051, %v4042
  %v4097 = vadd.s32 %v4073, %v4092
  %vm4098 = vc.u32 %v4073, %v4092
  %v4099 = vadd.s32 %v4095, 1
  %v4100 = vsel %vm4098, %v4099, %v4095
  %v4101 = vadd.s32 %v4096, %v4100
  %v4102 = vadd.s32 %v4101, 536870912
  %v4103 = vshrl.u32 %v4102, 30
  %v4104 = vshll.u32 %v4103, 30
  %v4105 = vsub.s32 %v4101, %v4104
  %vm4106 = vcmp.lt.s32.totalorder %v4105, 0
  %v4107 = vsub.s32 0, %v4105
  %v4108 = vsel %vm4106, %v4107, %v4105
  %v4109 = vclz %v4108
  %v4110 = vsub.s32 %v4109, 2
  %vm4111 = vcmp.gt.s32.totalorder 0, %v4110
  %v4112 = vsel %vm4111, 0, %v4110
  %v4113 = vsub.s32 32, %v4112
  %v4114 = vshll.u32 %v4105, %v4112
  %v4115 = vshrl.u32 %v4097, %v4113
  %v4116 = vor.u32 %v4114, %v4115
  %v4117 = vsub.s32 4294967266, %v4112
  %v4118 = vadd.s32 %v4117, 127
  %v4119 = vshll.u32 %v4118, 23
  %v4120 = vor.u32 4788187, %v4119
  %v4121 = vand.u32 2147483647, %v4120
  %v4123 = vcvt.s32.f32 %v4116
  %v4124 = vmul.f32 %v4123, %v4121
  %v4125 = vxor.u32 %v4124, 2147483648
  %v4126 = vsel %vm4005, %v4125, %v4124
  %v4127 = vsub.s32 4, %v4103
  %v4128 = vsel %vm4005, %v4127, %v4103
  %v4129 = vsel %vm4004, %v3516, %v4126
  %v4130 = vsel %vm4004, 0, %v4128
  %v4131 = vmul.f32 %v4129, %v4129
  %v4132 = vmul.f32 %v4131, -0.001358992
  %v4133 = vadd.f32 %v4132, 0.041655596
  %v4134 = vmul.f32 %v4131, %v4133
  %v4135 = vadd.f32 %v4134, -0.4999988
  %v4136 = vmul.f32 %v4131, %v4135
  %v4137 = vadd.f32 1.0, %v4136
  %v4138 = vmul.f32 %v4129, %v4129
  %v4139 = vmul.f32 %v4138, -0.00019511016
  %v4140 = vadd.f32 %v4139, 0.008332121
  %v4141 = vmul.f32 %v4138, %v4140
  %v4142 = vadd.f32 %v4141, -0.16666654
  %v4143 = vmul.f32 %v4138, %v4142
  %v4144 = vadd.f32 %v4143, 1.0
  %v4145 = vmul.f32 %v4144, %v4129
  %vm4146 = vweird.f32 %v3516
  %v4147 = vand.u32 %v4130, 3
  %vm4148 = vcmp.lt.s32.totalorder %v4147, 2
  %vm4149 = vcmp.eq.s32.totalorder %v4147, 0
  %v4150 = vxor.u32 %v4145, 2147483648
  %v4151 = vsel %vm4149, %v4137, %v4150
  %vm4152 = vcmp.eq.s32.totalorder %v4147, 2
  %v4153 = vxor.u32 %v4137, 2147483648
  %v4154 = vsel %vm4152, %v4153, %v4145
  %v4155 = vsel %vm4148, %v4151, %v4154
  %v4156 = vsel %vm4146, nan, %v4155
  %v4157 = vand.u32 2147483647, %v3513
  %vm4158 = vcmp.le.f32.partialorder %v4157, 0.7853982
  %vm4159 = vcmp.lt.s32.totalorder %v3513, 0
  %v4160 = vand.u32 %v3513, 2139095040
  %v4161 = vshrl.u32 %v4160, 23
  %v4162 = vsub.s32 %v4161, 127
  %v4163 = vand.u32 2147483647, %v3513
  %v4164 = vand.u32 %v4163, 8388607
  %v4165 = vor.u32 %v4164, 8388608
  %v4166 = vsub.s32 0, %v4165
  %v4167 = vadd.s32 %v4162, 1
  %vm4168 = vcmp.gt.s32.totalorder %v4167, 0
  %v4169 = vsel %vm4168, %v4167, 0
  %v4170 = vshrl.u32 %v4169, 5
  %v4171 = vand.u32 %v4169, 31
  %v4172 = vsub.s32 32, %v4171
  %v4173 = vshrl.u32 683565275, %v4172
  %v4174 = vshll.u32 683565275, %v4171
  %v4175 = vshrl.u32 2475754826, %v4172
  %v4176 = vor.u32 %v4174, %v4175
  %v4177 = vshll.u32 2475754826, %v4171
  %v4178 = vshrl.u32 2131351028, %v4172
  %v4179 = vor.u32 %v4177, %v4178
  %v4180 = vshll.u32 2131351028, %v4171
  %v4181 = vshrl.u32 2102212464, %v4172
  %v4182 = vor.u32 %v4180, %v4181
  %v4183 = vshll.u32 2102212464, %v4171
  %v4184 = vshrl.u32 920167782, %v4172
  %v4185 = vor.u32 %v4183, %v4184
  %v4186 = vshll.u32 920167782, %v4171
  %v4187 = vshrl.u32 1326507024, %v4172
  %v4188 = vor.u32 %v4186, %v4187
  %vm4189 = vcmp.lt.s32.totalorder %v4170, 1
  %vm4190 = vcmp.lt.s32.totalorder %v4170, 2
  %vm4191 = vcmp.lt.s32.totalorder %v4170, 3
  %vm4192 = vcmp.lt.s32.totalorder %v4170, 4
  %v4193 = vsel %vm4189, %v4173, %v4176
  %v4194 = vsel %vm4192, %v4182, 2102212464
  %v4195 = vsel %vm4191, %v4179, %v4194
  %v4196 = vsel %vm4190, %v4193, %v4195
  %v4197 = vsel %vm4189, %v4176, %v4179
  %v4198 = vsel %vm4192, %v4185, 920167782
  %v4199 = vsel %vm4191, %v4182, %v4198
  %v4200 = vsel %vm4190, %v4197, %v4199
  %v4201 = vsel %vm4189, %v4179, %v4182
  %v4202 = vsel %vm4192, %v4188, 1326507024
  %v4203 = vsel %vm4191, %v4185, %v4202
  %v4204 = vsel %vm4190, %v4201, %v4203
  %v4205 = vshll.u32 %v4165, 8
  %v4206 = vand.u32 %v4205, 65535
  %v4207 = vshrl.u32 %v4205, 16
  %v4208 = vand.u32 %v4204, 65535
  %v4209 = vshrl.u32 %v4204, 16
  %v4210 = vmul.u32 %v4206, %v4208
  %v4211 = vmul.u32 %v4206, %v4209
  %v4212 = vmul.u32 %v4207, %v4208
  %v4213 = vmul.u32 %v4207, %v4209
  %v4214 = vshll.u32 %v4211, 16
  %v4215 = vshrl.u32 %v4211, 16
  %v4216 = vshll.u32 %v4212, 16
  %v4217 = vshrl.u32 %v4212, 16
  %vm4218 = vc.u32 %v4210, %v4214
  %v4219 = vsel %vm4218, 1, 0
  %v4220 = vadd.s32 %v4210, %v4214
  %v4221 = vadd.s32 %v4213, %v4219
  %vm4222 = vc.u32 %v4220, %v4216
  %v4223 = vsel %vm4222, 1, 0
  %v4224 = vadd.s32 %v4220, %v4216
  %v4225 = vadd.s32 %v4221, %v4223
  %v4226 = vadd.s32 %v4225, %v4215
  %v4227 = vadd.s32 %v4226, %v4217
  %v4228 = vand.u32 %v4205, 65535
  %v4229 = vshrl.u32 %v4205, 16
  %v4230 = vand.u32 %v4200, 65535
  %v4231 = vshrl.u32 %v4200, 16
  %v4232 = vmul.u32 %v4228, %v4230
  %v4233 = vmul.u32 %v4228, %v4231
  %v4234 = vmul.u32 %v4229, %v4230
  %v4235 = vmul.u32 %v4229, %v4231
  %v4236 = vshll.u32 %v4233, 16
  %v4237 = vshrl.u32 %v4233, 16
  %v4238 = vshll.u32 %v4234, 16
  %v4239 = vshrl.u32 %v4234, 16
  %vm4240 = vc.u32 %v4232, %v4236
  %v4241 = vsel %vm4240, 1, 0
  %v4242 = vadd.s32 %v4232, %v4236
  %v4243 = vadd.s32 %v4235, %v4241
  %vm4244 = vc.u32 %v4242, %v4238
  %v4245 = vsel %vm4244, 1, 0
  %v4246 = vadd.s32 %v4242, %v4238
  %v4247 = vadd.s32 %v4243, %v4245
  %v4248 = vadd.s32 %v4247, %v4237
  %v4249 = vadd.s32 %v4248, %v4239
  %v4250 = vmul.u32 %v4205, %v4196
  %v4251 = vadd.s32 %v4227, %v4246
  %vm4252 = vc.u32 %v4227, %v4246
  %v4253 = vadd.s32 %v4249, 1
  %v4254 = vsel %vm4252, %v4253, %v4249
  %v4255 = vadd.s32 %v4250, %v4254
  %v4256 = vadd.s32 %v4255, 536870912
  %v4257 = vshrl.u32 %v4256, 30
  %v4258 = vshll.u32 %v4257, 30
  %v4259 = vsub.s32 %v4255, %v4258
  %vm4260 = vcmp.lt.s32.totalorder %v4259, 0
  %v4261 = vsub.s32 0, %v4259
  %v4262 = vsel %vm4260, %v4261, %v4259
  %v4263 = vclz %v4262
  %v4264 = vsub.s32 %v4263, 2
  %vm4265 = vcmp.gt.s32.totalorder 0, %v4264
  %v4266 = vsel %vm4265, 0, %v4264
  %v4267 = vsub.s32 32, %v4266
  %v4268 = vshll.u32 %v4259, %v4266
  %v4269 = vshrl.u32 %v4251, %v4267
  %v4270 = vor.u32 %v4268, %v4269
  %v4271 = vsub.s32 4294967266, %v4266
  %v4272 = vadd.s32 %v4271, 127
  %v4273 = vshll.u32 %v4272, 23
  %v4274 = vor.u32 4788187, %v4273
  %v4275 = vand.u32 2147483647, %v4274
  %v4277 = vcvt.s32.f32 %v4270
  %v4278 = vmul.f32 %v4277, %v4275
  %v4279 = vxor.u32 %v4278, 2147483648
  %v4280 = vsel %vm4159, %v4279, %v4278
  %v4281 = vsub.s32 4, %v4257
  %v4282 = vsel %vm4159, %v4281, %v4257
  %v4283 = vsel %vm4158, %v3513, %v4280
  %v4284 = vsel %vm4158, 0, %v4282
  %v4285 = vmul.f32 %v4283, %v4283
  %v4286 = vmul.f32 %v4285, -0.001358992
  %v4287 = vadd.f32 %v4286, 0.041655596
  %v4288 = vmul.f32 %v4285, %v4287
  %v4289 = vadd.f32 %v4288, -0.4999988
  %v4290 = vmul.f32 %v4285, %v4289
  %v4291 = vadd.f32 1.0, %v4290
  %v4292 = vmul.f32 %v4283, %v4283
  %v4293 = vmul.f32 %v4292, -0.00019511016
  %v4294 = vadd.f32 %v4293, 0.008332121
  %v4295 = vmul.f32 %v4292, %v4294
  %v4296 = vadd.f32 %v4295, -0.16666654
  %v4297 = vmul.f32 %v4292, %v4296
  %v4298 = vadd.f32 %v4297, 1.0
  %v4299 = vmul.f32 %v4298, %v4283
  %vm4300 = vweird.f32 %v3513
  %v4301 = vadd.s32 %v4284, 3
  %v4302 = vand.u32 %v4301, 3
  %vm4303 = vcmp.lt.s32.totalorder %v4302, 2
  %vm4304 = vcmp.eq.s32.totalorder %v4302, 0
  %v4305 = vxor.u32 %v4299, 2147483648
  %v4306 = vsel %vm4304, %v4291, %v4305
  %vm4307 = vcmp.eq.s32.totalorder %v4302, 2
  %v4308 = vxor.u32 %v4291, 2147483648
  %v4309 = vsel %vm4307, %v4308, %v4299
  %v4310 = vsel %vm4303, %v4306, %v4309
  %v4311 = vsel %vm4300, nan, %v4310
  %v4312 = vand.u32 2147483647, %v3514
  %vm4313 = vcmp.le.f32.partialorder %v4312, 0.7853982
  %vm4314 = vcmp.lt.s32.totalorder %v3514, 0
  %v4315 = vand.u32 %v3514, 2139095040
  %v4316 = vshrl.u32 %v4315, 23
  %v4317 = vsub.s32 %v4316, 127
  %v4318 = vand.u32 2147483647, %v3514
  %v4319 = vand.u32 %v4318, 8388607
  %v4320 = vor.u32 %v4319, 8388608
  %v4321 = vsub.s32 0, %v4320
  %v4322 = vadd.s32 %v4317, 1
  %vm4323 = vcmp.gt.s32.totalorder %v4322, 0
  %v4324 = vsel %vm4323, %v4322, 0
  %v4325 = vshrl.u32 %v4324, 5
  %v4326 = vand.u32 %v4324, 31
  %v4327 = vsub.s32 32, %v4326
  %v4328 = vshrl.u32 683565275, %v4327
  %v4329 = vshll.u32 683565275, %v4326
  %v4330 = vshrl.u32 2475754826, %v4327
  %v4331 = vor.u32 %v4329, %v4330
  %v4332 = vshll.u32 2475754826, %v4326
  %v4333 = vshrl.u32 2131351028, %v4327
  %v4334 = vor.u32 %v4332, %v4333
  %v4335 = vshll.u32 2131351028, %v4326
  %v4336 = vshrl.u32 2102212464, %v4327
  %v4337 = vor.u32 %v4335, %v4336
  %v4338 = vshll.u32 2102212464, %v4326
  %v4339 = vshrl.u32 920167782, %v4327
  %v4340 = vor.u32 %v4338, %v4339
  %v4341 = vshll.u32 920167782, %v4326
  %v4342 = vshrl.u32 1326507024, %v4327
  %v4343 = vor.u32 %v4341, %v4342
  %vm4344 = vcmp.lt.s32.totalorder %v4325, 1
  %vm4345 = vcmp.lt.s32.totalorder %v4325, 2
  %vm4346 = vcmp.lt.s32.totalorder %v4325, 3
  %vm4347 = vcmp.lt.s32.totalorder %v4325, 4
  %v4348 = vsel %vm4344, %v4328, %v4331
  %v4349 = vsel %vm4347, %v4337, 2102212464
  %v4350 = vsel %vm4346, %v4334, %v4349
  %v4351 = vsel %vm4345, %v4348, %v4350
  %v4352 = vsel %vm4344, %v4331, %v4334
  %v4353 = vsel %vm4347, %v4340, 920167782
  %v4354 = vsel %vm4346, %v4337, %v4353
  %v4355 = vsel %vm4345, %v4352, %v4354
  %v4356 = vsel %vm4344, %v4334, %v4337
  %v4357 = vsel %vm4347, %v4343, 1326507024
  %v4358 = vsel %vm4346, %v4340, %v4357
  %v4359 = vsel %vm4345, %v4356, %v4358
  %v4360 = vshll.u32 %v4320, 8
  %v4361 = vand.u32 %v4360, 65535
  %v4362 = vshrl.u32 %v4360, 16
  %v4363 = vand.u32 %v4359, 65535
  %v4364 = vshrl.u32 %v4359, 16
  %v4365 = vmul.u32 %v4361, %v4363
  %v4366 = vmul.u32 %v4361, %v4364
  %v4367 = vmul.u32 %v4362, %v4363
  %v4368 = vmul.u32 %v4362, %v4364
  %v4369 = vshll.u32 %v4366, 16
  %v4370 = vshrl.u32 %v4366, 16
  %v4371 = vshll.u32 %v4367, 16
  %v4372 = vshrl.u32 %v4367, 16
  %vm4373 = vc.u32 %v4365, %v4369
  %v4374 = vsel %vm4373, 1, 0
  %v4375 = vadd.s32 %v4365, %v4369
  %v4376 = vadd.s32 %v4368, %v4374
  %vm4377 = vc.u32 %v4375, %v4371
  %v4378 = vsel %vm4377, 1, 0
  %v4379 = vadd.s32 %v4375, %v4371
  %v4380 = vadd.s32 %v4376, %v4378
  %v4381 = vadd.s32 %v4380, %v4370
  %v4382 = vadd.s32 %v4381, %v4372
  %v4383 = vand.u32 %v4360, 65535
  %v4384 = vshrl.u32 %v4360, 16
  %v4385 = vand.u32 %v4355, 65535
  %v4386 = vshrl.u32 %v4355, 16
  %v4387 = vmul.u32 %v4383, %v4385
  %v4388 = vmul.u32 %v4383, %v4386
  %v4389 = vmul.u32 %v4384, %v4385
  %v4390 = vmul.u32 %v4384, %v4386
  %v4391 = vshll.u32 %v4388, 16
  %v4392 = vshrl.u32 %v4388, 16
  %v4393 = vshll.u32 %v4389, 16
  %v4394 = vshrl.u32 %v4389, 16
  %vm4395 = vc.u32 %v4387, %v4391
  %v4396 = vsel %vm4395, 1, 0
  %v4397 = vadd.s32 %v4387, %v4391
  %v4398 = vadd.s32 %v4390, %v4396
  %vm4399 = vc.u32 %v4397, %v4393
  %v4400 = vsel %vm4399, 1, 0
  %v4401 = vadd.s32 %v4397, %v4393
  %v4402 = vadd.s32 %v4398, %v4400
  %v4403 = vadd.s32 %v4402, %v4392
  %v4404 = vadd.s32 %v4403, %v4394
  %v4405 = vmul.u32 %v4360, %v4351
  %v4406 = vadd.s32 %v4382, %v4401
  %vm4407 = vc.u32 %v4382, %v4401
  %v4408 = vadd.s32 %v4404, 1
  %v4409 = vsel %vm4407, %v4408, %v4404
  %v4410 = vadd.s32 %v4405, %v4409
  %v4411 = vadd.s32 %v4410, 536870912
  %v4412 = vshrl.u32 %v4411, 30
  %v4413 = vshll.u32 %v4412, 30
  %v4414 = vsub.s32 %v4410, %v4413
  %vm4415 = vcmp.lt.s32.totalorder %v4414, 0
  %v4416 = vsub.s32 0, %v4414
  %v4417 = vsel %vm4415, %v4416, %v4414
  %v4418 = vclz %v4417
  %v4419 = vsub.s32 %v4418, 2
  %vm4420 = vcmp.gt.s32.totalorder 0, %v4419
  %v4421 = vsel %vm4420, 0, %v4419
  %v4422 = vsub.s32 32, %v4421
  %v4423 = vshll.u32 %v4414, %v4421
  %v4424 = vshrl.u32 %v4406, %v4422
  %v4425 = vor.u32 %v4423, %v4424
  %v4426 = vsub.s32 4294967266, %v4421
  %v4427 = vadd.s32 %v4426, 127
  %v4428 = vshll.u32 %v4427, 23
  %v4429 = vor.u32 4788187, %v4428
  %v4430 = vand.u32 2147483647, %v4429
  %v4432 = vcvt.s32.f32 %v4425
  %v4433 = vmul.f32 %v4432, %v4430
  %v4434 = vxor.u32 %v4433, 2147483648
  %v4435 = vsel %vm4314, %v4434, %v4433
  %v4436 = vsub.s32 4, %v4412
  %v4437 = vsel %vm4314, %v4436, %v4412
  %v4438 = vsel %vm4313, %v3514, %v4435
  %v4439 = vsel %vm4313, 0, %v4437
  %v4440 = vmul.f32 %v4438, %v4438
  %v4441 = vmul.f32 %v4440, -0.001358992
  %v4442 = vadd.f32 %v4441, 0.041655596
  %v4443 = vmul.f32 %v4440, %v4442
  %v4444 = vadd.f32 %v4443, -0.4999988
  %v4445 = vmul.f32 %v4440, %v4444
  %v4446 = vadd.f32 1.0, %v4445
  %v4447 = vmul.f32 %v4438, %v4438
  %v4448 = vmul.f32 %v4447, -0.00019511016
  %v4449 = vadd.f32 %v4448, 0.008332121
  %v4450 = vmul.f32 %v4447, %v4449
  %v4451 = vadd.f32 %v4450, -0.16666654
  %v4452 = vmul.f32 %v4447, %v4451
  %v4453 = vadd.f32 %v4452, 1.0
  %v4454 = vmul.f32 %v4453, %v4438
  %vm4455 = vweird.f32 %v3514
  %v4456 = vadd.s32 %v4439, 3
  %v4457 = vand.u32 %v4456, 3
  %vm4458 = vcmp.lt.s32.totalorder %v4457, 2
  %vm4459 = vcmp.eq.s32.totalorder %v4457, 0
  %v4460 = vxor.u32 %v4454, 2147483648
  %v4461 = vsel %vm4459, %v4446, %v4460
  %vm4462 = vcmp.eq.s32.totalorder %v4457, 2
  %v4463 = vxor.u32 %v4446, 2147483648
  %v4464 = vsel %vm4462, %v4463, %v4454
  %v4465 = vsel %vm4458, %v4461, %v4464
  %v4466 = vsel %vm4455, nan, %v4465
  %v4467 = vand.u32 2147483647, %v3515
  %vm4468 = vcmp.le.f32.partialorder %v4467, 0.7853982
  %vm4469 = vcmp.lt.s32.totalorder %v3515, 0
  %v4470 = vand.u32 %v3515, 2139095040
  %v4471 = vshrl.u32 %v4470, 23
  %v4472 = vsub.s32 %v4471, 127
  %v4473 = vand.u32 2147483647, %v3515
  %v4474 = vand.u32 %v4473, 8388607
  %v4475 = vor.u32 %v4474, 8388608
  %v4476 = vsub.s32 0, %v4475
  %v4477 = vadd.s32 %v4472, 1
  %vm4478 = vcmp.gt.s32.totalorder %v4477, 0
  %v4479 = vsel %vm4478, %v4477, 0
  %v4480 = vshrl.u32 %v4479, 5
  %v4481 = vand.u32 %v4479, 31
  %v4482 = vsub.s32 32, %v4481
  %v4483 = vshrl.u32 683565275, %v4482
  %v4484 = vshll.u32 683565275, %v4481
  %v4485 = vshrl.u32 2475754826, %v4482
  %v4486 = vor.u32 %v4484, %v4485
  %v4487 = vshll.u32 2475754826, %v4481
  %v4488 = vshrl.u32 2131351028, %v4482
  %v4489 = vor.u32 %v4487, %v4488
  %v4490 = vshll.u32 2131351028, %v4481
  %v4491 = vshrl.u32 2102212464, %v4482
  %v4492 = vor.u32 %v4490, %v4491
  %v4493 = vshll.u32 2102212464, %v4481
  %v4494 = vshrl.u32 920167782, %v4482
  %v4495 = vor.u32 %v4493, %v4494
  %v4496 = vshll.u32 920167782, %v4481
  %v4497 = vshrl.u32 1326507024, %v4482
  %v4498 = vor.u32 %v4496, %v4497
  %vm4499 = vcmp.lt.s32.totalorder %v4480, 1
  %vm4500 = vcmp.lt.s32.totalorder %v4480, 2
  %vm4501 = vcmp.lt.s32.totalorder %v4480, 3
  %vm4502 = vcmp.lt.s32.totalorder %v4480, 4
  %v4503 = vsel %vm4499, %v4483, %v4486
  %v4504 = vsel %vm4502, %v4492, 2102212464
  %v4505 = vsel %vm4501, %v4489, %v4504
  %v4506 = vsel %vm4500, %v4503, %v4505
  %v4507 = vsel %vm4499, %v4486, %v4489
  %v4508 = vsel %vm4502, %v4495, 920167782
  %v4509 = vsel %vm4501, %v4492, %v4508
  %v4510 = vsel %vm4500, %v4507, %v4509
  %v4511 = vsel %vm4499, %v4489, %v4492
  %v4512 = vsel %vm4502, %v4498, 1326507024
  %v4513 = vsel %vm4501, %v4495, %v4512
  %v4514 = vsel %vm4500, %v4511, %v4513
  %v4515 = vshll.u32 %v4475, 8
  %v4516 = vand.u32 %v4515, 65535
  %v4517 = vshrl.u32 %v4515, 16
  %v4518 = vand.u32 %v4514, 65535
  %v4519 = vshrl.u32 %v4514, 16
  %v4520 = vmul.u32 %v4516, %v4518
  %v4521 = vmul.u32 %v4516, %v4519
  %v4522 = vmul.u32 %v4517, %v4518
  %v4523 = vmul.u32 %v4517, %v4519
  %v4524 = vshll.u32 %v4521, 16
  %v4525 = vshrl.u32 %v4521, 16
  %v4526 = vshll.u32 %v4522, 16
  %v4527 = vshrl.u32 %v4522, 16
  %vm4528 = vc.u32 %v4520, %v4524
  %v4529 = vsel %vm4528, 1, 0
  %v4530 = vadd.s32 %v4520, %v4524
  %v4531 = vadd.s32 %v4523, %v4529
  %vm4532 = vc.u32 %v4530, %v4526
  %v4533 = vsel %vm4532, 1, 0
  %v4534 = vadd.s32 %v4530, %v4526
  %v4535 = vadd.s32 %v4531, %v4533
  %v4536 = vadd.s32 %v4535, %v4525
  %v4537 = vadd.s32 %v4536, %v4527
  %v4538 = vand.u32 %v4515, 65535
  %v4539 = vshrl.u32 %v4515, 16
  %v4540 = vand.u32 %v4510, 65535
  %v4541 = vshrl.u32 %v4510, 16
  %v4542 = vmul.u32 %v4538, %v4540
  %v4543 = vmul.u32 %v4538, %v4541
  %v4544 = vmul.u32 %v4539, %v4540
  %v4545 = vmul.u32 %v4539, %v4541
  %v4546 = vshll.u32 %v4543, 16
  %v4547 = vshrl.u32 %v4543, 16
  %v4548 = vshll.u32 %v4544, 16
  %v4549 = vshrl.u32 %v4544, 16
  %vm4550 = vc.u32 %v4542, %v4546
  %v4551 = vsel %vm4550, 1, 0
  %v4552 = vadd.s32 %v4542, %v4546
  %v4553 = vadd.s32 %v4545, %v4551
  %vm4554 = vc.u32 %v4552, %v4548
  %v4555 = vsel %vm4554, 1, 0
  %v4556 = vadd.s32 %v4552, %v4548
  %v4557 = vadd.s32 %v4553, %v4555
  %v4558 = vadd.s32 %v4557, %v4547
  %v4559 = vadd.s32 %v4558, %v4549
  %v4560 = vmul.u32 %v4515, %v4506
  %v4561 = vadd.s32 %v4537, %v4556
  %vm4562 = vc.u32 %v4537, %v4556
  %v4563 = vadd.s32 %v4559, 1
  %v4564 = vsel %vm4562, %v4563, %v4559
  %v4565 = vadd.s32 %v4560, %v4564
  %v4566 = vadd.s32 %v4565, 536870912
  %v4567 = vshrl.u32 %v4566, 30
  %v4568 = vshll.u32 %v4567, 30
  %v4569 = vsub.s32 %v4565, %v4568
  %vm4570 = vcmp.lt.s32.totalorder %v4569, 0
  %v4571 = vsub.s32 0, %v4569
  %v4572 = vsel %vm4570, %v4571, %v4569
  %v4573 = vclz %v4572
  %v4574 = vsub.s32 %v4573, 2
  %vm4575 = vcmp.gt.s32.totalorder 0, %v4574
  %v4576 = vsel %vm4575, 0, %v4574
  %v4577 = vsub.s32 32, %v4576
  %v4578 = vshll.u32 %v4569, %v4576
  %v4579 = vshrl.u32 %v4561, %v4577
  %v4580 = vor.u32 %v4578, %v4579
  %v4581 = vsub.s32 4294967266, %v4576
  %v4582 = vadd.s32 %v4581, 127
  %v4583 = vshll.u32 %v4582, 23
  %v4584 = vor.u32 4788187, %v4583
  %v4585 = vand.u32 2147483647, %v4584
  %v4587 = vcvt.s32.f32 %v4580
  %v4588 = vmul.f32 %v4587, %v4585
  %v4589 = vxor.u32 %v4588, 2147483648
  %v4590 = vsel %vm4469, %v4589, %v4588
  %v4591 = vsub.s32 4, %v4567
  %v4592 = vsel %vm4469, %v4591, %v4567
  %v4593 = vsel %vm4468, %v3515, %v4590
  %v4594 = vsel %vm4468, 0, %v4592
  %v4595 = vmul.f32 %v4593, %v4593
  %v4596 = vmul.f32 %v4595, -0.001358992
  %v4597 = vadd.f32 %v4596, 0.041655596
  %v4598 = vmul.f32 %v4595, %v4597
  %v4599 = vadd.f32 %v4598, -0.4999988
  %v4600 = vmul.f32 %v4595, %v4599
  %v4601 = vadd.f32 1.0, %v4600
  %v4602 = vmul.f32 %v4593, %v4593
  %v4603 = vmul.f32 %v4602, -0.00019511016
  %v4604 = vadd.f32 %v4603, 0.008332121
  %v4605 = vmul.f32 %v4602, %v4604
  %v4606 = vadd.f32 %v4605, -0.16666654
  %v4607 = vmul.f32 %v4602, %v4606
  %v4608 = vadd.f32 %v4607, 1.0
  %v4609 = vmul.f32 %v4608, %v4593
  %vm4610 = vweird.f32 %v3515
  %v4611 = vadd.s32 %v4594, 3
  %v4612 = vand.u32 %v4611, 3
  %vm4613 = vcmp.lt.s32.totalorder %v4612, 2
  %vm4614 = vcmp.eq.s32.totalorder %v4612, 0
  %v4615 = vxor.u32 %v4609, 2147483648
  %v4616 = vsel %vm4614, %v4601, %v4615
  %vm4617 = vcmp.eq.s32.totalorder %v4612, 2
  %v4618 = vxor.u32 %v4601, 2147483648
  %v4619 = vsel %vm4617, %v4618, %v4609
  %v4620 = vsel %vm4613, %v4616, %v4619
  %v4621 = vsel %vm4610, nan, %v4620
  %v4622 = vand.u32 2147483647, %v3516
  %vm4623 = vcmp.le.f32.partialorder %v4622, 0.7853982
  %vm4624 = vcmp.lt.s32.totalorder %v3516, 0
  %v4625 = vand.u32 %v3516, 2139095040
  %v4626 = vshrl.u32 %v4625, 23
  %v4627 = vsub.s32 %v4626, 127
  %v4628 = vand.u32 2147483647, %v3516
  %v4629 = vand.u32 %v4628, 8388607
  %v4630 = vor.u32 %v4629, 8388608
  %v4631 = vsub.s32 0, %v4630
  %v4632 = vadd.s32 %v4627, 1
  %vm4633 = vcmp.gt.s32.totalorder %v4632, 0
  %v4634 = vsel %vm4633, %v4632, 0
  %v4635 = vshrl.u32 %v4634, 5
  %v4636 = vand.u32 %v4634, 31
  %v4637 = vsub.s32 32, %v4636
  %v4638 = vshrl.u32 683565275, %v4637
  %v4639 = vshll.u32 683565275, %v4636
  %v4640 = vshrl.u32 2475754826, %v4637
  %v4641 = vor.u32 %v4639, %v4640
  %v4642 = vshll.u32 2475754826, %v4636
  %v4643 = vshrl.u32 2131351028, %v4637
  %v4644 = vor.u32 %v4642, %v4643
  %v4645 = vshll.u32 2131351028, %v4636
  %v4646 = vshrl.u32 2102212464, %v4637
  %v4647 = vor.u32 %v4645, %v4646
  %v4648 = vshll.u32 2102212464, %v4636
  %v4649 = vshrl.u32 920167782, %v4637
  %v4650 = vor.u32 %v4648, %v4649
  %v4651 = vshll.u32 920167782, %v4636
  %v4652 = vshrl.u32 1326507024, %v4637
  %v4653 = vor.u32 %v4651, %v4652
  %vm4654 = vcmp.lt.s32.totalorder %v4635, 1
  %vm4655 = vcmp.lt.s32.totalorder %v4635, 2
  %vm4656 = vcmp.lt.s32.totalorder %v4635, 3
  %vm4657 = vcmp.lt.s32.totalorder %v4635, 4
  %v4658 = vsel %vm4654, %v4638, %v4641
  %v4659 = vsel %vm4657, %v4647, 2102212464
  %v4660 = vsel %vm4656, %v4644, %v4659
  %v4661 = vsel %vm4655, %v4658, %v4660
  %v4662 = vsel %vm4654, %v4641, %v4644
  %v4663 = vsel %vm4657, %v4650, 920167782
  %v4664 = vsel %vm4656, %v4647, %v4663
  %v4665 = vsel %vm4655, %v4662, %v4664
  %v4666 = vsel %vm4654, %v4644, %v4647
  %v4667 = vsel %vm4657, %v4653, 1326507024
  %v4668 = vsel %vm4656, %v4650, %v4667
  %v4669 = vsel %vm4655, %v4666, %v4668
  %v4670 = vshll.u32 %v4630, 8
  %v4671 = vand.u32 %v4670, 65535
  %v4672 = vshrl.u32 %v4670, 16
  %v4673 = vand.u32 %v4669, 65535
  %v4674 = vshrl.u32 %v4669, 16
  %v4675 = vmul.u32 %v4671, %v4673
  %v4676 = vmul.u32 %v4671, %v4674
  %v4677 = vmul.u32 %v4672, %v4673
  %v4678 = vmul.u32 %v4672, %v4674
  %v4679 = vshll.u32 %v4676, 16
  %v4680 = vshrl.u32 %v4676, 16
  %v4681 = vshll.u32 %v4677, 16
  %v4682 = vshrl.u32 %v4677, 16
  %vm4683 = vc.u32 %v4675, %v4679
  %v4684 = vsel %vm4683, 1, 0
  %v4685 = vadd.s32 %v4675, %v4679
  %v4686 = vadd.s32 %v4678, %v4684
  %vm4687 = vc.u32 %v4685, %v4681
  %v4688 = vsel %vm4687, 1, 0
  %v4689 = vadd.s32 %v4685, %v4681
  %v4690 = vadd.s32 %v4686, %v4688
  %v4691 = vadd.s32 %v4690, %v4680
  %v4692 = vadd.s32 %v4691, %v4682
  %v4693 = vand.u32 %v4670, 65535
  %v4694 = vshrl.u32 %v4670, 16
  %v4695 = vand.u32 %v4665, 65535
  %v4696 = vshrl.u32 %v4665, 16
  %v4697 = vmul.u32 %v4693, %v4695
  %v4698 = vmul.u32 %v4693, %v4696
  %v4699 = vmul.u32 %v4694, %v4695
  %v4700 = vmul.u32 %v4694, %v4696
  %v4701 = vshll.u32 %v4698, 16
  %v4702 = vshrl.u32 %v4698, 16
  %v4703 = vshll.u32 %v4699, 16
  %v4704 = vshrl.u32 %v4699, 16
  %vm4705 = vc.u32 %v4697, %v4701
  %v4706 = vsel %vm4705, 1, 0
  %v4707 = vadd.s32 %v4697, %v4701
  %v4708 = vadd.s32 %v4700, %v4706
  %vm4709 = vc.u32 %v4707, %v4703
  %v4710 = vsel %vm4709, 1, 0
  %v4711 = vadd.s32 %v4707, %v4703
  %v4712 = vadd.s32 %v4708, %v4710
  %v4713 = vadd.s32 %v4712, %v4702
  %v4714 = vadd.s32 %v4713, %v4704
  %v4715 = vmul.u32 %v4670, %v4661
  %v4716 = vadd.s32 %v4692, %v4711
  %vm4717 = vc.u32 %v4692, %v4711
  %v4718 = vadd.s32 %v4714, 1
  %v4719 = vsel %vm4717, %v4718, %v4714
  %v4720 = vadd.s32 %v4715, %v4719
  %v4721 = vadd.s32 %v4720, 536870912
  %v4722 = vshrl.u32 %v4721, 30
  %v4723 = vshll.u32 %v4722, 30
  %v4724 = vsub.s32 %v4720, %v4723
  %vm4725 = vcmp.lt.s32.totalorder %v4724, 0
  %v4726 = vsub.s32 0, %v4724
  %v4727 = vsel %vm4725, %v4726, %v4724
  %v4728 = vclz %v4727
  %v4729 = vsub.s32 %v4728, 2
  %vm4730 = vcmp.gt.s32.totalorder 0, %v4729
  %v4731 = vsel %vm4730, 0, %v4729
  %v4732 = vsub.s32 32, %v4731
  %v4733 = vshll.u32 %v4724, %v4731
  %v4734 = vshrl.u32 %v4716, %v4732
  %v4735 = vor.u32 %v4733, %v4734
  %v4736 = vsub.s32 4294967266, %v4731
  %v4737 = vadd.s32 %v4736, 127
  %v4738 = vshll.u32 %v4737, 23
  %v4739 = vor.u32 4788187, %v4738
  %v4740 = vand.u32 2147483647, %v4739
  %v4742 = vcvt.s32.f32 %v4735
  %v4743 = vmul.f32 %v4742, %v4740
  %v4744 = vxor.u32 %v4743, 2147483648
  %v4745 = vsel %vm4624, %v4744, %v4743
  %v4746 = vsub.s32 4, %v4722
  %v4747 = vsel %vm4624, %v4746, %v4722
  %v4748 = vsel %vm4623, %v3516, %v4745
  %v4749 = vsel %vm4623, 0, %v4747
  %v4750 = vmul.f32 %v4748, %v4748
  %v4751 = vmul.f32 %v4750, -0.001358992
  %v4752 = vadd.f32 %v4751, 0.041655596
  %v4753 = vmul.f32 %v4750, %v4752
  %v4754 = vadd.f32 %v4753, -0.4999988
  %v4755 = vmul.f32 %v4750, %v4754
  %v4756 = vadd.f32 1.0, %v4755
  %v4757 = vmul.f32 %v4748, %v4748
  %v4758 = vmul.f32 %v4757, -0.00019511016
  %v4759 = vadd.f32 %v4758, 0.008332121
  %v4760 = vmul.f32 %v4757, %v4759
  %v4761 = vadd.f32 %v4760, -0.16666654
  %v4762 = vmul.f32 %v4757, %v4761
  %v4763 = vadd.f32 %v4762, 1.0
  %v4764 = vmul.f32 %v4763, %v4748
  %vm4765 = vweird.f32 %v3516
  %v4766 = vadd.s32 %v4749, 3
  %v4767 = vand.u32 %v4766, 3
  %vm4768 = vcmp.lt.s32.totalorder %v4767, 2
  %vm4769 = vcmp.eq.s32.totalorder %v4767, 0
  %v4770 = vxor.u32 %v4764, 2147483648
  %v4771 = vsel %vm4769, %v4756, %v4770
  %vm4772 = vcmp.eq.s32.totalorder %v4767, 2
  %v4773 = vxor.u32 %v4756, 2147483648
  %v4774 = vsel %vm4772, %v4773, %v4764
  %v4775 = vsel %vm4768, %v4771, %v4774
  %v4776 = vsel %vm4765, nan, %v4775
  %v4777 = vmul.f32 %v3537, %v3694
  %v4778 = vmul.f32 %v3538, %v3848
  %v4779 = vmul.f32 %v3539, %v4002
  %v4780 = vmul.f32 %v3540, %v4156
  %v4781 = vmul.f32 %v3537, %v4311
  %v4782 = vmul.f32 %v3538, %v4466
  %v4783 = vmul.f32 %v3539, %v4621
  %v4784 = vmul.f32 %v3540, %v4776
  %4789 = vrot.lane.b32.xlu0 %v4781, 127
  %v4790 = vpop.permute.xlu0 %4789
  %4791 = vrot.lane.b32.xlu0 %v4782, 127
  %v4792 = vpop.permute.xlu0 %4791
  %4793 = vrot.lane.b32.xlu0 %v4783, 127
  %v4794 = vpop.permute.xlu0 %4793
  %4795 = vrot.lane.b32.xlu0 %v4784, 127
  %v4796 = vpop.permute.xlu0 %4795
  %v4801 = vadd.f32 %v4777, %v4790
  %v4802 = vadd.f32 %v4778, %v4792
  %v4803 = vadd.f32 %v4779, %v4794
  %v4804 = vadd.f32 %v4780, %v4796
  %v4805 = vsub.f32 0.0, %v3537
  %v4806 = vsub.f32 0.0, %v3538
  %v4807 = vsub.f32 0.0, %v3539
  %v4808 = vsub.f32 0.0, %v3540
  %v4809 = vmul.f32 %v4805, %v4311
  %v4810 = vmul.f32 %v4806, %v4466
  %v4811 = vmul.f32 %v4807, %v4621
  %v4812 = vmul.f32 %v4808, %v4776
  %4817 = vrot.lane.b32.xlu0 %v4777, 127
  %v4818 = vpop.permute.xlu0 %4817
  %4819 = vrot.lane.b32.xlu0 %v4778, 127
  %v4820 = vpop.permute.xlu0 %4819
  %4821 = vrot.lane.b32.xlu0 %v4779, 127
  %v4822 = vpop.permute.xlu0 %4821
  %4823 = vrot.lane.b32.xlu0 %v4780, 127
  %v4824 = vpop.permute.xlu0 %4823
  %v4829 = vadd.f32 %v4809, %v4818
  %v4830 = vadd.f32 %v4810, %v4820
  %v4831 = vadd.f32 %v4811, %v4822
  %v4832 = vadd.f32 %v4812, %v4824
  %v4833 = vld [vmem:[%s2] sm:$0xff]
  %v4834 = vld [vmem:[%s2 + $0x8] sm:$0xff]
  %v4835 = vld [vmem:[%s2 + $0x10] sm:$0xff]
  %v4836 = vld [vmem:[%s2 + $0x18] sm:$0xff]
  %4841 = vrot.lane.b32.xlu0 %v4801, 126
  %v4842 = vpop.permute.xlu0 %4841
  %4843 = vrot.lane.b32.xlu0 %v4802, 126
  %v4844 = vpop.permute.xlu0 %4843
  %4845 = vrot.lane.b32.xlu0 %v4803, 126
  %v4846 = vpop.permute.xlu0 %4845
  %4847 = vrot.lane.b32.xlu0 %v4804, 126
  %v4848 = vpop.permute.xlu0 %4847
  %4857 = vrot.lane.b32.xlu0 %v4829, 127
  %v4858 = vpop.permute.xlu0 %4857
  %4859 = vrot.lane.b32.xlu0 %v4830, 127
  %v4860 = vpop.permute.xlu0 %4859
  %4861 = vrot.lane.b32.xlu0 %v4831, 127
  %v4862 = vpop.permute.xlu0 %4861
  %4863 = vrot.lane.b32.xlu0 %v4832, 127
  %v4864 = vpop.permute.xlu0 %4863
  %4873 = vrot.lane.b32.xlu0 %v3537, 126
  %v4874 = vpop.permute.xlu0 %4873
  %4875 = vrot.lane.b32.xlu0 %v3538, 126
  %v4876 = vpop.permute.xlu0 %4875
  %4877 = vrot.lane.b32.xlu0 %v3539, 126
  %v4878 = vpop.permute.xlu0 %4877
  %4879 = vrot.lane.b32.xlu0 %v3540, 126
  %v4880 = vpop.permute.xlu0 %4879
  %vm4885 = vcmask 7168
  %v4886 = vsel %vm4885, %v4842, %v4858
  %v4887 = vsel %vm4885, %v4844, %v4860
  %v4888 = vsel %vm4885, %v4846, %v4862
  %v4889 = vsel %vm4885, %v4848, %v4864
  %vm4890 = vcmask 15360
  %v4891 = vsel %vm4890, %v4886, %v4874
  %v4892 = vsel %vm4890, %v4887, %v4876
  %v4893 = vsel %vm4890, %v4888, %v4878
  %v4894 = vsel %vm4890, %v4889, %v4880
  %v4895 = vsub.f32 %v4833, %v4891
  %v4896 = vsub.f32 %v4834, %v4892
  %v4897 = vsub.f32 %v4835, %v4893
  %v4898 = vsub.f32 %v4836, %v4894
  %4899 = vrot.lane.b32.xlu0 %v3370, 1
  %v4900 = vpop.permute.xlu0 %4899
  %4901 = vrot.lane.b32.xlu0 %v3372, 1
  %v4902 = vpop.permute.xlu0 %4901
  %4903 = vrot.lane.b32.xlu0 %v3375, 1
  %v4904 = vpop.permute.xlu0 %4903
  %4905 = vrot.lane.b32.xlu0 %v3377, 1
  %v4906 = vpop.permute.xlu0 %4905
  %vm4911 = vcmp.gt.f32.partialorder %v3370, %v4900
  %vm4912 = vcmp.gt.f32.partialorder %v3372, %v4902
  %vm4913 = vcmp.gt.f32.partialorder %v3375, %v4904
  %vm4914 = vcmp.gt.f32.partialorder %v3377, %v4906
  %v4915 = vsel %vm4911, 1, 0
  %v4916 = vsel %vm4912, 1, 0
  %v4917 = vsel %vm4913, 1, 0
  %v4918 = vsel %vm4914, 1, 0
  %v4919 = vcvt.s32.f32 %v4915
  %v4920 = vcvt.s32.f32 %v4916
  %v4921 = vcvt.s32.f32 %v4917
  %v4922 = vcvt.s32.f32 %v4918
  %4927 = vrot.lane.b32.xlu0 %v3529, 127
  %v4928 = vpop.permute.xlu0 %4927
  %4929 = vrot.lane.b32.xlu0 %v3530, 127
  %v4930 = vpop.permute.xlu0 %4929
  %4931 = vrot.lane.b32.xlu0 %v3531, 127
  %v4932 = vpop.permute.xlu0 %4931
  %4933 = vrot.lane.b32.xlu0 %v3532, 127
  %v4934 = vpop.permute.xlu0 %4933
  %4943 = vrot.lane.b32.xlu0 %v4895, 4
  %v4944 = vpop.permute.xlu0 %4943
  %4945 = vrot.lane.b32.xlu0 %v4896, 4
  %v4946 = vpop.permute.xlu0 %4945
  %4947 = vrot.lane.b32.xlu0 %v4897, 4
  %v4948 = vpop.permute.xlu0 %4947
  %4949 = vrot.lane.b32.xlu0 %v4898, 4
  %v4950 = vpop.permute.xlu0 %4949
  %4959 = vrot.lane.b32.xlu0 %v4919, 6
  %v4960 = vpop.permute.xlu0 %4959
  %4961 = vrot.lane.b32.xlu0 %v4920, 6
  %v4962 = vpop.permute.xlu0 %4961
  %4963 = vrot.lane.b32.xlu0 %v4921, 6
  %v4964 = vpop.permute.xlu0 %4963
  %4965 = vrot.lane.b32.xlu0 %v4922, 6
  %v4966 = vpop.permute.xlu0 %4965
  %v4971 = vsel %vm4885, %v3513, %v4928
  %v4972 = vsel %vm4885, %v3514, %v4930
  %v4973 = vsel %vm4885, %v3515, %v4932
  %v4974 = vsel %vm4885, %v3516, %v4934
  %v4975 = vsel %vm3492, %v4971, %v4944
  %v4976 = vsel %vm3492, %v4972, %v4946
  %v4977 = vsel %vm3492, %v4973, %v4948
  %v4978 = vsel %vm3492, %v4974, %v4950
  %vm4979 = vcmask 56320
  %v4980 = vsel %vm4979, %v4975, %v4960
  %v4981 = vsel %vm4979, %v4976, %v4962
  %v4982 = vsel %vm4979, %v4977, %v4964
  %v4983 = vsel %vm4979, %v4978, %v4966
  %vm4984 = vcmask 64512
  %v4985 = vsel %vm4984, %v4980, 0.0
  %v4986 = vsel %vm4984, %v4981, 0.0
  %v4987 = vsel %vm4984, %v4982, 0.0
  %v4988 = vsel %vm4984, %v4983, 0.0
  %4989 = vst [vmem:[%s17] sm:$0xff] %v4985
  %4990 = vst [vmem:[%s17 + $0x8] sm:$0xff] %v4986
  %4991 = vst [vmem:[%s17 + $0x10] sm:$0xff] %v4987
  %4992 = vst [vmem:[%s17 + $0x18] sm:$0xff] %v4988
  // Predicated region
  $region62: #{proposal_module_forward.1} parent=0 // pred_check
    _
  $region63: #{proposal_module_forward.1} parent=0 // pred_check_branch
    %4994 = sbr.rel (0) target = $region65
  $region64: #{proposal_module_forward.1} parent=0 // pred_region
    _
  $region65: #{proposal_module_forward.1} parent=0 // pred_fallthru
    _
  // Predicated region
  $region66: #{proposal_module_forward.1} parent=0 // pred_check
    _
  $region67: #{proposal_module_forward.1} parent=0 // pred_check_branch
    %4996 = sbr.rel (0) target = $region69
  $region68: #{proposal_module_forward.1} parent=0 // pred_region
    _
  $region69: #{proposal_module_forward.1} parent=0 // pred_fallthru
    _
  // Predicated region
  $region70: #{proposal_module_forward.1} parent=0 // pred_check
    _
  $region71: #{proposal_module_forward.1} parent=0 // pred_check_branch
    %4998 = sbr.rel (0) target = $region73
  $region72: #{proposal_module_forward.1} parent=0 // pred_region
    _
  $region73: #{proposal_module_forward.1} parent=0 // pred_fallthru
    _
  // Predicated region
  $region74: #{proposal_module_forward.1} parent=0 // pred_check
    _
  $region75: #{proposal_module_forward.1} parent=0 // pred_check_branch
    %5000 = sbr.rel (0) target = $region77
  $region76: #{proposal_module_forward.1} parent=0 // pred_region
    _
  $region77: #{proposal_module_forward.1} parent=0 // pred_fallthru
    _
  // Predicated region
  $region78: #{proposal_module_forward.1} parent=0 // pred_check
    _
  $region79: #{proposal_module_forward.1} parent=0 // pred_check_branch
    %5002 = sbr.rel (0) target = $region81
  $region80: #{proposal_module_forward.1} parent=0 // pred_region
    _
  $region81: #{proposal_module_forward.1} parent=0 // pred_fallthru
    _
  // Predicated region
  $region82: #{proposal_module_forward.1} parent=0 // pred_check
    _
  $region83: #{proposal_module_forward.1} parent=0 // pred_check_branch
    %5004 = sbr.rel (0) target = $region85
  $region84: #{proposal_module_forward.1} parent=0 // pred_region
    _
  $region85: #{proposal_module_forward.1} parent=0 // pred_fallthru
    _

</llo_original>
